<compile_context>
chip_gen: v7x
topology: tpu7x:2x2x1
jax: 0.10.0
libtpu: 0.0.40
codegen_flags: <defaults>
</compile_context>

<pallas_src>
import math
import functools

import numpy as np
import jax
import jax.numpy as jnp
from jax.experimental import pallas as pl
from jax.experimental.pallas import tpu as pltpu

# bf16 operands for every GEMM (attention projections, packed scores/PV, FFN); f32
# accumulation everywhere.  Set to jnp.float32 to reproduce pure-f32 PyTorch numerics.
GEMM_DTYPE = jnp.bfloat16


# ----------------------------------------------------------------------------
# Fused per-layer kernel (grid = (num_layers,), activations carried in VMEM scratch)
# ----------------------------------------------------------------------------

def _quantity_tf_kernel(
    x_ref,        # (M, E)        f32   activations, rows ordered (batch, seq)
    qk_mask_ref,  # (E, H*M)      gdt   band mask: [e, h*M+j] = 1 iff e in head h
    pv_mask_ref,  # (H*M, E)      gdt   its transpose (also = per-head denominator matrix)
    rep_k_ref,    # (M, H*M)      gdt   lane-replication matrix  (kT -> K tiled along lanes)
    rep_v_ref,    # (H*M, M)      gdt   sublane-replication matrix (v -> V tiled along sublanes)
    bias_ref,     # (M, H*M)      f32   0 / -1e30 cross-batch score bias (tiled per head)
    sel_ref,      # (B, M)        f32   selects row (b, S-1) for every batch
    attn_w_ref,   # (8, E, E)     gdt   this layer: [sa_q, sa_k, sa_v, sa_o, ca_q, ca_k, ca_v, ca_o]
    attn_b_ref,   # (8, 1, E)     f32
    w1_ref,       # (1, E, FF)    gdt
    b1_ref,       # (1, 1, FF)    gdt
    w2_ref,       # (1, FF, E)    gdt
    b2_ref,       # (1, 1, E)     f32
    ln_w_ref,     # (3, 1, E)     f32   this layer: [norm1, norm2, norm3]
    ln_b_ref,     # (3, 1, E)     f32
    fc_w_ref,     # (E, Nout)     f32
    fc_b_ref,     # (1, Nout)     f32
    o_ref,        # (B, Nout)     f32
    x_state,      # VMEM (M, E)   f32   activation carried across layers
    *, nhead, eps):
  f32 = jnp.float32
  gdt = w1_ref.dtype
  M, E = x_state.shape
  Dh = E // nhead
  scale = 1.0 / math.sqrt(Dh)
  layer = pl.program_id(0)

  @pl.when(layer == 0)
  def _():
    x_state[...] = x_ref[...]

  qk_mask = qk_mask_ref[...]
  pv_mask = pv_mask_ref[...]
  rep_k = rep_k_ref[...]
  rep_v = rep_v_ref[...]
  bias = bias_ref[...]

  def layernorm(y, idx):
    mu = jnp.mean(y, axis=-1, keepdims=True)
    yc = y - mu
    var = jnp.mean(yc * yc, axis=-1, keepdims=True)
    return yc * jax.lax.rsqrt(var + eps) * ln_w_ref[idx] + ln_b_ref[idx]

  def mha(x_q, x_kv, base):
    # nn.MultiheadAttention (eval).  All heads are lane-packed into one (M, H*M) score
    # matrix so every softmax/GEMM runs on full 128-lane rows instead of 8 tiny ones.
    xq_g = x_q.astype(gdt)
    xkv_g = x_kv.astype(gdt)
    q = jnp.dot(xq_g, attn_w_ref[base + 0], preferred_element_type=f32) + attn_b_ref[base + 0]
    k = jnp.dot(xkv_g, attn_w_ref[base + 1], preferred_element_type=f32) + attn_b_ref[base + 1]
    v = jnp.dot(xkv_g, attn_w_ref[base + 2], preferred_element_type=f32) + attn_b_ref[base + 2]
    # K_big[e, h*M+j] = k[j, e] * band(e, h)   (E, H*M)
    # V_big[h*M+j, e] = v[j, e] * band(e, h)   (H*M, E)
    kT_g = k.T.astype(gdt)
    K_big = jnp.dot(kT_g, rep_k, preferred_element_type=f32).astype(gdt) * qk_mask
    V_big = jnp.dot(rep_v, v.astype(gdt), preferred_element_type=f32).astype(gdt) * pv_mask
    # one packed score GEMM; -1e30 bias / max / exp stay f32 (bf16 cannot hold -1e30)
    qs = (q * scale).astype(gdt)
    s = jnp.dot(qs, K_big, preferred_element_type=f32) + bias        # (M, H*M) f32
    s = s - jnp.max(s, axis=-1, keepdims=True)       # global row max (valid per head)
    p = jnp.exp(s)                                   # cross-batch lanes -> exactly 0
    p_g = p.astype(gdt)
    num = jnp.dot(p_g, V_big, preferred_element_type=f32)            # (M, E) per-head weighted V sums
    den = jnp.dot(p_g, pv_mask, preferred_element_type=f32)          # (M, E) per-head softmax denominators
    attn = num / jnp.maximum(den, 1e-30)             # exact f32 divide (underflow guard only)
    # heads already occupy disjoint column blocks of `attn` -> output projection
    return jnp.dot(attn.astype(gdt), attn_w_ref[base + 3], preferred_element_type=f32) + attn_b_ref[base + 3]

  x = x_state[...]
  # The PyTorch forward calls layer(output, output): the cross-attention "memory" is
  # this layer's own input (NOT the original features), so it changes per layer.
  mem = x
  x = layernorm(x + mha(x, x, 0), 0)           # self-attn  + norm1
  x = layernorm(x + mha(x, mem, 4), 1)         # cross-attn + norm2
  h = jnp.dot(x.astype(gdt), w1_ref[0], preferred_element_type=f32)
  h = jnp.maximum(h.astype(gdt) + b1_ref[0], 0.0)    # bias+ReLU on the (M,FF) intermediate in gdt
  ff = jnp.dot(h, w2_ref[0], preferred_element_type=f32) + b2_ref[0]
  x = layernorm(x + ff, 2)                     # FFN        + norm3
  x_state[...] = x
  # TODO(synk): dropout layers are identity (module evaluated in inference/eval mode).

  @pl.when(layer == pl.num_programs(0) - 1)
  def _():
    # output[-1] -> (B, E) via a tiny selection matmul (no unaligned row slicing), then fc.
    x_last = jnp.dot(sel_ref[...], x, preferred_element_type=f32)
    o_ref[...] = (jnp.dot(x_last, fc_w_ref[...], preferred_element_type=f32)
                  + fc_b_ref[...]).astype(o_ref.dtype)


# ----------------------------------------------------------------------------
# Host-side constants (band masks, replication matrices, batch bias, last-row selector)
# ----------------------------------------------------------------------------

def _attention_constants(batch, seq, embed, nhead, gemm_dtype):
  M = batch * seq
  HM = nhead * M
  Dh = embed // nhead
  e = np.arange(embed)[:, None]                                 # (E, 1)
  h_of_col = (np.arange(HM) // M)[None, :]                      # (1, HM)
  j_of_col = (np.arange(HM) % M)[None, :]                       # (1, HM)
  qk_mask = (e // Dh == h_of_col).astype(np.float32)            # (E, HM)
  rep_k = (np.arange(M)[:, None] == j_of_col).astype(np.float32)  # (M, HM)
  bi = (np.arange(M) // seq)[:, None]
  bj = (np.asarray(j_of_col) // seq)
  score_bias = np.where(bi == bj, 0.0, -1e30).astype(np.float32)  # (M, HM)
  sel_last = (np.arange(M)[None, :] ==
              (np.arange(batch) * seq + seq - 1)[:, None]).astype(np.float32)  # (B, M)
  return (jnp.asarray(qk_mask, gemm_dtype), jnp.asarray(qk_mask.T, gemm_dtype),
          jnp.asarray(rep_k, gemm_dtype), jnp.asarray(rep_k.T, gemm_dtype),
          jnp.asarray(score_bias), jnp.asarray(sel_last))


# ----------------------------------------------------------------------------
# Host wrapper: one pallas_call, grid over layers (weights prefetched per layer)
# ----------------------------------------------------------------------------

def quantity_tf_forward(img_features, params, nhead):
  """img_features: (B, E, S)  ->  (B, num_ingredients - 1)."""
  Bsz, E, S = img_features.shape
  assert E % nhead == 0
  M = Bsz * S
  HM = nhead * M
  L, _, FF = params["w1"].shape
  Nout = params["fc_w"].shape[1]
  gdt = params["w1"].dtype

  # One-time layout fix: (B, E, S) -> (B, S, E) -> (B*S, E), rows ordered (batch, seq).
  x2 = jnp.transpose(img_features, (0, 2, 1)).reshape(M, E)
  qk_mask, pv_mask, rep_k, rep_v, score_bias, sel_last = _attention_constants(
      Bsz, S, E, nhead, gdt)

  inputs = (x2, qk_mask, pv_mask, rep_k, rep_v, score_bias, sel_last,
            params["attn_w"], params["attn_b"], params["w1"], params["b1"],
            params["w2"], params["b2"], params["ln_w"], params["ln_b"],
            params["fc_w"], params["fc_b"])

  def c2(l):  # constant blocks: DMA'd once (block index never changes)
    return (0, 0)

  def p3(l):  # per-layer weight blocks: double-buffered, prefetched under compute
    return (l, 0, 0)

  in_specs = [
      pl.BlockSpec((M, E), c2),            # x
      pl.BlockSpec((E, HM), c2),           # qk_mask
      pl.BlockSpec((HM, E), c2),           # pv_mask
      pl.BlockSpec((M, HM), c2),           # rep_k
      pl.BlockSpec((HM, M), c2),           # rep_v
      pl.BlockSpec((M, HM), c2),           # score_bias
      pl.BlockSpec((Bsz, M), c2),          # sel_last
      pl.BlockSpec((8, E, E), p3),         # attn_w   (per layer)
      pl.BlockSpec((8, 1, E), p3),         # attn_b
      pl.BlockSpec((1, E, FF), p3),        # w1
      pl.BlockSpec((1, 1, FF), p3),        # b1
      pl.BlockSpec((1, FF, E), p3),        # w2
      pl.BlockSpec((1, 1, E), p3),         # b2
      pl.BlockSpec((3, 1, E), p3),         # ln_w
      pl.BlockSpec((3, 1, E), p3),         # ln_b
      pl.BlockSpec((E, Nout), c2),         # fc_w
      pl.BlockSpec((1, Nout), c2),         # fc_b
  ]

  kernel = functools.partial(_quantity_tf_kernel, nhead=nhead, eps=1e-5)

  # TODO(synk): on v7x (2 TensorCores) the batch axis could additionally be gridded with
  # dimension_semantics=("parallel", "arbitrary") for ~2x; kept single-core here because
  # v5e/v6e have one TC and would only pay extra grid-step overhead.
  return pl.pallas_call(
      kernel,
      out_shape=jax.ShapeDtypeStruct((Bsz, Nout), jnp.float32),
      grid=(L,),
      in_specs=in_specs,
      out_specs=pl.BlockSpec((Bsz, Nout), c2),
      scratch_shapes=[pltpu.VMEM((M, E), jnp.float32)],
      compiler_params=pltpu.CompilerParams(
          dimension_semantics=("arbitrary",),   # layers are sequential (carried state)
          vmem_limit_bytes=32 * 1024 * 1024,
      ),
  )(*inputs)


# ----------------------------------------------------------------------------
# Deterministic parameter init (packed / stacked layout consumed by the kernel)
# ----------------------------------------------------------------------------

def init_params(key, embed_size, num_ingredients, num_layers, dim_ff=2048):
  E, L, FF = embed_size, num_layers, dim_ff
  s = 0.05
  ks = jax.random.split(key, 8)
  # Attention weights per layer, order [sa_q, sa_k, sa_v, sa_o, ca_q, ca_k, ca_v, ca_o],
  # stored (in, out).  For a torch checkpoint, in_proj_weight rows [0:E]/[E:2E]/[2E:3E]
  # (transposed) map to indices 0/1/2 (self-attn) and 4/5/6 (cross-attn).
  attn_w = (jax.random.normal(ks[0], (L * 8, E, E), jnp.float32) * s).astype(GEMM_DTYPE)
  attn_b = jax.random.normal(ks[1], (L * 8, 1, E), jnp.float32) * s
  w1 = (jax.random.normal(ks[2], (L, E, FF), jnp.float32) * s).astype(GEMM_DTYPE)
  b1 = (jax.random.normal(ks[3], (L, 1, FF), jnp.float32) * s).astype(GEMM_DTYPE)
  w2 = (jax.random.normal(ks[4], (L, FF, E), jnp.float32) * s).astype(GEMM_DTYPE)
  b2 = jax.random.normal(ks[5], (L, 1, E), jnp.float32) * s
  ln_w = jnp.ones((L * 3, 1, E), jnp.float32)   # per layer: [norm1, norm2, norm3]
  ln_b = jnp.zeros((L * 3, 1, E), jnp.float32)
  fc_w = jax.random.normal(ks[6], (E, num_ingredients - 1), jnp.float32) * s
  fc_b = jax.random.normal(ks[7], (1, num_ingredients - 1), jnp.float32) * s
  return dict(attn_w=attn_w, attn_b=attn_b, w1=w1, b1=b1, w2=w2, b2=b2,
              ln_w=ln_w, ln_b=ln_b, fc_w=fc_w, fc_b=fc_b)


# ----------------------------------------------------------------------------
# Main
# ----------------------------------------------------------------------------

if __name__ == "__main__":
  embed_size = 32
  num_ingredients = 10
  num_layers = 3
  nhead = 8
  batch = 2
  seq = 8

  key = jax.random.PRNGKey(0)
  pkey, xkey = jax.random.split(key)
  params = init_params(pkey, embed_size, num_ingredients, num_layers)

  # img_features is (batch, embed_size, seq): permute(0, 2, 1) implies dim 1 = embed.
  img_features = jax.random.normal(xkey, (batch, embed_size, seq), jnp.float32)

  fwd = jax.jit(functools.partial(quantity_tf_forward, nhead=nhead))
  out = jax.block_until_ready(fwd(img_features, params))

  assert out.shape == (batch, num_ingredients - 1), out.shape
  assert bool(jnp.all(jnp.isfinite(out)))
  print("KERNEL_OK")
</pallas_src>

<mosaic_0001>
module attributes {stable_mosaic.version = 11 : i64} {
  func.func @_quantity_tf_kernel(%arg0: i32, %arg1: memref<16x32xf32, #tpu.memory_space<vmem>>, %arg2: memref<32x128xbf16, #tpu.memory_space<vmem>>, %arg3: memref<128x32xbf16, #tpu.memory_space<vmem>>, %arg4: memref<16x128xbf16, #tpu.memory_space<vmem>>, %arg5: memref<128x16xbf16, #tpu.memory_space<vmem>>, %arg6: memref<16x128xf32, #tpu.memory_space<vmem>>, %arg7: memref<2x16xf32, #tpu.memory_space<vmem>>, %arg8: memref<8x32x32xbf16, #tpu.memory_space<vmem>>, %arg9: memref<8x1x32xf32, #tpu.memory_space<vmem>>, %arg10: memref<1x32x2048xbf16, #tpu.memory_space<vmem>>, %arg11: memref<1x1x2048xbf16, #tpu.memory_space<vmem>>, %arg12: memref<1x2048x32xbf16, #tpu.memory_space<vmem>>, %arg13: memref<1x1x32xf32, #tpu.memory_space<vmem>>, %arg14: memref<3x1x32xf32, #tpu.memory_space<vmem>>, %arg15: memref<3x1x32xf32, #tpu.memory_space<vmem>>, %arg16: memref<32x9xf32, #tpu.memory_space<vmem>>, %arg17: memref<1x9xf32, #tpu.memory_space<vmem>>, %arg18: memref<2x9xf32, #tpu.memory_space<vmem>>, %arg19: memref<16x32xf32, #tpu.memory_space<vmem>>) attributes {dimension_semantics = [#tpu.dimension_semantics<arbitrary>], iteration_bounds = array<i64: 3>, scalar_prefetch = 0 : i64, scratch_operands = 1 : i64, tpu.core_type = #tpu.core_type<tc>, window_params = [{pipeline_mode = #tpu.pipeline_mode<synchronous>, transform_indices = @transform_0, window_bounds = array<i64: 16, 32>}, {pipeline_mode = #tpu.pipeline_mode<synchronous>, transform_indices = @transform_1, window_bounds = array<i64: 32, 128>}, {pipeline_mode = #tpu.pipeline_mode<synchronous>, transform_indices = @transform_2, window_bounds = array<i64: 128, 32>}, {pipeline_mode = #tpu.pipeline_mode<synchronous>, transform_indices = @transform_3, window_bounds = array<i64: 16, 128>}, {pipeline_mode = #tpu.pipeline_mode<synchronous>, transform_indices = @transform_4, window_bounds = array<i64: 128, 16>}, {pipeline_mode = #tpu.pipeline_mode<synchronous>, transform_indices = @transform_5, window_bounds = array<i64: 16, 128>}, {pipeline_mode = #tpu.pipeline_mode<synchronous>, transform_indices = @transform_6, window_bounds = array<i64: 2, 16>}, {transform_indices = @transform_7, window_bounds = array<i64: 8, 32, 32>}, {transform_indices = @transform_8, window_bounds = array<i64: 8, 1, 32>}, {transform_indices = @transform_9, window_bounds = array<i64: 1, 32, 2048>}, {transform_indices = @transform_10, window_bounds = array<i64: 1, 1, 2048>}, {transform_indices = @transform_11, window_bounds = array<i64: 1, 2048, 32>}, {transform_indices = @transform_12, window_bounds = array<i64: 1, 1, 32>}, {transform_indices = @transform_13, window_bounds = array<i64: 3, 1, 32>}, {transform_indices = @transform_14, window_bounds = array<i64: 3, 1, 32>}, {pipeline_mode = #tpu.pipeline_mode<synchronous>, transform_indices = @transform_15, window_bounds = array<i64: 32, 9>}, {pipeline_mode = #tpu.pipeline_mode<synchronous>, transform_indices = @transform_16, window_bounds = array<i64: 1, 9>}, {pipeline_mode = #tpu.pipeline_mode<synchronous>, transform_indices = @transform_17, window_bounds = array<i64: 2, 9>}]} {
    %c0_i32 = arith.constant 0 : i32
    %0 = arith.cmpi eq, %arg0, %c0_i32 : i32
    %1 = arith.extui %0 : i1 to i32
    %c0_i32_0 = arith.constant 0 : i32
    %2 = arith.cmpi ne, %1, %c0_i32_0 : i32
    scf.if %2 {
      %c0_127 = arith.constant 0 : index
      %c0_128 = arith.constant 0 : index
      %218 = vector.load %arg1[%c0_127, %c0_128] : memref<16x32xf32, #tpu.memory_space<vmem>>, vector<16x32xf32>
      %c0_129 = arith.constant 0 : index
      %c0_130 = arith.constant 0 : index
      %219 = vector.load %arg19[%c0_129, %c0_130] : memref<16x32xf32, #tpu.memory_space<vmem>>, vector<16x32xf32>
      tpu.vector_store %arg19[%c0_129, %c0_130], %218 {strides = array<i32>} : memref<16x32xf32, #tpu.memory_space<vmem>>, vector<16x32xf32>,
    } else {
    }
    %c0 = arith.constant 0 : index
    %c0_1 = arith.constant 0 : index
    %3 = vector.load %arg2[%c0, %c0_1] : memref<32x128xbf16, #tpu.memory_space<vmem>>, vector<32x128xbf16>
    %c0_2 = arith.constant 0 : index
    %c0_3 = arith.constant 0 : index
    %4 = vector.load %arg3[%c0_2, %c0_3] : memref<128x32xbf16, #tpu.memory_space<vmem>>, vector<128x32xbf16>
    %c0_4 = arith.constant 0 : index
    %c0_5 = arith.constant 0 : index
    %5 = vector.load %arg4[%c0_4, %c0_5] : memref<16x128xbf16, #tpu.memory_space<vmem>>, vector<16x128xbf16>
    %c0_6 = arith.constant 0 : index
    %c0_7 = arith.constant 0 : index
    %6 = vector.load %arg5[%c0_6, %c0_7] : memref<128x16xbf16, #tpu.memory_space<vmem>>, vector<128x16xbf16>
    %c0_8 = arith.constant 0 : index
    %c0_9 = arith.constant 0 : index
    %7 = vector.load %arg6[%c0_8, %c0_9] : memref<16x128xf32, #tpu.memory_space<vmem>>, vector<16x128xf32>
    %c0_10 = arith.constant 0 : index
    %c0_11 = arith.constant 0 : index
    %8 = vector.load %arg19[%c0_10, %c0_11] : memref<16x32xf32, #tpu.memory_space<vmem>>, vector<16x32xf32>
    %9 = arith.truncf %8 : vector<16x32xf32> to vector<16x32xbf16>
    %10 = arith.truncf %8 : vector<16x32xf32> to vector<16x32xbf16>
    %c0_12 = arith.constant 0 : index
    %c0_13 = arith.constant 0 : index
    %c0_14 = arith.constant 0 : index
    %11 = vector.load %arg8[%c0_12, %c0_13, %c0_14] : memref<8x32x32xbf16, #tpu.memory_space<vmem>>, vector<1x32x32xbf16>
    %12 = vector.shape_cast %11 : vector<1x32x32xbf16> to vector<32x32xbf16>
    %cst = arith.constant dense<0.000000e+00> : vector<16x32xf32>
    %13 = tpu.matmul %9, %12, %cst {dimension_numbers = #tpu.dot_dimension_numbers<[1], [0], [0], [1], [0, 0, 1, 1], [], []>} : vector<16x32xbf16>, vector<32x32xbf16>, vector<16x32xf32> -> vector<16x32xf32>
    %c0_15 = arith.constant 0 : index
    %c0_16 = arith.constant 0 : index
    %c0_17 = arith.constant 0 : index
    %14 = vector.load %arg9[%c0_15, %c0_16, %c0_17] : memref<8x1x32xf32, #tpu.memory_space<vmem>>, vector<1x1x32xf32>
    %15 = vector.shape_cast %14 : vector<1x1x32xf32> to vector<1x32xf32>
    %16 = vector.broadcast %15 : vector<1x32xf32> to vector<16x32xf32>
    %17 = arith.addf %13, %16 : vector<16x32xf32>
    %c1 = arith.constant 1 : index
    %c0_18 = arith.constant 0 : index
    %c0_19 = arith.constant 0 : index
    %18 = vector.load %arg8[%c1, %c0_18, %c0_19] : memref<8x32x32xbf16, #tpu.memory_space<vmem>>, vector<1x32x32xbf16>
    %19 = vector.shape_cast %18 : vector<1x32x32xbf16> to vector<32x32xbf16>
    %cst_20 = arith.constant dense<0.000000e+00> : vector<16x32xf32>
    %20 = tpu.matmul %10, %19, %cst_20 {dimension_numbers = #tpu.dot_dimension_numbers<[1], [0], [0], [1], [0, 0, 1, 1], [], []>} : vector<16x32xbf16>, vector<32x32xbf16>, vector<16x32xf32> -> vector<16x32xf32>
    %c1_21 = arith.constant 1 : index
    %c0_22 = arith.constant 0 : index
    %c0_23 = arith.constant 0 : index
    %21 = vector.load %arg9[%c1_21, %c0_22, %c0_23] : memref<8x1x32xf32, #tpu.memory_space<vmem>>, vector<1x1x32xf32>
    %22 = vector.shape_cast %21 : vector<1x1x32xf32> to vector<1x32xf32>
    %23 = vector.broadcast %22 : vector<1x32xf32> to vector<16x32xf32>
    %24 = arith.addf %20, %23 : vector<16x32xf32>
    %c2 = arith.constant 2 : index
    %c0_24 = arith.constant 0 : index
    %c0_25 = arith.constant 0 : index
    %25 = vector.load %arg8[%c2, %c0_24, %c0_25] : memref<8x32x32xbf16, #tpu.memory_space<vmem>>, vector<1x32x32xbf16>
    %26 = vector.shape_cast %25 : vector<1x32x32xbf16> to vector<32x32xbf16>
    %cst_26 = arith.constant dense<0.000000e+00> : vector<16x32xf32>
    %27 = tpu.matmul %10, %26, %cst_26 {dimension_numbers = #tpu.dot_dimension_numbers<[1], [0], [0], [1], [0, 0, 1, 1], [], []>} : vector<16x32xbf16>, vector<32x32xbf16>, vector<16x32xf32> -> vector<16x32xf32>
    %c2_27 = arith.constant 2 : index
    %c0_28 = arith.constant 0 : index
    %c0_29 = arith.constant 0 : index
    %28 = vector.load %arg9[%c2_27, %c0_28, %c0_29] : memref<8x1x32xf32, #tpu.memory_space<vmem>>, vector<1x1x32xf32>
    %29 = vector.shape_cast %28 : vector<1x1x32xf32> to vector<1x32xf32>
    %30 = vector.broadcast %29 : vector<1x32xf32> to vector<16x32xf32>
    %31 = arith.addf %27, %30 : vector<16x32xf32>
    %32 = tpu.transpose %24, [1, 0] : vector<16x32xf32> -> vector<32x16xf32>
    %33 = arith.truncf %32 : vector<32x16xf32> to vector<32x16xbf16>
    %cst_30 = arith.constant dense<0.000000e+00> : vector<32x128xf32>
    %34 = tpu.matmul %33, %5, %cst_30 {dimension_numbers = #tpu.dot_dimension_numbers<[1], [0], [0], [1], [0, 0, 1, 1], [], []>} : vector<32x16xbf16>, vector<16x128xbf16>, vector<32x128xf32> -> vector<32x128xf32>
    %35 = arith.truncf %34 : vector<32x128xf32> to vector<32x128xbf16>
    %36 = arith.mulf %35, %3 : vector<32x128xbf16>
    %37 = arith.truncf %31 : vector<16x32xf32> to vector<16x32xbf16>
    %cst_31 = arith.constant dense<0.000000e+00> : vector<128x32xf32>
    %38 = tpu.matmul %6, %37, %cst_31 {dimension_numbers = #tpu.dot_dimension_numbers<[1], [0], [0], [1], [0, 0, 1, 1], [], []>} : vector<128x16xbf16>, vector<16x32xbf16>, vector<128x32xf32> -> vector<128x32xf32>
    %39 = arith.truncf %38 : vector<128x32xf32> to vector<128x32xbf16>
    %40 = arith.mulf %39, %4 : vector<128x32xbf16>
    %cst_32 = arith.constant 5.000000e-01 : f32
    %41 = vector.broadcast %cst_32 : f32 to vector<16x32xf32>
    %42 = arith.mulf %17, %41 : vector<16x32xf32>
    %43 = arith.truncf %42 : vector<16x32xf32> to vector<16x32xbf16>
    %cst_33 = arith.constant dense<0.000000e+00> : vector<16x128xf32>
    %44 = tpu.matmul %43, %36, %cst_33 {dimension_numbers = #tpu.dot_dimension_numbers<[1], [0], [0], [1], [0, 0, 1, 1], [], []>} : vector<16x32xbf16>, vector<32x128xbf16>, vector<16x128xf32> -> vector<16x128xf32>
    %45 = arith.addf %44, %7 : vector<16x128xf32>
    %cst_34 = arith.constant dense<0xFF800000> : vector<16xf32>
    %46 = vector.multi_reduction <maximumf>, %45, %cst_34 [1] : vector<16x128xf32> to vector<16xf32>
    %47 = vector.shape_cast %46 : vector<16xf32> to vector<16x1xf32>
    %48 = vector.broadcast %47 : vector<16x1xf32> to vector<16x128xf32>
    %49 = arith.subf %45, %48 : vector<16x128xf32>
    %50 = math.exp %49 : vector<16x128xf32>
    %51 = arith.truncf %50 : vector<16x128xf32> to vector<16x128xbf16>
    %cst_35 = arith.constant dense<0.000000e+00> : vector<16x32xf32>
    %52 = tpu.matmul %51, %40, %cst_35 {dimension_numbers = #tpu.dot_dimension_numbers<[1], [0], [0], [1], [0, 0, 1, 1], [], []>} : vector<16x128xbf16>, vector<128x32xbf16>, vector<16x32xf32> -> vector<16x32xf32>
    %cst_36 = arith.constant dense<0.000000e+00> : vector<16x32xf32>
    %53 = tpu.matmul %51, %4, %cst_36 {dimension_numbers = #tpu.dot_dimension_numbers<[1], [0], [0], [1], [0, 0, 1, 1], [], []>} : vector<16x128xbf16>, vector<128x32xbf16>, vector<16x32xf32> -> vector<16x32xf32>
    %cst_37 = arith.constant 1.000000e-30 : f32
    %54 = vector.broadcast %cst_37 : f32 to vector<16x32xf32>
    %55 = arith.maximumf %53, %54 : vector<16x32xf32>
    %56 = arith.divf %52, %55 : vector<16x32xf32>
    %57 = arith.truncf %56 : vector<16x32xf32> to vector<16x32xbf16>
    %c3 = arith.constant 3 : index
    %c0_38 = arith.constant 0 : index
    %c0_39 = arith.constant 0 : index
    %58 = vector.load %arg8[%c3, %c0_38, %c0_39] : memref<8x32x32xbf16, #tpu.memory_space<vmem>>, vector<1x32x32xbf16>
    %59 = vector.shape_cast %58 : vector<1x32x32xbf16> to vector<32x32xbf16>
    %cst_40 = arith.constant dense<0.000000e+00> : vector<16x32xf32>
    %60 = tpu.matmul %57, %59, %cst_40 {dimension_numbers = #tpu.dot_dimension_numbers<[1], [0], [0], [1], [0, 0, 1, 1], [], []>} : vector<16x32xbf16>, vector<32x32xbf16>, vector<16x32xf32> -> vector<16x32xf32>
    %c3_41 = arith.constant 3 : index
    %c0_42 = arith.constant 0 : index
    %c0_43 = arith.constant 0 : index
    %61 = vector.load %arg9[%c3_41, %c0_42, %c0_43] : memref<8x1x32xf32, #tpu.memory_space<vmem>>, vector<1x1x32xf32>
    %62 = vector.shape_cast %61 : vector<1x1x32xf32> to vector<1x32xf32>
    %63 = vector.broadcast %62 : vector<1x32xf32> to vector<16x32xf32>
    %64 = arith.addf %60, %63 : vector<16x32xf32>
    %65 = arith.addf %8, %64 : vector<16x32xf32>
    %cst_44 = arith.constant dense<0.000000e+00> : vector<16xf32>
    %66 = vector.multi_reduction <add>, %65, %cst_44 [1] : vector<16x32xf32> to vector<16xf32>
    %67 = vector.shape_cast %66 : vector<16xf32> to vector<16x1xf32>
    %cst_45 = arith.constant 3.200000e+01 : f32
    %68 = vector.broadcast %cst_45 : f32 to vector<16x1xf32>
    %69 = arith.divf %67, %68 : vector<16x1xf32>
    %70 = vector.broadcast %69 : vector<16x1xf32> to vector<16x32xf32>
    %71 = arith.subf %65, %70 : vector<16x32xf32>
    %72 = arith.mulf %71, %71 : vector<16x32xf32>
    %cst_46 = arith.constant dense<0.000000e+00> : vector<16xf32>
    %73 = vector.multi_reduction <add>, %72, %cst_46 [1] : vector<16x32xf32> to vector<16xf32>
    %74 = vector.shape_cast %73 : vector<16xf32> to vector<16x1xf32>
    %cst_47 = arith.constant 3.200000e+01 : f32
    %75 = vector.broadcast %cst_47 : f32 to vector<16x1xf32>
    %76 = arith.divf %74, %75 : vector<16x1xf32>
    %cst_48 = arith.constant 9.99999974E-6 : f32
    %77 = vector.broadcast %cst_48 : f32 to vector<16x1xf32>
    %78 = arith.addf %76, %77 : vector<16x1xf32>
    %79 = math.rsqrt %78 : vector<16x1xf32>
    %80 = vector.broadcast %79 : vector<16x1xf32> to vector<16x32xf32>
    %81 = arith.mulf %71, %80 : vector<16x32xf32>
    %c0_49 = arith.constant 0 : index
    %c0_50 = arith.constant 0 : index
    %c0_51 = arith.constant 0 : index
    %82 = vector.load %arg14[%c0_49, %c0_50, %c0_51] : memref<3x1x32xf32, #tpu.memory_space<vmem>>, vector<1x1x32xf32>
    %83 = vector.shape_cast %82 : vector<1x1x32xf32> to vector<1x32xf32>
    %84 = vector.broadcast %83 : vector<1x32xf32> to vector<16x32xf32>
    %85 = arith.mulf %81, %84 : vector<16x32xf32>
    %c0_52 = arith.constant 0 : index
    %c0_53 = arith.constant 0 : index
    %c0_54 = arith.constant 0 : index
    %86 = vector.load %arg15[%c0_52, %c0_53, %c0_54] : memref<3x1x32xf32, #tpu.memory_space<vmem>>, vector<1x1x32xf32>
    %87 = vector.shape_cast %86 : vector<1x1x32xf32> to vector<1x32xf32>
    %88 = vector.broadcast %87 : vector<1x32xf32> to vector<16x32xf32>
    %89 = arith.addf %85, %88 : vector<16x32xf32>
    %90 = arith.truncf %89 : vector<16x32xf32> to vector<16x32xbf16>
    %91 = arith.truncf %8 : vector<16x32xf32> to vector<16x32xbf16>
    %c4 = arith.constant 4 : index
    %c0_55 = arith.constant 0 : index
    %c0_56 = arith.constant 0 : index
    %92 = vector.load %arg8[%c4, %c0_55, %c0_56] : memref<8x32x32xbf16, #tpu.memory_space<vmem>>, vector<1x32x32xbf16>
    %93 = vector.shape_cast %92 : vector<1x32x32xbf16> to vector<32x32xbf16>
    %cst_57 = arith.constant dense<0.000000e+00> : vector<16x32xf32>
    %94 = tpu.matmul %90, %93, %cst_57 {dimension_numbers = #tpu.dot_dimension_numbers<[1], [0], [0], [1], [0, 0, 1, 1], [], []>} : vector<16x32xbf16>, vector<32x32xbf16>, vector<16x32xf32> -> vector<16x32xf32>
    %c4_58 = arith.constant 4 : index
    %c0_59 = arith.constant 0 : index
    %c0_60 = arith.constant 0 : index
    %95 = vector.load %arg9[%c4_58, %c0_59, %c0_60] : memref<8x1x32xf32, #tpu.memory_space<vmem>>, vector<1x1x32xf32>
    %96 = vector.shape_cast %95 : vector<1x1x32xf32> to vector<1x32xf32>
    %97 = vector.broadcast %96 : vector<1x32xf32> to vector<16x32xf32>
    %98 = arith.addf %94, %97 : vector<16x32xf32>
    %c5 = arith.constant 5 : index
    %c0_61 = arith.constant 0 : index
    %c0_62 = arith.constant 0 : index
    %99 = vector.load %arg8[%c5, %c0_61, %c0_62] : memref<8x32x32xbf16, #tpu.memory_space<vmem>>, vector<1x32x32xbf16>
    %100 = vector.shape_cast %99 : vector<1x32x32xbf16> to vector<32x32xbf16>
    %cst_63 = arith.constant dense<0.000000e+00> : vector<16x32xf32>
    %101 = tpu.matmul %91, %100, %cst_63 {dimension_numbers = #tpu.dot_dimension_numbers<[1], [0], [0], [1], [0, 0, 1, 1], [], []>} : vector<16x32xbf16>, vector<32x32xbf16>, vector<16x32xf32> -> vector<16x32xf32>
    %c5_64 = arith.constant 5 : index
    %c0_65 = arith.constant 0 : index
    %c0_66 = arith.constant 0 : index
    %102 = vector.load %arg9[%c5_64, %c0_65, %c0_66] : memref<8x1x32xf32, #tpu.memory_space<vmem>>, vector<1x1x32xf32>
    %103 = vector.shape_cast %102 : vector<1x1x32xf32> to vector<1x32xf32>
    %104 = vector.broadcast %103 : vector<1x32xf32> to vector<16x32xf32>
    %105 = arith.addf %101, %104 : vector<16x32xf32>
    %c6 = arith.constant 6 : index
    %c0_67 = arith.constant 0 : index
    %c0_68 = arith.constant 0 : index
    %106 = vector.load %arg8[%c6, %c0_67, %c0_68] : memref<8x32x32xbf16, #tpu.memory_space<vmem>>, vector<1x32x32xbf16>
    %107 = vector.shape_cast %106 : vector<1x32x32xbf16> to vector<32x32xbf16>
    %cst_69 = arith.constant dense<0.000000e+00> : vector<16x32xf32>
    %108 = tpu.matmul %91, %107, %cst_69 {dimension_numbers = #tpu.dot_dimension_numbers<[1], [0], [0], [1], [0, 0, 1, 1], [], []>} : vector<16x32xbf16>, vector<32x32xbf16>, vector<16x32xf32> -> vector<16x32xf32>
    %c6_70 = arith.constant 6 : index
    %c0_71 = arith.constant 0 : index
    %c0_72 = arith.constant 0 : index
    %109 = vector.load %arg9[%c6_70, %c0_71, %c0_72] : memref<8x1x32xf32, #tpu.memory_space<vmem>>, vector<1x1x32xf32>
    %110 = vector.shape_cast %109 : vector<1x1x32xf32> to vector<1x32xf32>
    %111 = vector.broadcast %110 : vector<1x32xf32> to vector<16x32xf32>
    %112 = arith.addf %108, %111 : vector<16x32xf32>
    %113 = tpu.transpose %105, [1, 0] : vector<16x32xf32> -> vector<32x16xf32>
    %114 = arith.truncf %113 : vector<32x16xf32> to vector<32x16xbf16>
    %cst_73 = arith.constant dense<0.000000e+00> : vector<32x128xf32>
    %115 = tpu.matmul %114, %5, %cst_73 {dimension_numbers = #tpu.dot_dimension_numbers<[1], [0], [0], [1], [0, 0, 1, 1], [], []>} : vector<32x16xbf16>, vector<16x128xbf16>, vector<32x128xf32> -> vector<32x128xf32>
    %116 = arith.truncf %115 : vector<32x128xf32> to vector<32x128xbf16>
    %117 = arith.mulf %116, %3 : vector<32x128xbf16>
    %118 = arith.truncf %112 : vector<16x32xf32> to vector<16x32xbf16>
    %cst_74 = arith.constant dense<0.000000e+00> : vector<128x32xf32>
    %119 = tpu.matmul %6, %118, %cst_74 {dimension_numbers = #tpu.dot_dimension_numbers<[1], [0], [0], [1], [0, 0, 1, 1], [], []>} : vector<128x16xbf16>, vector<16x32xbf16>, vector<128x32xf32> -> vector<128x32xf32>
    %120 = arith.truncf %119 : vector<128x32xf32> to vector<128x32xbf16>
    %121 = arith.mulf %120, %4 : vector<128x32xbf16>
    %cst_75 = arith.constant 5.000000e-01 : f32
    %122 = vector.broadcast %cst_75 : f32 to vector<16x32xf32>
    %123 = arith.mulf %98, %122 : vector<16x32xf32>
    %124 = arith.truncf %123 : vector<16x32xf32> to vector<16x32xbf16>
    %cst_76 = arith.constant dense<0.000000e+00> : vector<16x128xf32>
    %125 = tpu.matmul %124, %117, %cst_76 {dimension_numbers = #tpu.dot_dimension_numbers<[1], [0], [0], [1], [0, 0, 1, 1], [], []>} : vector<16x32xbf16>, vector<32x128xbf16>, vector<16x128xf32> -> vector<16x128xf32>
    %126 = arith.addf %125, %7 : vector<16x128xf32>
    %cst_77 = arith.constant dense<0xFF800000> : vector<16xf32>
    %127 = vector.multi_reduction <maximumf>, %126, %cst_77 [1] : vector<16x128xf32> to vector<16xf32>
    %128 = vector.shape_cast %127 : vector<16xf32> to vector<16x1xf32>
    %129 = vector.broadcast %128 : vector<16x1xf32> to vector<16x128xf32>
    %130 = arith.subf %126, %129 : vector<16x128xf32>
    %131 = math.exp %130 : vector<16x128xf32>
    %132 = arith.truncf %131 : vector<16x128xf32> to vector<16x128xbf16>
    %cst_78 = arith.constant dense<0.000000e+00> : vector<16x32xf32>
    %133 = tpu.matmul %132, %121, %cst_78 {dimension_numbers = #tpu.dot_dimension_numbers<[1], [0], [0], [1], [0, 0, 1, 1], [], []>} : vector<16x128xbf16>, vector<128x32xbf16>, vector<16x32xf32> -> vector<16x32xf32>
    %cst_79 = arith.constant dense<0.000000e+00> : vector<16x32xf32>
    %134 = tpu.matmul %132, %4, %cst_79 {dimension_numbers = #tpu.dot_dimension_numbers<[1], [0], [0], [1], [0, 0, 1, 1], [], []>} : vector<16x128xbf16>, vector<128x32xbf16>, vector<16x32xf32> -> vector<16x32xf32>
    %cst_80 = arith.constant 1.000000e-30 : f32
    %135 = vector.broadcast %cst_80 : f32 to vector<16x32xf32>
    %136 = arith.maximumf %134, %135 : vector<16x32xf32>
    %137 = arith.divf %133, %136 : vector<16x32xf32>
    %138 = arith.truncf %137 : vector<16x32xf32> to vector<16x32xbf16>
    %c7 = arith.constant 7 : index
    %c0_81 = arith.constant 0 : index
    %c0_82 = arith.constant 0 : index
    %139 = vector.load %arg8[%c7, %c0_81, %c0_82] : memref<8x32x32xbf16, #tpu.memory_space<vmem>>, vector<1x32x32xbf16>
    %140 = vector.shape_cast %139 : vector<1x32x32xbf16> to vector<32x32xbf16>
    %cst_83 = arith.constant dense<0.000000e+00> : vector<16x32xf32>
    %141 = tpu.matmul %138, %140, %cst_83 {dimension_numbers = #tpu.dot_dimension_numbers<[1], [0], [0], [1], [0, 0, 1, 1], [], []>} : vector<16x32xbf16>, vector<32x32xbf16>, vector<16x32xf32> -> vector<16x32xf32>
    %c7_84 = arith.constant 7 : index
    %c0_85 = arith.constant 0 : index
    %c0_86 = arith.constant 0 : index
    %142 = vector.load %arg9[%c7_84, %c0_85, %c0_86] : memref<8x1x32xf32, #tpu.memory_space<vmem>>, vector<1x1x32xf32>
    %143 = vector.shape_cast %142 : vector<1x1x32xf32> to vector<1x32xf32>
    %144 = vector.broadcast %143 : vector<1x32xf32> to vector<16x32xf32>
    %145 = arith.addf %141, %144 : vector<16x32xf32>
    %146 = arith.addf %89, %145 : vector<16x32xf32>
    %cst_87 = arith.constant dense<0.000000e+00> : vector<16xf32>
    %147 = vector.multi_reduction <add>, %146, %cst_87 [1] : vector<16x32xf32> to vector<16xf32>
    %148 = vector.shape_cast %147 : vector<16xf32> to vector<16x1xf32>
    %cst_88 = arith.constant 3.200000e+01 : f32
    %149 = vector.broadcast %cst_88 : f32 to vector<16x1xf32>
    %150 = arith.divf %148, %149 : vector<16x1xf32>
    %151 = vector.broadcast %150 : vector<16x1xf32> to vector<16x32xf32>
    %152 = arith.subf %146, %151 : vector<16x32xf32>
    %153 = arith.mulf %152, %152 : vector<16x32xf32>
    %cst_89 = arith.constant dense<0.000000e+00> : vector<16xf32>
    %154 = vector.multi_reduction <add>, %153, %cst_89 [1] : vector<16x32xf32> to vector<16xf32>
    %155 = vector.shape_cast %154 : vector<16xf32> to vector<16x1xf32>
    %cst_90 = arith.constant 3.200000e+01 : f32
    %156 = vector.broadcast %cst_90 : f32 to vector<16x1xf32>
    %157 = arith.divf %155, %156 : vector<16x1xf32>
    %cst_91 = arith.constant 9.99999974E-6 : f32
    %158 = vector.broadcast %cst_91 : f32 to vector<16x1xf32>
    %159 = arith.addf %157, %158 : vector<16x1xf32>
    %160 = math.rsqrt %159 : vector<16x1xf32>
    %161 = vector.broadcast %160 : vector<16x1xf32> to vector<16x32xf32>
    %162 = arith.mulf %152, %161 : vector<16x32xf32>
    %c1_92 = arith.constant 1 : index
    %c0_93 = arith.constant 0 : index
    %c0_94 = arith.constant 0 : index
    %163 = vector.load %arg14[%c1_92, %c0_93, %c0_94] : memref<3x1x32xf32, #tpu.memory_space<vmem>>, vector<1x1x32xf32>
    %164 = vector.shape_cast %163 : vector<1x1x32xf32> to vector<1x32xf32>
    %165 = vector.broadcast %164 : vector<1x32xf32> to vector<16x32xf32>
    %166 = arith.mulf %162, %165 : vector<16x32xf32>
    %c1_95 = arith.constant 1 : index
    %c0_96 = arith.constant 0 : index
    %c0_97 = arith.constant 0 : index
    %167 = vector.load %arg15[%c1_95, %c0_96, %c0_97] : memref<3x1x32xf32, #tpu.memory_space<vmem>>, vector<1x1x32xf32>
    %168 = vector.shape_cast %167 : vector<1x1x32xf32> to vector<1x32xf32>
    %169 = vector.broadcast %168 : vector<1x32xf32> to vector<16x32xf32>
    %170 = arith.addf %166, %169 : vector<16x32xf32>
    %171 = arith.truncf %170 : vector<16x32xf32> to vector<16x32xbf16>
    %c0_98 = arith.constant 0 : index
    %c0_99 = arith.constant 0 : index
    %c0_100 = arith.constant 0 : index
    %172 = vector.load %arg10[%c0_98, %c0_99, %c0_100] : memref<1x32x2048xbf16, #tpu.memory_space<vmem>>, vector<1x32x2048xbf16>
    %173 = vector.shape_cast %172 : vector<1x32x2048xbf16> to vector<32x2048xbf16>
    %cst_101 = arith.constant dense<0.000000e+00> : vector<16x2048xf32>
    %174 = tpu.matmul %171, %173, %cst_101 {dimension_numbers = #tpu.dot_dimension_numbers<[1], [0], [0], [1], [0, 0, 1, 1], [], []>} : vector<16x32xbf16>, vector<32x2048xbf16>, vector<16x2048xf32> -> vector<16x2048xf32>
    %175 = arith.truncf %174 : vector<16x2048xf32> to vector<16x2048xbf16>
    %c0_102 = arith.constant 0 : index
    %c0_103 = arith.constant 0 : index
    %c0_104 = arith.constant 0 : index
    %176 = vector.load %arg11[%c0_102, %c0_103, %c0_104] : memref<1x1x2048xbf16, #tpu.memory_space<vmem>>, vector<1x1x2048xbf16>
    %177 = vector.shape_cast %176 : vector<1x1x2048xbf16> to vector<1x2048xbf16>
    %178 = vector.broadcast %177 : vector<1x2048xbf16> to vector<16x2048xbf16>
    %179 = arith.addf %175, %178 : vector<16x2048xbf16>
    %cst_105 = arith.constant 0.000000e+00 : bf16
    %180 = vector.broadcast %cst_105 : bf16 to vector<16x2048xbf16>
    %181 = arith.maximumf %179, %180 : vector<16x2048xbf16>
    %c0_106 = arith.constant 0 : index
    %c0_107 = arith.constant 0 : index
    %c0_108 = arith.constant 0 : index
    %182 = vector.load %arg12[%c0_106, %c0_107, %c0_108] : memref<1x2048x32xbf16, #tpu.memory_space<vmem>>, vector<1x2048x32xbf16>
    %183 = vector.shape_cast %182 : vector<1x2048x32xbf16> to vector<2048x32xbf16>
    %cst_109 = arith.constant dense<0.000000e+00> : vector<16x32xf32>
    %184 = tpu.matmul %181, %183, %cst_109 {dimension_numbers = #tpu.dot_dimension_numbers<[1], [0], [0], [1], [0, 0, 1, 1], [], []>} : vector<16x2048xbf16>, vector<2048x32xbf16>, vector<16x32xf32> -> vector<16x32xf32>
    %c0_110 = arith.constant 0 : index
    %c0_111 = arith.constant 0 : index
    %c0_112 = arith.constant 0 : index
    %185 = vector.load %arg13[%c0_110, %c0_111, %c0_112] : memref<1x1x32xf32, #tpu.memory_space<vmem>>, vector<1x1x32xf32>
    %186 = vector.shape_cast %185 : vector<1x1x32xf32> to vector<1x32xf32>
    %187 = vector.broadcast %186 : vector<1x32xf32> to vector<16x32xf32>
    %188 = arith.addf %184, %187 : vector<16x32xf32>
    %189 = arith.addf %170, %188 : vector<16x32xf32>
    %cst_113 = arith.constant dense<0.000000e+00> : vector<16xf32>
    %190 = vector.multi_reduction <add>, %189, %cst_113 [1] : vector<16x32xf32> to vector<16xf32>
    %191 = vector.shape_cast %190 : vector<16xf32> to vector<16x1xf32>
    %cst_114 = arith.constant 3.200000e+01 : f32
    %192 = vector.broadcast %cst_114 : f32 to vector<16x1xf32>
    %193 = arith.divf %191, %192 : vector<16x1xf32>
    %194 = vector.broadcast %193 : vector<16x1xf32> to vector<16x32xf32>
    %195 = arith.subf %189, %194 : vector<16x32xf32>
    %196 = arith.mulf %195, %195 : vector<16x32xf32>
    %cst_115 = arith.constant dense<0.000000e+00> : vector<16xf32>
    %197 = vector.multi_reduction <add>, %196, %cst_115 [1] : vector<16x32xf32> to vector<16xf32>
    %198 = vector.shape_cast %197 : vector<16xf32> to vector<16x1xf32>
    %cst_116 = arith.constant 3.200000e+01 : f32
    %199 = vector.broadcast %cst_116 : f32 to vector<16x1xf32>
    %200 = arith.divf %198, %199 : vector<16x1xf32>
    %cst_117 = arith.constant 9.99999974E-6 : f32
    %201 = vector.broadcast %cst_117 : f32 to vector<16x1xf32>
    %202 = arith.addf %200, %201 : vector<16x1xf32>
    %203 = math.rsqrt %202 : vector<16x1xf32>
    %204 = vector.broadcast %203 : vector<16x1xf32> to vector<16x32xf32>
    %205 = arith.mulf %195, %204 : vector<16x32xf32>
    %c2_118 = arith.constant 2 : index
    %c0_119 = arith.constant 0 : index
    %c0_120 = arith.constant 0 : index
    %206 = vector.load %arg14[%c2_118, %c0_119, %c0_120] : memref<3x1x32xf32, #tpu.memory_space<vmem>>, vector<1x1x32xf32>
    %207 = vector.shape_cast %206 : vector<1x1x32xf32> to vector<1x32xf32>
    %208 = vector.broadcast %207 : vector<1x32xf32> to vector<16x32xf32>
    %209 = arith.mulf %205, %208 : vector<16x32xf32>
    %c2_121 = arith.constant 2 : index
    %c0_122 = arith.constant 0 : index
    %c0_123 = arith.constant 0 : index
    %210 = vector.load %arg15[%c2_121, %c0_122, %c0_123] : memref<3x1x32xf32, #tpu.memory_space<vmem>>, vector<1x1x32xf32>
    %211 = vector.shape_cast %210 : vector<1x1x32xf32> to vector<1x32xf32>
    %212 = vector.broadcast %211 : vector<1x32xf32> to vector<16x32xf32>
    %213 = arith.addf %209, %212 : vector<16x32xf32>
    %c0_124 = arith.constant 0 : index
    %c0_125 = arith.constant 0 : index
    %214 = vector.load %arg19[%c0_124, %c0_125] : memref<16x32xf32, #tpu.memory_space<vmem>>, vector<16x32xf32>
    tpu.vector_store %arg19[%c0_124, %c0_125], %213 {strides = array<i32>} : memref<16x32xf32, #tpu.memory_space<vmem>>, vector<16x32xf32>,
    %c2_i32 = arith.constant 2 : i32
    %215 = arith.cmpi eq, %arg0, %c2_i32 : i32
    %216 = arith.extui %215 : i1 to i32
    %c0_i32_126 = arith.constant 0 : i32
    %217 = arith.cmpi ne, %216, %c0_i32_126 : i32
    scf.if %217 {
      %c0_127 = arith.constant 0 : index
      %c0_128 = arith.constant 0 : index
      %218 = vector.load %arg7[%c0_127, %c0_128] : memref<2x16xf32, #tpu.memory_space<vmem>>, vector<2x16xf32>
      %cst_129 = arith.constant dense<0.000000e+00> : vector<2x32xf32>
      %219 = tpu.matmul %218, %213, %cst_129 {dimension_numbers = #tpu.dot_dimension_numbers<[1], [0], [0], [1], [0, 0, 1, 1], [], []>} : vector<2x16xf32>, vector<16x32xf32>, vector<2x32xf32> -> vector<2x32xf32>
      %c0_130 = arith.constant 0 : index
      %c0_131 = arith.constant 0 : index
      %220 = vector.load %arg16[%c0_130, %c0_131] : memref<32x9xf32, #tpu.memory_space<vmem>>, vector<32x9xf32>
      %cst_132 = arith.constant dense<0.000000e+00> : vector<2x9xf32>
      %221 = tpu.matmul %219, %220, %cst_132 {dimension_numbers = #tpu.dot_dimension_numbers<[1], [0], [0], [1], [0, 0, 1, 1], [], []>} : vector<2x32xf32>, vector<32x9xf32>, vector<2x9xf32> -> vector<2x9xf32>
      %c0_133 = arith.constant 0 : index
      %c0_134 = arith.constant 0 : index
      %222 = vector.load %arg17[%c0_133, %c0_134] : memref<1x9xf32, #tpu.memory_space<vmem>>, vector<1x9xf32>
      %223 = vector.broadcast %222 : vector<1x9xf32> to vector<2x9xf32>
      %224 = arith.addf %221, %223 : vector<2x9xf32>
      %c0_135 = arith.constant 0 : index
      %c0_136 = arith.constant 0 : index
      %225 = vector.load %arg18[%c0_135, %c0_136] : memref<2x9xf32, #tpu.memory_space<vmem>>, vector<2x9xf32>
      tpu.vector_store %arg18[%c0_135, %c0_136], %224 {strides = array<i32>} : memref<2x9xf32, #tpu.memory_space<vmem>>, vector<2x9xf32>,
    } else {
    }
    return
  }
  func.func @transform_0(%arg0: i32) -> (i32, i32) {
    %c0_i32 = arith.constant 0 : i32
    %c0_i32_0 = arith.constant 0 : i32
    %c0_i32_1 = arith.constant 0 : i32
    return %c0_i32, %c0_i32_0 : i32, i32
  }
  func.func @transform_1(%arg0: i32) -> (i32, i32) {
    %c0_i32 = arith.constant 0 : i32
    %c0_i32_0 = arith.constant 0 : i32
    %c0_i32_1 = arith.constant 0 : i32
    return %c0_i32, %c0_i32_0 : i32, i32
  }
  func.func @transform_2(%arg0: i32) -> (i32, i32) {
    %c0_i32 = arith.constant 0 : i32
    %c0_i32_0 = arith.constant 0 : i32
    %c0_i32_1 = arith.constant 0 : i32
    return %c0_i32, %c0_i32_0 : i32, i32
  }
  func.func @transform_3(%arg0: i32) -> (i32, i32) {
    %c0_i32 = arith.constant 0 : i32
    %c0_i32_0 = arith.constant 0 : i32
    %c0_i32_1 = arith.constant 0 : i32
    return %c0_i32, %c0_i32_0 : i32, i32
  }
  func.func @transform_4(%arg0: i32) -> (i32, i32) {
    %c0_i32 = arith.constant 0 : i32
    %c0_i32_0 = arith.constant 0 : i32
    %c0_i32_1 = arith.constant 0 : i32
    return %c0_i32, %c0_i32_0 : i32, i32
  }
  func.func @transform_5(%arg0: i32) -> (i32, i32) {
    %c0_i32 = arith.constant 0 : i32
    %c0_i32_0 = arith.constant 0 : i32
    %c0_i32_1 = arith.constant 0 : i32
    return %c0_i32, %c0_i32_0 : i32, i32
  }
  func.func @transform_6(%arg0: i32) -> (i32, i32) {
    %c0_i32 = arith.constant 0 : i32
    %c0_i32_0 = arith.constant 0 : i32
    %c0_i32_1 = arith.constant 0 : i32
    return %c0_i32, %c0_i32_0 : i32, i32
  }
  func.func @transform_7(%arg0: i32) -> (i32, i32, i32) {
    %c0_i32 = arith.constant 0 : i32
    %c0_i32_0 = arith.constant 0 : i32
    %c0_i32_1 = arith.constant 0 : i32
    return %arg0, %c0_i32, %c0_i32_0 : i32, i32, i32
  }
  func.func @transform_8(%arg0: i32) -> (i32, i32, i32) {
    %c0_i32 = arith.constant 0 : i32
    %c0_i32_0 = arith.constant 0 : i32
    %c0_i32_1 = arith.constant 0 : i32
    return %arg0, %c0_i32, %c0_i32_0 : i32, i32, i32
  }
  func.func @transform_9(%arg0: i32) -> (i32, i32, i32) {
    %c0_i32 = arith.constant 0 : i32
    %c0_i32_0 = arith.constant 0 : i32
    %c0_i32_1 = arith.constant 0 : i32
    return %arg0, %c0_i32, %c0_i32_0 : i32, i32, i32
  }
  func.func @transform_10(%arg0: i32) -> (i32, i32, i32) {
    %c0_i32 = arith.constant 0 : i32
    %c0_i32_0 = arith.constant 0 : i32
    %c0_i32_1 = arith.constant 0 : i32
    return %arg0, %c0_i32, %c0_i32_0 : i32, i32, i32
  }
  func.func @transform_11(%arg0: i32) -> (i32, i32, i32) {
    %c0_i32 = arith.constant 0 : i32
    %c0_i32_0 = arith.constant 0 : i32
    %c0_i32_1 = arith.constant 0 : i32
    return %arg0, %c0_i32, %c0_i32_0 : i32, i32, i32
  }
  func.func @transform_12(%arg0: i32) -> (i32, i32, i32) {
    %c0_i32 = arith.constant 0 : i32
    %c0_i32_0 = arith.constant 0 : i32
    %c0_i32_1 = arith.constant 0 : i32
    return %arg0, %c0_i32, %c0_i32_0 : i32, i32, i32
  }
  func.func @transform_13(%arg0: i32) -> (i32, i32, i32) {
    %c0_i32 = arith.constant 0 : i32
    %c0_i32_0 = arith.constant 0 : i32
    %c0_i32_1 = arith.constant 0 : i32
    return %arg0, %c0_i32, %c0_i32_0 : i32, i32, i32
  }
  func.func @transform_14(%arg0: i32) -> (i32, i32, i32) {
    %c0_i32 = arith.constant 0 : i32
    %c0_i32_0 = arith.constant 0 : i32
    %c0_i32_1 = arith.constant 0 : i32
    return %arg0, %c0_i32, %c0_i32_0 : i32, i32, i32
  }
  func.func @transform_15(%arg0: i32) -> (i32, i32) {
    %c0_i32 = arith.constant 0 : i32
    %c0_i32_0 = arith.constant 0 : i32
    %c0_i32_1 = arith.constant 0 : i32
    return %c0_i32, %c0_i32_0 : i32, i32
  }
  func.func @transform_16(%arg0: i32) -> (i32, i32) {
    %c0_i32 = arith.constant 0 : i32
    %c0_i32_0 = arith.constant 0 : i32
    %c0_i32_1 = arith.constant 0 : i32
    return %c0_i32, %c0_i32_0 : i32, i32
  }
  func.func @transform_17(%arg0: i32) -> (i32, i32) {
    %c0_i32 = arith.constant 0 : i32
    %c0_i32_0 = arith.constant 0 : i32
    %c0_i32_1 = arith.constant 0 : i32
    return %c0_i32, %c0_i32_0 : i32, i32
  }
}

</mosaic_0001>

<llo_original>
// kernel: quantity_tf_forward.1
$region0: #{quantity_tf_forward.1}
  #allocation0 [shape = 'u32[]', space=smem, size = 0x4, offset = 0x4, fixed_abs, tag = 'smem constant byte address 0x4 - core index']
  #allocation1 [shape = 'u32[144,128]{1,0:T(1,128)}', space=vmem, size = 0x12000, scoped, tag = 'internal scratch']
  #allocation2 [shape = 'f32[16,32]{1,0:T(8,128)}', space=vmem, size = 0x2000, scoped, tag = 'scratch operand']
  %s0 = inlined_call_operand.vmem [shape: f32[16,32], index: 0, kind: input, shape index: {}]
  %s1 = inlined_call_operand.vmem [shape: bf16[32,128], index: 1, kind: input, shape index: {}]
  %s2 = inlined_call_operand.vmem [shape: bf16[128,32], index: 2, kind: input, shape index: {}]
  %s3 = inlined_call_operand.vmem [shape: bf16[16,128], index: 3, kind: input, shape index: {}]
  %s4 = inlined_call_operand.vmem [shape: bf16[128,16], index: 4, kind: input, shape index: {}]
  %s5 = inlined_call_operand.vmem [shape: f32[16,128], index: 5, kind: input, shape index: {}]
  %s6 = inlined_call_operand.vmem [shape: f32[2,16], index: 6, kind: input, shape index: {}]
  %s7 = inlined_call_operand.vmem [shape: bf16[24,32,32], index: 7, kind: input, shape index: {}]
  %s8 = inlined_call_operand.vmem [shape: f32[24,1,32], index: 8, kind: input, shape index: {}]
  %s9 = inlined_call_operand.vmem [shape: bf16[3,32,2048], index: 9, kind: input, shape index: {}]
  %s10 = inlined_call_operand.vmem [shape: bf16[3,1,2048], index: 10, kind: input, shape index: {}]
  %s11 = inlined_call_operand.vmem [shape: bf16[3,2048,32], index: 11, kind: input, shape index: {}]
  %s12 = inlined_call_operand.vmem [shape: f32[3,1,32], index: 12, kind: input, shape index: {}]
  %s13 = inlined_call_operand.vmem [shape: f32[9,1,32], index: 13, kind: input, shape index: {}]
  %s14 = inlined_call_operand.vmem [shape: f32[9,1,32], index: 14, kind: input, shape index: {}]
  %s15 = inlined_call_operand.vmem [shape: f32[32,9], index: 15, kind: input, shape index: {}]
  %s16 = inlined_call_operand.vmem [shape: f32[1,9], index: 16, kind: input, shape index: {}]
  %s17 = inlined_call_operand.hbm [shape: f32[2,9], index: 17, kind: output, shape index: {}]
  %s18 = sld [smem:[#allocation0]]
  $region109: #{quantity_tf_forward.1} parent=0
    _
  %s20 = ssub.s32 1, %s18
  %s21 = scalar_select 0, %s20, %s18
  $region1: #{quantity_tf_forward.1} parent=0
    #allocation3 [shape = 'u8[1024]{0}', space=vmem, size = 0x400, scoped, tag = 'output window, operand 0, single buffered']
    #allocation4 [shape = 's32[2]{0}', space=sflag, size = 0x8, scoped, tag = 'scoped memory for quantity_tf_forward.1']
    %22 = vsyncpa [#allocation4], 0
    loop: start=0, step=1, limit=5
    $region2: #{quantity_tf_forward.1} parent=1 // loop_pre_header
      _
    $region3: #{quantity_tf_forward.1} parent=1 // loop_header
      %s24 = sphi 0, %s28
      %p25 = scmp.ge.s32.totalorder %s24, 5
      %s32 = sphi 0, %s32
      %s34 = sphi 0, %s32
      %s35 = sphi 0, %s34
      %s49 = sphi 0, %s35
      %s53 = sphi 0, %s53
      %s55 = sphi 0, %s53
      %s56 = sphi 0, %s55
      %s70 = sphi 0, %s56
      %s74 = sphi 0, %s74
      %s76 = sphi 0, %s74
      %s77 = sphi 0, %s76
      %s91 = sphi 0, %s77
      %s95 = sphi 0, %s95
      %s97 = sphi 0, %s95
      %s98 = sphi 0, %s97
      %s112 = sphi 0, %s98
      %s116 = sphi 0, %s116
      %s118 = sphi 0, %s116
      %s119 = sphi 0, %s118
      %s133 = sphi 0, %s119
      %s137 = sphi 0, %s137
      %s139 = sphi 0, %s137
      %s140 = sphi 0, %s139
      %s154 = sphi 0, %s140
      %s158 = sphi 0, %s158
      %s160 = sphi 0, %s158
      %s161 = sphi 0, %s160
      %s175 = sphi 0, %s161
      %s181 = sphi 0, %s183
      %s184 = sphi 0, %s181
      %s185 = sphi 0, %s184
      %s201 = sphi 0, %s185
      %s207 = sphi 0, %s209
      %s210 = sphi 0, %s207
      %s211 = sphi 0, %s210
      %s227 = sphi 0, %s211
      %s233 = sphi 0, %s235
      %s236 = sphi 0, %s233
      %s237 = sphi 0, %s236
      %s253 = sphi 0, %s237
      %s259 = sphi 0, %s261
      %s262 = sphi 0, %s259
      %s263 = sphi 0, %s262
      %s279 = sphi 0, %s263
      %s285 = sphi 0, %s287
      %s288 = sphi 0, %s285
      %s289 = sphi 0, %s288
      %s305 = sphi 0, %s289
      %s311 = sphi 0, %s313
      %s314 = sphi 0, %s311
      %s315 = sphi 0, %s314
      %s331 = sphi 0, %s315
      %s337 = sphi 0, %s339
      %s340 = sphi 0, %s337
      %s341 = sphi 0, %s340
      %s357 = sphi 0, %s341
      %s363 = sphi 0, %s365
      %s366 = sphi 0, %s363
      %s367 = sphi 0, %s366
      %s383 = sphi 0, %s367
      %s387 = sphi 0, %s387
      %s389 = sphi 0, %s387
      %s390 = sphi 0, %s389
      %s404 = sphi 0, %s390
      %s408 = sphi 0, %s408
      %s410 = sphi 0, %s408
      %s411 = sphi 0, %s410
      %s425 = sphi 0, %s411
      %s429 = sphi 0, %s429
      %s431 = sphi 0, %s429
      %s432 = sphi 0, %s431
      %s446 = sphi 0, %s432
    $region4: #{quantity_tf_forward.1} parent=1 // loop_header_branch
      %27 = sbr.rel (%p25) target = $region8
    $region5: #{quantity_tf_forward.1} parent=1 // loop_body
      %s29 = ssub.s32 %s24, 1
      %s30 = ssub.s32 %s24, 2
      %s31 = sadd.s32 %s24, 1
      %s33 = sadd.s32 %s32, 1
      %p36 = scmp.eq.s32.totalorder %s24, 2
      %p37 = scmp.ne.s32.totalorder %s32, %s34
      %p38 = scmp.eq.s32.totalorder %s24, 0
      %p39 = por %p37, %p38
      %p40 = scmp.ne.s32.totalorder %s32, %s34
      %p41 = scmp.eq.s32.totalorder %s29, 2
      %p42 = por %p40, %p41
      %p43 = scmp.ne.s32.totalorder %s34, %s35
      %p44 = scmp.eq.s32.totalorder %s29, 0
      %p45 = por %p43, %p44
      %p46 = scmp.ne.s32.totalorder %s34, %s35
      %p47 = scmp.eq.s32.totalorder %s30, 2
      %p48 = por %p46, %p47
      %p50 = scmp.ne.s32.totalorder %s35, %s49
      %p51 = scmp.eq.s32.totalorder %s30, 0
      %p52 = por %p50, %p51
      %s54 = sadd.s32 %s53, 1
      %p57 = scmp.eq.s32.totalorder %s24, 2
      %p58 = scmp.ne.s32.totalorder %s53, %s55
      %p59 = scmp.eq.s32.totalorder %s24, 0
      %p60 = por %p58, %p59
      %p61 = scmp.ne.s32.totalorder %s53, %s55
      %p62 = scmp.eq.s32.totalorder %s29, 2
      %p63 = por %p61, %p62
      %p64 = scmp.ne.s32.totalorder %s55, %s56
      %p65 = scmp.eq.s32.totalorder %s29, 0
      %p66 = por %p64, %p65
      %p67 = scmp.ne.s32.totalorder %s55, %s56
      %p68 = scmp.eq.s32.totalorder %s30, 2
      %p69 = por %p67, %p68
      %p71 = scmp.ne.s32.totalorder %s56, %s70
      %p72 = scmp.eq.s32.totalorder %s30, 0
      %p73 = por %p71, %p72
      %s75 = sadd.s32 %s74, 1
      %p78 = scmp.eq.s32.totalorder %s24, 2
      %p79 = scmp.ne.s32.totalorder %s74, %s76
      %p80 = scmp.eq.s32.totalorder %s24, 0
      %p81 = por %p79, %p80
      %p82 = scmp.ne.s32.totalorder %s74, %s76
      %p83 = scmp.eq.s32.totalorder %s29, 2
      %p84 = por %p82, %p83
      %p85 = scmp.ne.s32.totalorder %s76, %s77
      %p86 = scmp.eq.s32.totalorder %s29, 0
      %p87 = por %p85, %p86
      %p88 = scmp.ne.s32.totalorder %s76, %s77
      %p89 = scmp.eq.s32.totalorder %s30, 2
      %p90 = por %p88, %p89
      %p92 = scmp.ne.s32.totalorder %s77, %s91
      %p93 = scmp.eq.s32.totalorder %s30, 0
      %p94 = por %p92, %p93
      %s96 = sadd.s32 %s95, 1
      %p99 = scmp.eq.s32.totalorder %s24, 2
      %p100 = scmp.ne.s32.totalorder %s95, %s97
      %p101 = scmp.eq.s32.totalorder %s24, 0
      %p102 = por %p100, %p101
      %p103 = scmp.ne.s32.totalorder %s95, %s97
      %p104 = scmp.eq.s32.totalorder %s29, 2
      %p105 = por %p103, %p104
      %p106 = scmp.ne.s32.totalorder %s97, %s98
      %p107 = scmp.eq.s32.totalorder %s29, 0
      %p108 = por %p106, %p107
      %p109 = scmp.ne.s32.totalorder %s97, %s98
      %p110 = scmp.eq.s32.totalorder %s30, 2
      %p111 = por %p109, %p110
      %p113 = scmp.ne.s32.totalorder %s98, %s112
      %p114 = scmp.eq.s32.totalorder %s30, 0
      %p115 = por %p113, %p114
      %s117 = sadd.s32 %s116, 1
      %p120 = scmp.eq.s32.totalorder %s24, 2
      %p121 = scmp.ne.s32.totalorder %s116, %s118
      %p122 = scmp.eq.s32.totalorder %s24, 0
      %p123 = por %p121, %p122
      %p124 = scmp.ne.s32.totalorder %s116, %s118
      %p125 = scmp.eq.s32.totalorder %s29, 2
      %p126 = por %p124, %p125
      %p127 = scmp.ne.s32.totalorder %s118, %s119
      %p128 = scmp.eq.s32.totalorder %s29, 0
      %p129 = por %p127, %p128
      %p130 = scmp.ne.s32.totalorder %s118, %s119
      %p131 = scmp.eq.s32.totalorder %s30, 2
      %p132 = por %p130, %p131
      %p134 = scmp.ne.s32.totalorder %s119, %s133
      %p135 = scmp.eq.s32.totalorder %s30, 0
      %p136 = por %p134, %p135
      %s138 = sadd.s32 %s137, 1
      %p141 = scmp.eq.s32.totalorder %s24, 2
      %p142 = scmp.ne.s32.totalorder %s137, %s139
      %p143 = scmp.eq.s32.totalorder %s24, 0
      %p144 = por %p142, %p143
      %p145 = scmp.ne.s32.totalorder %s137, %s139
      %p146 = scmp.eq.s32.totalorder %s29, 2
      %p147 = por %p145, %p146
      %p148 = scmp.ne.s32.totalorder %s139, %s140
      %p149 = scmp.eq.s32.totalorder %s29, 0
      %p150 = por %p148, %p149
      %p151 = scmp.ne.s32.totalorder %s139, %s140
      %p152 = scmp.eq.s32.totalorder %s30, 2
      %p153 = por %p151, %p152
      %p155 = scmp.ne.s32.totalorder %s140, %s154
      %p156 = scmp.eq.s32.totalorder %s30, 0
      %p157 = por %p155, %p156
      %s159 = sadd.s32 %s158, 1
      %p162 = scmp.eq.s32.totalorder %s24, 2
      %p163 = scmp.ne.s32.totalorder %s158, %s160
      %p164 = scmp.eq.s32.totalorder %s24, 0
      %p165 = por %p163, %p164
      %p166 = scmp.ne.s32.totalorder %s158, %s160
      %p167 = scmp.eq.s32.totalorder %s29, 2
      %p168 = por %p166, %p167
      %p169 = scmp.ne.s32.totalorder %s160, %s161
      %p170 = scmp.eq.s32.totalorder %s29, 0
      %p171 = por %p169, %p170
      %p172 = scmp.ne.s32.totalorder %s160, %s161
      %p173 = scmp.eq.s32.totalorder %s30, 2
      %p174 = por %p172, %p173
      %p176 = scmp.ne.s32.totalorder %s161, %s175
      %p177 = scmp.eq.s32.totalorder %s30, 0
      %p178 = por %p176, %p177
      %s179 = ssub.s32 %s24, %s31
      %p180 = scmp.eq.s32.totalorder %s179, 0
      %s182 = sadd.s32 %s181, 1
      %s183 = scalar_select %p180, %s181, %s182
      %p186 = pneg %p180
      %p187 = scmp.eq.s32.totalorder %s24, 2
      %p188 = por %p186, %p187
      %p189 = scmp.ne.s32.totalorder %s181, %s184
      %p190 = scmp.eq.s32.totalorder %s24, 0
      %p191 = por %p189, %p190
      %p192 = scmp.ne.s32.totalorder %s181, %s184
      %p193 = scmp.eq.s32.totalorder %s29, 2
      %p194 = por %p192, %p193
      %p195 = scmp.ne.s32.totalorder %s184, %s185
      %p196 = scmp.eq.s32.totalorder %s29, 0
      %p197 = por %p195, %p196
      %p198 = scmp.ne.s32.totalorder %s184, %s185
      %p199 = scmp.eq.s32.totalorder %s30, 2
      %p200 = por %p198, %p199
      %p202 = scmp.ne.s32.totalorder %s185, %s201
      %p203 = scmp.eq.s32.totalorder %s30, 0
      %p204 = por %p202, %p203
      %s205 = ssub.s32 %s24, %s31
      %p206 = scmp.eq.s32.totalorder %s205, 0
      %s208 = sadd.s32 %s207, 1
      %s209 = scalar_select %p206, %s207, %s208
      %p212 = pneg %p206
      %p213 = scmp.eq.s32.totalorder %s24, 2
      %p214 = por %p212, %p213
      %p215 = scmp.ne.s32.totalorder %s207, %s210
      %p216 = scmp.eq.s32.totalorder %s24, 0
      %p217 = por %p215, %p216
      %p218 = scmp.ne.s32.totalorder %s207, %s210
      %p219 = scmp.eq.s32.totalorder %s29, 2
      %p220 = por %p218, %p219
      %p221 = scmp.ne.s32.totalorder %s210, %s211
      %p222 = scmp.eq.s32.totalorder %s29, 0
      %p223 = por %p221, %p222
      %p224 = scmp.ne.s32.totalorder %s210, %s211
      %p225 = scmp.eq.s32.totalorder %s30, 2
      %p226 = por %p224, %p225
      %p228 = scmp.ne.s32.totalorder %s211, %s227
      %p229 = scmp.eq.s32.totalorder %s30, 0
      %p230 = por %p228, %p229
      %s231 = ssub.s32 %s24, %s31
      %p232 = scmp.eq.s32.totalorder %s231, 0
      %s234 = sadd.s32 %s233, 1
      %s235 = scalar_select %p232, %s233, %s234
      %p238 = pneg %p232
      %p239 = scmp.eq.s32.totalorder %s24, 2
      %p240 = por %p238, %p239
      %p241 = scmp.ne.s32.totalorder %s233, %s236
      %p242 = scmp.eq.s32.totalorder %s24, 0
      %p243 = por %p241, %p242
      %p244 = scmp.ne.s32.totalorder %s233, %s236
      %p245 = scmp.eq.s32.totalorder %s29, 2
      %p246 = por %p244, %p245
      %p247 = scmp.ne.s32.totalorder %s236, %s237
      %p248 = scmp.eq.s32.totalorder %s29, 0
      %p249 = por %p247, %p248
      %p250 = scmp.ne.s32.totalorder %s236, %s237
      %p251 = scmp.eq.s32.totalorder %s30, 2
      %p252 = por %p250, %p251
      %p254 = scmp.ne.s32.totalorder %s237, %s253
      %p255 = scmp.eq.s32.totalorder %s30, 0
      %p256 = por %p254, %p255
      %s257 = ssub.s32 %s24, %s31
      %p258 = scmp.eq.s32.totalorder %s257, 0
      %s260 = sadd.s32 %s259, 1
      %s261 = scalar_select %p258, %s259, %s260
      %p264 = pneg %p258
      %p265 = scmp.eq.s32.totalorder %s24, 2
      %p266 = por %p264, %p265
      %p267 = scmp.ne.s32.totalorder %s259, %s262
      %p268 = scmp.eq.s32.totalorder %s24, 0
      %p269 = por %p267, %p268
      %p270 = scmp.ne.s32.totalorder %s259, %s262
      %p271 = scmp.eq.s32.totalorder %s29, 2
      %p272 = por %p270, %p271
      %p273 = scmp.ne.s32.totalorder %s262, %s263
      %p274 = scmp.eq.s32.totalorder %s29, 0
      %p275 = por %p273, %p274
      %p276 = scmp.ne.s32.totalorder %s262, %s263
      %p277 = scmp.eq.s32.totalorder %s30, 2
      %p278 = por %p276, %p277
      %p280 = scmp.ne.s32.totalorder %s263, %s279
      %p281 = scmp.eq.s32.totalorder %s30, 0
      %p282 = por %p280, %p281
      %s283 = ssub.s32 %s24, %s31
      %p284 = scmp.eq.s32.totalorder %s283, 0
      %s286 = sadd.s32 %s285, 1
      %s287 = scalar_select %p284, %s285, %s286
      %p290 = pneg %p284
      %p291 = scmp.eq.s32.totalorder %s24, 2
      %p292 = por %p290, %p291
      %p293 = scmp.ne.s32.totalorder %s285, %s288
      %p294 = scmp.eq.s32.totalorder %s24, 0
      %p295 = por %p293, %p294
      %p296 = scmp.ne.s32.totalorder %s285, %s288
      %p297 = scmp.eq.s32.totalorder %s29, 2
      %p298 = por %p296, %p297
      %p299 = scmp.ne.s32.totalorder %s288, %s289
      %p300 = scmp.eq.s32.totalorder %s29, 0
      %p301 = por %p299, %p300
      %p302 = scmp.ne.s32.totalorder %s288, %s289
      %p303 = scmp.eq.s32.totalorder %s30, 2
      %p304 = por %p302, %p303
      %p306 = scmp.ne.s32.totalorder %s289, %s305
      %p307 = scmp.eq.s32.totalorder %s30, 0
      %p308 = por %p306, %p307
      %s309 = ssub.s32 %s24, %s31
      %p310 = scmp.eq.s32.totalorder %s309, 0
      %s312 = sadd.s32 %s311, 1
      %s313 = scalar_select %p310, %s311, %s312
      %p316 = pneg %p310
      %p317 = scmp.eq.s32.totalorder %s24, 2
      %p318 = por %p316, %p317
      %p319 = scmp.ne.s32.totalorder %s311, %s314
      %p320 = scmp.eq.s32.totalorder %s24, 0
      %p321 = por %p319, %p320
      %p322 = scmp.ne.s32.totalorder %s311, %s314
      %p323 = scmp.eq.s32.totalorder %s29, 2
      %p324 = por %p322, %p323
      %p325 = scmp.ne.s32.totalorder %s314, %s315
      %p326 = scmp.eq.s32.totalorder %s29, 0
      %p327 = por %p325, %p326
      %p328 = scmp.ne.s32.totalorder %s314, %s315
      %p329 = scmp.eq.s32.totalorder %s30, 2
      %p330 = por %p328, %p329
      %p332 = scmp.ne.s32.totalorder %s315, %s331
      %p333 = scmp.eq.s32.totalorder %s30, 0
      %p334 = por %p332, %p333
      %s335 = ssub.s32 %s24, %s31
      %p336 = scmp.eq.s32.totalorder %s335, 0
      %s338 = sadd.s32 %s337, 1
      %s339 = scalar_select %p336, %s337, %s338
      %p342 = pneg %p336
      %p343 = scmp.eq.s32.totalorder %s24, 2
      %p344 = por %p342, %p343
      %p345 = scmp.ne.s32.totalorder %s337, %s340
      %p346 = scmp.eq.s32.totalorder %s24, 0
      %p347 = por %p345, %p346
      %p348 = scmp.ne.s32.totalorder %s337, %s340
      %p349 = scmp.eq.s32.totalorder %s29, 2
      %p350 = por %p348, %p349
      %p351 = scmp.ne.s32.totalorder %s340, %s341
      %p352 = scmp.eq.s32.totalorder %s29, 0
      %p353 = por %p351, %p352
      %p354 = scmp.ne.s32.totalorder %s340, %s341
      %p355 = scmp.eq.s32.totalorder %s30, 2
      %p356 = por %p354, %p355
      %p358 = scmp.ne.s32.totalorder %s341, %s357
      %p359 = scmp.eq.s32.totalorder %s30, 0
      %p360 = por %p358, %p359
      %s361 = ssub.s32 %s24, %s31
      %p362 = scmp.eq.s32.totalorder %s361, 0
      %s364 = sadd.s32 %s363, 1
      %s365 = scalar_select %p362, %s363, %s364
      %p368 = pneg %p362
      %p369 = scmp.eq.s32.totalorder %s24, 2
      %p370 = por %p368, %p369
      %p371 = scmp.ne.s32.totalorder %s363, %s366
      %p372 = scmp.eq.s32.totalorder %s24, 0
      %p373 = por %p371, %p372
      %p374 = scmp.ne.s32.totalorder %s363, %s366
      %p375 = scmp.eq.s32.totalorder %s29, 2
      %p376 = por %p374, %p375
      %p377 = scmp.ne.s32.totalorder %s366, %s367
      %p378 = scmp.eq.s32.totalorder %s29, 0
      %p379 = por %p377, %p378
      %p380 = scmp.ne.s32.totalorder %s366, %s367
      %p381 = scmp.eq.s32.totalorder %s30, 2
      %p382 = por %p380, %p381
      %p384 = scmp.ne.s32.totalorder %s367, %s383
      %p385 = scmp.eq.s32.totalorder %s30, 0
      %p386 = por %p384, %p385
      %s388 = sadd.s32 %s387, 1
      %p391 = scmp.eq.s32.totalorder %s24, 2
      %p392 = scmp.ne.s32.totalorder %s387, %s389
      %p393 = scmp.eq.s32.totalorder %s24, 0
      %p394 = por %p392, %p393
      %p395 = scmp.ne.s32.totalorder %s387, %s389
      %p396 = scmp.eq.s32.totalorder %s29, 2
      %p397 = por %p395, %p396
      %p398 = scmp.ne.s32.totalorder %s389, %s390
      %p399 = scmp.eq.s32.totalorder %s29, 0
      %p400 = por %p398, %p399
      %p401 = scmp.ne.s32.totalorder %s389, %s390
      %p402 = scmp.eq.s32.totalorder %s30, 2
      %p403 = por %p401, %p402
      %p405 = scmp.ne.s32.totalorder %s390, %s404
      %p406 = scmp.eq.s32.totalorder %s30, 0
      %p407 = por %p405, %p406
      %s409 = sadd.s32 %s408, 1
      %p412 = scmp.eq.s32.totalorder %s24, 2
      %p413 = scmp.ne.s32.totalorder %s408, %s410
      %p414 = scmp.eq.s32.totalorder %s24, 0
      %p415 = por %p413, %p414
      %p416 = scmp.ne.s32.totalorder %s408, %s410
      %p417 = scmp.eq.s32.totalorder %s29, 2
      %p418 = por %p416, %p417
      %p419 = scmp.ne.s32.totalorder %s410, %s411
      %p420 = scmp.eq.s32.totalorder %s29, 0
      %p421 = por %p419, %p420
      %p422 = scmp.ne.s32.totalorder %s410, %s411
      %p423 = scmp.eq.s32.totalorder %s30, 2
      %p424 = por %p422, %p423
      %p426 = scmp.ne.s32.totalorder %s411, %s425
      %p427 = scmp.eq.s32.totalorder %s30, 0
      %p428 = por %p426, %p427
      %s430 = sadd.s32 %s429, 1
      %p433 = scmp.eq.s32.totalorder %s24, 2
      %p434 = scmp.ne.s32.totalorder %s429, %s431
      %p435 = scmp.eq.s32.totalorder %s24, 0
      %p436 = por %p434, %p435
      %p437 = scmp.ne.s32.totalorder %s429, %s431
      %p438 = scmp.eq.s32.totalorder %s29, 2
      %p439 = por %p437, %p438
      %p440 = scmp.ne.s32.totalorder %s431, %s432
      %p441 = scmp.eq.s32.totalorder %s29, 0
      %p442 = por %p440, %p441
      %p443 = scmp.ne.s32.totalorder %s431, %s432
      %p444 = scmp.eq.s32.totalorder %s30, 2
      %p445 = por %p443, %p444
      %p447 = scmp.ne.s32.totalorder %s432, %s446
      %p448 = scmp.eq.s32.totalorder %s30, 0
      %p449 = por %p447, %p448
      %p450 = scmp.le.s32.totalorder 1, %s24
      %p451 = scmp.lt.s32.totalorder %s24, 4
      %p452 = pnand %p450, %p451
      %p453 = pneg %p452
      // Predicated region
      $region9: #{quantity_tf_forward.1} parent=5 // pred_check
        _
      $region10: #{quantity_tf_forward.1} parent=5 // pred_check_branch
        %455 = sbr.rel (%p452) target = $region12
      $region11: #{quantity_tf_forward.1} parent=5 // pred_region
        %s456 = ssub.s32 %s24, 1
        // Predicated region
        $region13: #{quantity_tf_forward.1} parent=11 // pred_check
          %p457 = pneg %p45
        $region14: #{quantity_tf_forward.1} parent=11 // pred_check_branch
          %459 = sbr.rel (%p457) target = $region16
        $region15: #{quantity_tf_forward.1} parent=11 // pred_region
          _
        $region16: #{quantity_tf_forward.1} parent=11 // pred_fallthru
          _
        // Predicated region
        $region17: #{quantity_tf_forward.1} parent=11 // pred_check
          %p460 = pneg %p66
        $region18: #{quantity_tf_forward.1} parent=11 // pred_check_branch
          %462 = sbr.rel (%p460) target = $region20
        $region19: #{quantity_tf_forward.1} parent=11 // pred_region
          _
        $region20: #{quantity_tf_forward.1} parent=11 // pred_fallthru
          _
        // Predicated region
        $region21: #{quantity_tf_forward.1} parent=11 // pred_check
          %p463 = pneg %p87
        $region22: #{quantity_tf_forward.1} parent=11 // pred_check_branch
          %465 = sbr.rel (%p463) target = $region24
        $region23: #{quantity_tf_forward.1} parent=11 // pred_region
          _
        $region24: #{quantity_tf_forward.1} parent=11 // pred_fallthru
          _
        // Predicated region
        $region25: #{quantity_tf_forward.1} parent=11 // pred_check
          %p466 = pneg %p108
        $region26: #{quantity_tf_forward.1} parent=11 // pred_check_branch
          %468 = sbr.rel (%p466) target = $region28
        $region27: #{quantity_tf_forward.1} parent=11 // pred_region
          _
        $region28: #{quantity_tf_forward.1} parent=11 // pred_fallthru
          _
        // Predicated region
        $region29: #{quantity_tf_forward.1} parent=11 // pred_check
          %p469 = pneg %p129
        $region30: #{quantity_tf_forward.1} parent=11 // pred_check_branch
          %471 = sbr.rel (%p469) target = $region32
        $region31: #{quantity_tf_forward.1} parent=11 // pred_region
          _
        $region32: #{quantity_tf_forward.1} parent=11 // pred_fallthru
          _
        // Predicated region
        $region33: #{quantity_tf_forward.1} parent=11 // pred_check
          %p472 = pneg %p150
        $region34: #{quantity_tf_forward.1} parent=11 // pred_check_branch
          %474 = sbr.rel (%p472) target = $region36
        $region35: #{quantity_tf_forward.1} parent=11 // pred_region
          _
        $region36: #{quantity_tf_forward.1} parent=11 // pred_fallthru
          _
        // Predicated region
        $region37: #{quantity_tf_forward.1} parent=11 // pred_check
          %p475 = pneg %p171
        $region38: #{quantity_tf_forward.1} parent=11 // pred_check_branch
          %477 = sbr.rel (%p475) target = $region40
        $region39: #{quantity_tf_forward.1} parent=11 // pred_region
          _
        $region40: #{quantity_tf_forward.1} parent=11 // pred_fallthru
          _
        // Predicated region
        $region41: #{quantity_tf_forward.1} parent=11 // pred_check
          %p478 = pneg %p400
        $region42: #{quantity_tf_forward.1} parent=11 // pred_check_branch
          %480 = sbr.rel (%p478) target = $region44
        $region43: #{quantity_tf_forward.1} parent=11 // pred_region
          _
        $region44: #{quantity_tf_forward.1} parent=11 // pred_fallthru
          _
        // Predicated region
        $region45: #{quantity_tf_forward.1} parent=11 // pred_check
          %p481 = pneg %p421
        $region46: #{quantity_tf_forward.1} parent=11 // pred_check_branch
          %483 = sbr.rel (%p481) target = $region48
        $region47: #{quantity_tf_forward.1} parent=11 // pred_region
          _
        $region48: #{quantity_tf_forward.1} parent=11 // pred_fallthru
          _
      $region12: #{quantity_tf_forward.1} parent=5 // pred_fallthru
        _
      %p484 = scmp.lt.s32.totalorder %s24, 3
      // Predicated region
      $region49: #{quantity_tf_forward.1} parent=5 // pred_check
        %p485 = pneg %p484
      $region50: #{quantity_tf_forward.1} parent=5 // pred_check_branch
        %487 = sbr.rel (%p485) target = $region52
      $region51: #{quantity_tf_forward.1} parent=5 // pred_region
        // Predicated region
        $region53: #{quantity_tf_forward.1} parent=51 // pred_check
          %p488 = pneg %p191
        $region54: #{quantity_tf_forward.1} parent=51 // pred_check_branch
          %490 = sbr.rel (%p488) target = $region56
        $region55: #{quantity_tf_forward.1} parent=51 // pred_region
          %s491 = smul.u32 8, %s24
          %p492 = scmp.lt.s32.totalorder %s491, 23
          %s493 = scalar_select %p492, %s491, 23
          %s494 = smul.addr %s493, 4
          %s495 = smul.addr %s494, 4
          %s496 = scalar_lea.vmem %s7, %s495
          %s497 = smul.u32 8, %s24
        $region56: #{quantity_tf_forward.1} parent=51 // pred_fallthru
          _
        // Predicated region
        $region57: #{quantity_tf_forward.1} parent=51 // pred_check
          %p498 = pneg %p217
        $region58: #{quantity_tf_forward.1} parent=51 // pred_check_branch
          %500 = sbr.rel (%p498) target = $region60
        $region59: #{quantity_tf_forward.1} parent=51 // pred_region
          %s501 = smul.u32 8, %s24
          %p502 = scmp.lt.s32.totalorder %s501, 23
          %s503 = scalar_select %p502, %s501, 23
          %s504 = scalar_lea.vmem %s8, %s503
          %s505 = smul.u32 8, %s24
        $region60: #{quantity_tf_forward.1} parent=51 // pred_fallthru
          _
        // Predicated region
        $region61: #{quantity_tf_forward.1} parent=51 // pred_check
          %p506 = pneg %p243
        $region62: #{quantity_tf_forward.1} parent=51 // pred_check_branch
          %508 = sbr.rel (%p506) target = $region64
        $region63: #{quantity_tf_forward.1} parent=51 // pred_region
          %p509 = scmp.lt.s32.totalorder %s24, 2
          %s510 = scalar_select %p509, %s24, 2
          %s511 = smul.addr %s510, 64
          %s512 = smul.addr %s511, 4
          %s513 = scalar_lea.vmem %s9, %s512
        $region64: #{quantity_tf_forward.1} parent=51 // pred_fallthru
          _
        // Predicated region
        $region65: #{quantity_tf_forward.1} parent=51 // pred_check
          %p514 = pneg %p269
        $region66: #{quantity_tf_forward.1} parent=51 // pred_check_branch
          %516 = sbr.rel (%p514) target = $region68
        $region67: #{quantity_tf_forward.1} parent=51 // pred_region
          %p517 = scmp.lt.s32.totalorder %s24, 2
          %s518 = scalar_select %p517, %s24, 2
          %s519 = smul.addr %s518, 16
          %s520 = scalar_lea.vmem %s10, %s519
        $region68: #{quantity_tf_forward.1} parent=51 // pred_fallthru
          _
        // Predicated region
        $region69: #{quantity_tf_forward.1} parent=51 // pred_check
          %p521 = pneg %p295
        $region70: #{quantity_tf_forward.1} parent=51 // pred_check_branch
          %523 = sbr.rel (%p521) target = $region72
        $region71: #{quantity_tf_forward.1} parent=51 // pred_region
          %p524 = scmp.lt.s32.totalorder %s24, 2
          %s525 = scalar_select %p524, %s24, 2
          %s526 = smul.addr %s525, 256
          %s527 = smul.addr %s526, 4
          %s528 = scalar_lea.vmem %s11, %s527
        $region72: #{quantity_tf_forward.1} parent=51 // pred_fallthru
          _
        // Predicated region
        $region73: #{quantity_tf_forward.1} parent=51 // pred_check
          %p529 = pneg %p321
        $region74: #{quantity_tf_forward.1} parent=51 // pred_check_branch
          %531 = sbr.rel (%p529) target = $region76
        $region75: #{quantity_tf_forward.1} parent=51 // pred_region
          %p532 = scmp.lt.s32.totalorder %s24, 2
          %s533 = scalar_select %p532, %s24, 2
          %s534 = scalar_lea.vmem %s12, %s533
        $region76: #{quantity_tf_forward.1} parent=51 // pred_fallthru
          _
        // Predicated region
        $region77: #{quantity_tf_forward.1} parent=51 // pred_check
          %p535 = pneg %p347
        $region78: #{quantity_tf_forward.1} parent=51 // pred_check_branch
          %537 = sbr.rel (%p535) target = $region80
        $region79: #{quantity_tf_forward.1} parent=51 // pred_region
          %s538 = smul.u32 3, %s24
          %p539 = scmp.lt.s32.totalorder %s538, 8
          %s540 = scalar_select %p539, %s538, 8
          %s541 = scalar_lea.vmem %s13, %s540
          %s542 = smul.u32 3, %s24
        $region80: #{quantity_tf_forward.1} parent=51 // pred_fallthru
          _
        // Predicated region
        $region81: #{quantity_tf_forward.1} parent=51 // pred_check
          %p543 = pneg %p373
        $region82: #{quantity_tf_forward.1} parent=51 // pred_check_branch
          %545 = sbr.rel (%p543) target = $region84
        $region83: #{quantity_tf_forward.1} parent=51 // pred_region
          %s546 = smul.u32 3, %s24
          %p547 = scmp.lt.s32.totalorder %s546, 8
          %s548 = scalar_select %p547, %s546, 8
          %s549 = scalar_lea.vmem %s14, %s548
          %s550 = smul.u32 3, %s24
        $region84: #{quantity_tf_forward.1} parent=51 // pred_fallthru
          _
      $region52: #{quantity_tf_forward.1} parent=5 // pred_fallthru
        _
      %p551 = scmp.le.s32.totalorder 1, %s24
      %p552 = scmp.lt.s32.totalorder %s24, 4
      %p553 = pnand %p551, %p552
      %p554 = pneg %p553
      // Predicated region
      $region85: #{quantity_tf_forward.1} parent=5 // pred_check
        _
      $region86: #{quantity_tf_forward.1} parent=5 // pred_check_branch
        %556 = sbr.rel (%p553) target = $region88
      $region87: #{quantity_tf_forward.1} parent=5 // pred_region
        %s557 = ssub.s32 %s24, 1
        %p558 = pneg %p45
        %p559 = pneg %p42
        %p560 = pneg %p66
        %p561 = pneg %p63
        %p562 = pneg %p87
        %p563 = pneg %p84
        %p564 = pneg %p108
        %p565 = pneg %p105
        %p566 = pneg %p129
        %p567 = pneg %p126
        %p568 = pneg %p150
        %p569 = pneg %p147
        %p570 = pneg %p171
        %p571 = pneg %p168
        %s572 = smul.u32 8, %s29
        %p573 = scmp.lt.s32.totalorder %s572, 23
        %s574 = scalar_select %p573, %s572, 23
        %s575 = smul.addr %s574, 4
        %s576 = smul.addr %s575, 4
        %s577 = scalar_lea.vmem %s7, %s576
        %p578 = pneg %p197
        %p579 = pneg %p194
        %s580 = smul.u32 8, %s29
        %p581 = scmp.lt.s32.totalorder %s580, 23
        %s582 = scalar_select %p581, %s580, 23
        %s583 = scalar_lea.vmem %s8, %s582
        %p584 = pneg %p223
        %p585 = pneg %p220
        %p586 = scmp.lt.s32.totalorder %s29, 2
        %s587 = scalar_select %p586, %s29, 2
        %s588 = smul.addr %s587, 64
        %s589 = smul.addr %s588, 4
        %s590 = scalar_lea.vmem %s9, %s589
        %p591 = pneg %p249
        %p592 = pneg %p246
        %p593 = scmp.lt.s32.totalorder %s29, 2
        %s594 = scalar_select %p593, %s29, 2
        %s595 = smul.addr %s594, 16
        %s596 = scalar_lea.vmem %s10, %s595
        %p597 = pneg %p275
        %p598 = pneg %p272
        %p599 = scmp.lt.s32.totalorder %s29, 2
        %s600 = scalar_select %p599, %s29, 2
        %s601 = smul.addr %s600, 256
        %s602 = smul.addr %s601, 4
        %s603 = scalar_lea.vmem %s11, %s602
        %p604 = pneg %p301
        %p605 = pneg %p298
        %p606 = scmp.lt.s32.totalorder %s29, 2
        %s607 = scalar_select %p606, %s29, 2
        %s608 = scalar_lea.vmem %s12, %s607
        %p609 = pneg %p327
        %p610 = pneg %p324
        %s611 = smul.u32 3, %s29
        %p612 = scmp.lt.s32.totalorder %s611, 8
        %s613 = scalar_select %p612, %s611, 8
        %s614 = scalar_lea.vmem %s13, %s613
        %p615 = pneg %p353
        %p616 = pneg %p350
        %s617 = smul.u32 3, %s29
        %p618 = scmp.lt.s32.totalorder %s617, 8
        %s619 = scalar_select %p618, %s617, 8
        %s620 = scalar_lea.vmem %s14, %s619
        %p621 = pneg %p379
        %p622 = pneg %p376
        %p623 = pneg %p400
        %p624 = pneg %p397
        %p625 = pneg %p421
        %p626 = pneg %p418
        %p627 = pneg %p442
        %p628 = pneg %p439
        %s629 = smul.u32 8, %s29
        %p630 = scmp.lt.s32.totalorder %s629, 23
        %s631 = scalar_select %p630, %s629, 23
        %s632 = smul.addr %s631, 4
        %s633 = smul.addr %s632, 4
        %s634 = scalar_lea.vmem %s7, %s633
        %s635 = smul.u32 8, %s29
        %s636 = smul.u32 8, %s29
        %p637 = scmp.lt.s32.totalorder %s636, 23
        %s638 = scalar_select %p637, %s636, 23
        %s639 = scalar_lea.vmem %s8, %s638
        %s640 = smul.u32 8, %s29
        %p641 = scmp.lt.s32.totalorder %s29, 2
        %s642 = scalar_select %p641, %s29, 2
        %s643 = smul.addr %s642, 64
        %s644 = smul.addr %s643, 4
        %s645 = scalar_lea.vmem %s9, %s644
        %p646 = scmp.lt.s32.totalorder %s29, 2
        %s647 = scalar_select %p646, %s29, 2
        %s648 = smul.addr %s647, 16
        %s649 = scalar_lea.vmem %s10, %s648
        %p650 = scmp.lt.s32.totalorder %s29, 2
        %s651 = scalar_select %p650, %s29, 2
        %s652 = smul.addr %s651, 256
        %s653 = smul.addr %s652, 4
        %s654 = scalar_lea.vmem %s11, %s653
        %p655 = scmp.lt.s32.totalorder %s29, 2
        %s656 = scalar_select %p655, %s29, 2
        %s657 = scalar_lea.vmem %s12, %s656
        %s658 = smul.u32 3, %s29
        %p659 = scmp.lt.s32.totalorder %s658, 8
        %s660 = scalar_select %p659, %s658, 8
        %s661 = scalar_lea.vmem %s13, %s660
        %s662 = smul.u32 3, %s29
        %s663 = smul.u32 3, %s29
        %p664 = scmp.lt.s32.totalorder %s663, 8
        %s665 = scalar_select %p664, %s663, 8
        %s666 = scalar_lea.vmem %s14, %s665
        %s667 = smul.u32 3, %s29
        %p669 = scmp.eq.s32.totalorder %s29, 0
        // Predicated region
        $region89: #{quantity_tf_forward.1} parent=87 // pred_check
          %p670 = pneg %p669
        $region90: #{quantity_tf_forward.1} parent=87 // pred_check_branch
          %672 = sbr.rel (%p670) target = $region92
        $region91: #{quantity_tf_forward.1} parent=87 // pred_region
          %v673 = vld [vmem:[%s0] sm:$0xff]
          %v674 = vld [vmem:[%s0 + $0x8] sm:$0xff]
          %vm675 = vcmask 261120
          %676 = vst.msk [vmem:[#allocation2] sm:$0xff] %vm675, %v673
          %677 = vst.msk [vmem:[#allocation2 + $0x8] sm:$0xff] %vm675, %v674
        $region92: #{quantity_tf_forward.1} parent=87 // pred_fallthru
          _
        %v678 = vld [vmem:[%s1] sm:$0xf]
        %v679 = vld [vmem:[%s1 + $0x4] sm:$0xf]
        %v680 = vld [vmem:[%s1 + $0x8] sm:$0xf]
        %v681 = vld [vmem:[%s1 + $0xc] sm:$0xf]
        %v682 = vld [vmem:[%s2] sm:$0xf]
        %v683 = vld [vmem:[%s2 + $0x4] sm:$0xf]
        %v684 = vld [vmem:[%s2 + $0x8] sm:$0xf]
        %v685 = vld [vmem:[%s2 + $0xc] sm:$0xf]
        %v686 = vld [vmem:[%s2 + $0x10] sm:$0xf]
        %v687 = vld [vmem:[%s2 + $0x14] sm:$0xf]
        %v688 = vld [vmem:[%s2 + $0x18] sm:$0xf]
        %v689 = vld [vmem:[%s2 + $0x1c] sm:$0xf]
        %v690 = vld [vmem:[%s2 + $0x20] sm:$0xf]
        %v691 = vld [vmem:[%s2 + $0x24] sm:$0xf]
        %v692 = vld [vmem:[%s2 + $0x28] sm:$0xf]
        %v693 = vld [vmem:[%s2 + $0x2c] sm:$0xf]
        %v694 = vld [vmem:[%s2 + $0x30] sm:$0xf]
        %v695 = vld [vmem:[%s2 + $0x34] sm:$0xf]
        %v696 = vld [vmem:[%s2 + $0x38] sm:$0xf]
        %v697 = vld [vmem:[%s2 + $0x3c] sm:$0xf]
        %v698 = vld [vmem:[%s3] sm:$0xf]
        %v699 = vld [vmem:[%s3 + $0x4] sm:$0xf]
        %v700 = vld [vmem:[%s4] sm:$0xf]
        %v701 = vld [vmem:[%s4 + $0x4] sm:$0xf]
        %v702 = vld [vmem:[%s4 + $0x8] sm:$0xf]
        %v703 = vld [vmem:[%s4 + $0xc] sm:$0xf]
        %v704 = vld [vmem:[%s4 + $0x10] sm:$0xf]
        %v705 = vld [vmem:[%s4 + $0x14] sm:$0xf]
        %v706 = vld [vmem:[%s4 + $0x18] sm:$0xf]
        %v707 = vld [vmem:[%s4 + $0x1c] sm:$0xf]
        %v708 = vld [vmem:[%s4 + $0x20] sm:$0xf]
        %v709 = vld [vmem:[%s4 + $0x24] sm:$0xf]
        %v710 = vld [vmem:[%s4 + $0x28] sm:$0xf]
        %v711 = vld [vmem:[%s4 + $0x2c] sm:$0xf]
        %v712 = vld [vmem:[%s4 + $0x30] sm:$0xf]
        %v713 = vld [vmem:[%s4 + $0x34] sm:$0xf]
        %v714 = vld [vmem:[%s4 + $0x38] sm:$0xf]
        %v715 = vld [vmem:[%s4 + $0x3c] sm:$0xf]
        %v716 = vld [vmem:[%s5] sm:$0xff]
        %v717 = vld [vmem:[%s5 + $0x8] sm:$0xff]
        %v718 = vld [vmem:[#allocation2] sm:$0xff]
        %v719 = vld [vmem:[#allocation2 + $0x8] sm:$0xff]
        %v720 = vpack.c.bf16 %v719, %v718
        %v721 = vld [vmem:[%s634] sm:$0xf]
        %v722 = vld [vmem:[%s634 + $0x4] sm:$0xf]
        %v723 = vld [vmem:[%s634 + $0x8] sm:$0xf]
        %v724 = vld [vmem:[%s634 + $0xc] sm:$0xf]
        %v725 = vld [vmem:[%s639] sm:$0x1]
        %v727 = vlaneseq
        %v728 = vshrl.u32 %v727, 7
        %v729 = vsub.s32 0, %v728
        %v730 = vrot.slane %v725, %v729
        %v736 = vunpack.c.l.b16 %v721
        %v737 = vunpack.c.l.b16 %v722
        %v738 = vunpack.c.l.b16 %v723
        %v739 = vunpack.c.l.b16 %v724
        %v740 = vpack.c.b16 %v737, %v736
        %v741 = vpack.c.b16 %v739, %v738
        %vm744 = vcmask 261120
        %v746 = vsel %vm744, %v720, 0
        %748 = vmatprep.subr.bf16.mxu0 0
        %749 = vmatpush1.bf16.msra.mxu0 %v740
        %750 = vmatprep.subr.bf16.mxu0 0
        %751 = vmatpush1.bf16.msra.mxu0 %v741
        %752 = vmatprep.subr.bf16.mxu0 0
        %753 = vmatpush1.bf16.msra.mxu0 0
        %754 = vmatprep.subr.bf16.mxu0 0
        %755 = vmatpush1.bf16.msra.mxu0 0
        %756 = vmatprep.subr.bf16.mxu0 0
        %757 = vmatpush1.bf16.msra.mxu0 0
        %758 = vmatprep.subr.bf16.mxu0 0
        %759 = vmatpush1.bf16.msra.mxu0 0
        %760 = vmatprep.subr.bf16.mxu0 0
        %761 = vmatpush1.bf16.msra.mxu0 0
        %762 = vmatprep.subr.bf16.mxu0 0
        %763 = vmatpush1.bf16.msra.mxu0 0
        %764 = vmatprep.subr.bf16.mxu0 0
        %765 = vmatpush1.bf16.msra.mxu0 0
        %766 = vmatprep.subr.bf16.mxu0 0
        %767 = vmatpush1.bf16.msra.mxu0 0
        %768 = vmatprep.subr.bf16.mxu0 0
        %769 = vmatpush1.bf16.msra.mxu0 0
        %770 = vmatprep.subr.bf16.mxu0 0
        %771 = vmatpush1.bf16.msra.mxu0 0
        %772 = vmatprep.subr.bf16.mxu0 0
        %773 = vmatpush1.bf16.msra.mxu0 0
        %774 = vmatprep.subr.bf16.mxu0 0
        %775 = vmatpush1.bf16.msra.mxu0 0
        %776 = vmatprep.subr.bf16.mxu0 0
        %777 = vmatpush1.bf16.msra.mxu0 0
        %778 = vmatprep.subr.bf16.mxu0 0
        %779 = vmatpush1.bf16.msra.mxu0 0
        %780 = vmatprep.mubr.bf16.mxu0 0
        %781 = vmatmul.mubr.bf16.gmra.mrb[0].mxu0 %v746
        %v782 = vpop.f32.mrb[0].mxu0
        %v783 = vadd.f32 %v730, %v782
        %v784 = vpop.f32.mrb[0].mxu0
        %v785 = vpop.f32.mrb[0].mxu0
        %v786 = vadd.f32 %v730, %v785
        %v787 = vpop.f32.mrb[0].mxu0
        %788 = vdwg.mxu0
        %s789 = scalar_lea.vmem %s634, 16
        %v790 = vld [vmem:[%s789] sm:$0xf]
        %v791 = vld [vmem:[%s789 + $0x4] sm:$0xf]
        %v792 = vld [vmem:[%s789 + $0x8] sm:$0xf]
        %v793 = vld [vmem:[%s789 + $0xc] sm:$0xf]
        %s794 = scalar_lea.vmem %s639, 1
        %v795 = vld [vmem:[%s794] sm:$0x1]
        %v797 = vlaneseq
        %v798 = vshrl.u32 %v797, 7
        %v799 = vsub.s32 0, %v798
        %v800 = vrot.slane %v795, %v799
        %v806 = vunpack.c.l.b16 %v790
        %v807 = vunpack.c.l.b16 %v791
        %v808 = vunpack.c.l.b16 %v792
        %v809 = vunpack.c.l.b16 %v793
        %v810 = vpack.c.b16 %v807, %v806
        %v811 = vpack.c.b16 %v809, %v808
        %814 = vmatprep.subr.bf16.mxu0 0
        %815 = vmatpush1.bf16.msra.mxu0 %v810
        %816 = vmatprep.subr.bf16.mxu0 0
        %817 = vmatpush1.bf16.msra.mxu0 %v811
        %818 = vmatprep.subr.bf16.mxu0 0
        %819 = vmatpush1.bf16.msra.mxu0 0
        %820 = vmatprep.subr.bf16.mxu0 0
        %821 = vmatpush1.bf16.msra.mxu0 0
        %822 = vmatprep.subr.bf16.mxu0 0
        %823 = vmatpush1.bf16.msra.mxu0 0
        %824 = vmatprep.subr.bf16.mxu0 0
        %825 = vmatpush1.bf16.msra.mxu0 0
        %826 = vmatprep.subr.bf16.mxu0 0
        %827 = vmatpush1.bf16.msra.mxu0 0
        %828 = vmatprep.subr.bf16.mxu0 0
        %829 = vmatpush1.bf16.msra.mxu0 0
        %830 = vmatprep.subr.bf16.mxu0 0
        %831 = vmatpush1.bf16.msra.mxu0 0
        %832 = vmatprep.subr.bf16.mxu0 0
        %833 = vmatpush1.bf16.msra.mxu0 0
        %834 = vmatprep.subr.bf16.mxu0 0
        %835 = vmatpush1.bf16.msra.mxu0 0
        %836 = vmatprep.subr.bf16.mxu0 0
        %837 = vmatpush1.bf16.msra.mxu0 0
        %838 = vmatprep.subr.bf16.mxu0 0
        %839 = vmatpush1.bf16.msra.mxu0 0
        %840 = vmatprep.subr.bf16.mxu0 0
        %841 = vmatpush1.bf16.msra.mxu0 0
        %842 = vmatprep.subr.bf16.mxu0 0
        %843 = vmatpush1.bf16.msra.mxu0 0
        %844 = vmatprep.subr.bf16.mxu0 0
        %845 = vmatpush1.bf16.msra.mxu0 0
        %846 = vmatprep.mubr.bf16.mxu0 0
        %847 = vmatmul.mubr.bf16.gmra.mrb[0].mxu0 %v746
        %v848 = vpop.f32.mrb[0].mxu0
        %v849 = vadd.f32 %v800, %v848
        %v850 = vpop.f32.mrb[0].mxu0
        %v851 = vpop.f32.mrb[0].mxu0
        %v852 = vadd.f32 %v800, %v851
        %v853 = vpop.f32.mrb[0].mxu0
        %854 = vdwg.mxu0
        %s855 = scalar_lea.vmem %s634, 32
        %v856 = vld [vmem:[%s855] sm:$0xf]
        %v857 = vld [vmem:[%s855 + $0x4] sm:$0xf]
        %v858 = vld [vmem:[%s855 + $0x8] sm:$0xf]
        %v859 = vld [vmem:[%s855 + $0xc] sm:$0xf]
        %s860 = scalar_lea.vmem %s639, 2
        %v861 = vld [vmem:[%s860] sm:$0x1]
        %v863 = vlaneseq
        %v864 = vshrl.u32 %v863, 7
        %v865 = vsub.s32 0, %v864
        %v866 = vrot.slane %v861, %v865
        %v872 = vunpack.c.l.b16 %v856
        %v873 = vunpack.c.l.b16 %v857
        %v874 = vunpack.c.l.b16 %v858
        %v875 = vunpack.c.l.b16 %v859
        %v876 = vpack.c.b16 %v873, %v872
        %v877 = vpack.c.b16 %v875, %v874
        %880 = vmatprep.subr.bf16.mxu0 0
        %881 = vmatpush1.bf16.msra.mxu0 %v876
        %882 = vmatprep.subr.bf16.mxu0 0
        %883 = vmatpush1.bf16.msra.mxu0 %v877
        %884 = vmatprep.subr.bf16.mxu0 0
        %885 = vmatpush1.bf16.msra.mxu0 0
        %886 = vmatprep.subr.bf16.mxu0 0
        %887 = vmatpush1.bf16.msra.mxu0 0
        %888 = vmatprep.subr.bf16.mxu0 0
        %889 = vmatpush1.bf16.msra.mxu0 0
        %890 = vmatprep.subr.bf16.mxu0 0
        %891 = vmatpush1.bf16.msra.mxu0 0
        %892 = vmatprep.subr.bf16.mxu0 0
        %893 = vmatpush1.bf16.msra.mxu0 0
        %894 = vmatprep.subr.bf16.mxu0 0
        %895 = vmatpush1.bf16.msra.mxu0 0
        %896 = vmatprep.subr.bf16.mxu0 0
        %897 = vmatpush1.bf16.msra.mxu0 0
        %898 = vmatprep.subr.bf16.mxu0 0
        %899 = vmatpush1.bf16.msra.mxu0 0
        %900 = vmatprep.subr.bf16.mxu0 0
        %901 = vmatpush1.bf16.msra.mxu0 0
        %902 = vmatprep.subr.bf16.mxu0 0
        %903 = vmatpush1.bf16.msra.mxu0 0
        %904 = vmatprep.subr.bf16.mxu0 0
        %905 = vmatpush1.bf16.msra.mxu0 0
        %906 = vmatprep.subr.bf16.mxu0 0
        %907 = vmatpush1.bf16.msra.mxu0 0
        %908 = vmatprep.subr.bf16.mxu0 0
        %909 = vmatpush1.bf16.msra.mxu0 0
        %910 = vmatprep.subr.bf16.mxu0 0
        %911 = vmatpush1.bf16.msra.mxu0 0
        %912 = vmatprep.mubr.bf16.mxu0 0
        %913 = vmatmul.mubr.bf16.gmra.mrb[0].mxu0 %v746
        %v914 = vpop.f32.mrb[0].mxu0
        %v915 = vadd.f32 %v866, %v914
        %v916 = vpop.f32.mrb[0].mxu0
        %v917 = vpop.f32.mrb[0].mxu0
        %v918 = vadd.f32 %v866, %v917
        %v919 = vpop.f32.mrb[0].mxu0
        %920 = vdwg.mxu0
        %921 = vxpose.xlu0.b32.start [1/16] %v849, 128
        %922 = vxpose.xlu0.b32.cont [2/16] %v852, 128
        %923 = vxpose.xlu0.b32.cont [3/16] 0.0, 128
        %924 = vxpose.xlu0.b32.cont [4/16] 0.0, 128
        %925 = vxpose.xlu0.b32.cont [5/16] 0.0, 128
        %926 = vxpose.xlu0.b32.cont [6/16] 0.0, 128
        %927 = vxpose.xlu0.b32.cont [7/16] 0.0, 128
        %928 = vxpose.xlu0.b32.cont [8/16] 0.0, 128
        %929 = vxpose.xlu0.b32.cont [9/16] 0.0, 128
        %930 = vxpose.xlu0.b32.cont [10/16] 0.0, 128
        %931 = vxpose.xlu0.b32.cont [11/16] 0.0, 128
        %932 = vxpose.xlu0.b32.cont [12/16] 0.0, 128
        %933 = vxpose.xlu0.b32.cont [13/16] 0.0, 128
        %934 = vxpose.xlu0.b32.cont [14/16] 0.0, 128
        %935 = vxpose.xlu0.b32.cont [15/16] 0.0, 128
        %936 = vxpose.xlu0.b32.end [16/16] 0.0, 128
        %v937 = vpop.trf.xlu0
        %v938 = vpop.trf.xlu0
        %v939 = vpop.trf.xlu0
        %v940 = vpop.trf.xlu0
        %v941 = vpop.trf.xlu0
        %v942 = vpop.trf.xlu0
        %v943 = vpop.trf.xlu0
        %v944 = vpop.trf.xlu0
        %v945 = vpop.trf.xlu0
        %v946 = vpop.trf.xlu0
        %v947 = vpop.trf.xlu0
        %v948 = vpop.trf.xlu0
        %v949 = vpop.trf.xlu0
        %v950 = vpop.trf.xlu0
        %v951 = vpop.trf.xlu0
        %v952 = vpop.trf.xlu0
        %v953 = vpack.c.bf16 %v938, %v937
        %v954 = vpack.c.bf16 %v940, %v939
        %v957 = vunpack.c.l.b16 %v698
        %v958 = vunpack.c.l.b16 %v699
        %v959 = vpack.c.b16 %v958, %v957
        %vm961 = vcmask 130048
        %v963 = vsel %vm961, %v953, 0
        %v966 = vsel %vm961, %v954, 0
        %968 = vmatprep.subr.bf16.mxu0 0
        %969 = vmatpush1.bf16.msra.mxu0 %v959
        %970 = vmatprep.subr.bf16.mxu0 0
        %971 = vmatpush1.bf16.msra.mxu0 0
        %972 = vmatprep.subr.bf16.mxu0 0
        %973 = vmatpush1.bf16.msra.mxu0 0
        %974 = vmatprep.subr.bf16.mxu0 0
        %975 = vmatpush1.bf16.msra.mxu0 0
        %976 = vmatprep.subr.bf16.mxu0 0
        %977 = vmatpush1.bf16.msra.mxu0 0
        %978 = vmatprep.subr.bf16.mxu0 0
        %979 = vmatpush1.bf16.msra.mxu0 0
        %980 = vmatprep.subr.bf16.mxu0 0
        %981 = vmatpush1.bf16.msra.mxu0 0
        %982 = vmatprep.subr.bf16.mxu0 0
        %983 = vmatpush1.bf16.msra.mxu0 0
        %984 = vmatprep.subr.bf16.mxu0 0
        %985 = vmatpush1.bf16.msra.mxu0 0
        %986 = vmatprep.subr.bf16.mxu0 0
        %987 = vmatpush1.bf16.msra.mxu0 0
        %988 = vmatprep.subr.bf16.mxu0 0
        %989 = vmatpush1.bf16.msra.mxu0 0
        %990 = vmatprep.subr.bf16.mxu0 0
        %991 = vmatpush1.bf16.msra.mxu0 0
        %992 = vmatprep.subr.bf16.mxu0 0
        %993 = vmatpush1.bf16.msra.mxu0 0
        %994 = vmatprep.subr.bf16.mxu0 0
        %995 = vmatpush1.bf16.msra.mxu0 0
        %996 = vmatprep.subr.bf16.mxu0 0
        %997 = vmatpush1.bf16.msra.mxu0 0
        %998 = vmatprep.subr.bf16.mxu0 0
        %999 = vmatpush1.bf16.msra.mxu0 0
        %1000 = vmatprep.mubr.bf16.mxu0 0
        %1001 = vmatmul.mubr.bf16.gmra.mrb[0].mxu0 %v963
        %v1002 = vpop.f32.mrb[0].mxu0
        %v1003 = vadd.f32 0.0, %v1002
        %v1004 = vpop.f32.mrb[0].mxu0
        %v1005 = vpop.f32.mrb[0].mxu0
        %v1006 = vadd.f32 0.0, %v1005
        %v1007 = vpop.f32.mrb[0].mxu0
        %1008 = vmatprep.mubr.bf16.mxu0 0
        %1009 = vmatmul.mubr.bf16.gmra.mrb[0].mxu0 %v966
        %v1010 = vpop.f32.mrb[0].mxu0
        %v1011 = vadd.f32 0.0, %v1010
        %v1012 = vpop.f32.mrb[0].mxu0
        %v1013 = vpop.f32.mrb[0].mxu0
        %v1014 = vadd.f32 0.0, %v1013
        %v1015 = vpop.f32.mrb[0].mxu0
        %1016 = vdwg.mxu0
        %v1017 = vpack.c.bf16 %v1006, %v1003
        %v1018 = vpack.c.bf16 %v1014, %v1011
        %v1023 = vunpack.c.l.b16 %v678
        %v1024 = vunpack.c.l.b16 %v679
        %v1025 = vunpack.c.l.b16 %v680
        %v1026 = vunpack.c.l.b16 %v681
        %v1027 = vpack.c.b16 %v1024, %v1023
        %v1028 = vpack.c.b16 %v1026, %v1025
        %v1031 = vmul.bf16 %v1017, %v1027
        %v1032 = vmul.bf16 %v1018, %v1028
        %v1033 = vpack.c.bf16 %v918, %v915
        %v1050 = vunpack.c.l.b16 %v700
        %v1051 = vunpack.c.l.b16 %v701
        %v1052 = vunpack.c.l.b16 %v702
        %v1053 = vunpack.c.l.b16 %v703
        %v1054 = vunpack.c.l.b16 %v704
        %v1055 = vunpack.c.l.b16 %v705
        %v1056 = vunpack.c.l.b16 %v706
        %v1057 = vunpack.c.l.b16 %v707
        %v1058 = vunpack.c.l.b16 %v708
        %v1059 = vunpack.c.l.b16 %v709
        %v1060 = vunpack.c.l.b16 %v710
        %v1061 = vunpack.c.l.b16 %v711
        %v1062 = vunpack.c.l.b16 %v712
        %v1063 = vunpack.c.l.b16 %v713
        %v1064 = vunpack.c.l.b16 %v714
        %v1065 = vunpack.c.l.b16 %v715
        %v1066 = vpack.c.b16 %v1051, %v1050
        %v1067 = vpack.c.b16 %v1053, %v1052
        %v1068 = vpack.c.b16 %v1055, %v1054
        %v1069 = vpack.c.b16 %v1057, %v1056
        %v1070 = vpack.c.b16 %v1059, %v1058
        %v1071 = vpack.c.b16 %v1061, %v1060
        %v1072 = vpack.c.b16 %v1063, %v1062
        %v1073 = vpack.c.b16 %v1065, %v1064
        %v1075 = vsel %vm961, %v1066, 0
        %v1078 = vsel %vm961, %v1067, 0
        %v1081 = vsel %vm961, %v1068, 0
        %v1084 = vsel %vm961, %v1069, 0
        %v1087 = vsel %vm961, %v1070, 0
        %v1090 = vsel %vm961, %v1071, 0
        %v1093 = vsel %vm961, %v1072, 0
        %v1096 = vsel %vm961, %v1073, 0
        %1098 = vmatprep.subr.bf16.mxu0 0
        %1099 = vmatpush1.bf16.msra.mxu0 %v1033
        %1100 = vmatprep.subr.bf16.mxu0 0
        %1101 = vmatpush1.bf16.msra.mxu0 0
        %1102 = vmatprep.subr.bf16.mxu0 0
        %1103 = vmatpush1.bf16.msra.mxu0 0
        %1104 = vmatprep.subr.bf16.mxu0 0
        %1105 = vmatpush1.bf16.msra.mxu0 0
        %1106 = vmatprep.subr.bf16.mxu0 0
        %1107 = vmatpush1.bf16.msra.mxu0 0
        %1108 = vmatprep.subr.bf16.mxu0 0
        %1109 = vmatpush1.bf16.msra.mxu0 0
        %1110 = vmatprep.subr.bf16.mxu0 0
        %1111 = vmatpush1.bf16.msra.mxu0 0
        %1112 = vmatprep.subr.bf16.mxu0 0
        %1113 = vmatpush1.bf16.msra.mxu0 0
        %1114 = vmatprep.subr.bf16.mxu0 0
        %1115 = vmatpush1.bf16.msra.mxu0 0
        %1116 = vmatprep.subr.bf16.mxu0 0
        %1117 = vmatpush1.bf16.msra.mxu0 0
        %1118 = vmatprep.subr.bf16.mxu0 0
        %1119 = vmatpush1.bf16.msra.mxu0 0
        %1120 = vmatprep.subr.bf16.mxu0 0
        %1121 = vmatpush1.bf16.msra.mxu0 0
        %1122 = vmatprep.subr.bf16.mxu0 0
        %1123 = vmatpush1.bf16.msra.mxu0 0
        %1124 = vmatprep.subr.bf16.mxu0 0
        %1125 = vmatpush1.bf16.msra.mxu0 0
        %1126 = vmatprep.subr.bf16.mxu0 0
        %1127 = vmatpush1.bf16.msra.mxu0 0
        %1128 = vmatprep.subr.bf16.mxu0 0
        %1129 = vmatpush1.bf16.msra.mxu0 0
        %1130 = vmatprep.mubr.bf16.mxu0 0
        %1131 = vmatmul.mubr.bf16.gmra.mrb[0].mxu0 %v1075
        %v1132 = vpop.f32.mrb[0].mxu0
        %v1133 = vadd.f32 0.0, %v1132
        %v1134 = vpop.f32.mrb[0].mxu0
        %v1135 = vpop.f32.mrb[0].mxu0
        %v1136 = vadd.f32 0.0, %v1135
        %v1137 = vpop.f32.mrb[0].mxu0
        %1138 = vmatprep.mubr.bf16.mxu0 0
        %1139 = vmatmul.mubr.bf16.gmra.mrb[0].mxu0 %v1078
        %v1140 = vpop.f32.mrb[0].mxu0
        %v1141 = vadd.f32 0.0, %v1140
        %v1142 = vpop.f32.mrb[0].mxu0
        %v1143 = vpop.f32.mrb[0].mxu0
        %v1144 = vadd.f32 0.0, %v1143
        %v1145 = vpop.f32.mrb[0].mxu0
        %1146 = vmatprep.mubr.bf16.mxu0 0
        %1147 = vmatmul.mubr.bf16.gmra.mrb[0].mxu0 %v1081
        %v1148 = vpop.f32.mrb[0].mxu0
        %v1149 = vadd.f32 0.0, %v1148
        %v1150 = vpop.f32.mrb[0].mxu0
        %v1151 = vpop.f32.mrb[0].mxu0
        %v1152 = vadd.f32 0.0, %v1151
        %v1153 = vpop.f32.mrb[0].mxu0
        %1154 = vmatprep.mubr.bf16.mxu0 0
        %1155 = vmatmul.mubr.bf16.gmra.mrb[0].mxu0 %v1084
        %v1156 = vpop.f32.mrb[0].mxu0
        %v1157 = vadd.f32 0.0, %v1156
        %v1158 = vpop.f32.mrb[0].mxu0
        %v1159 = vpop.f32.mrb[0].mxu0
        %v1160 = vadd.f32 0.0, %v1159
        %v1161 = vpop.f32.mrb[0].mxu0
        %1162 = vmatprep.mubr.bf16.mxu0 0
        %1163 = vmatmul.mubr.bf16.gmra.mrb[0].mxu0 %v1087
        %v1164 = vpop.f32.mrb[0].mxu0
        %v1165 = vadd.f32 0.0, %v1164
        %v1166 = vpop.f32.mrb[0].mxu0
        %v1167 = vpop.f32.mrb[0].mxu0
        %v1168 = vadd.f32 0.0, %v1167
        %v1169 = vpop.f32.mrb[0].mxu0
        %1170 = vmatprep.mubr.bf16.mxu0 0
        %1171 = vmatmul.mubr.bf16.gmra.mrb[0].mxu0 %v1090
        %v1172 = vpop.f32.mrb[0].mxu0
        %v1173 = vadd.f32 0.0, %v1172
        %v1174 = vpop.f32.mrb[0].mxu0
        %v1175 = vpop.f32.mrb[0].mxu0
        %v1176 = vadd.f32 0.0, %v1175
        %v1177 = vpop.f32.mrb[0].mxu0
        %1178 = vmatprep.mubr.bf16.mxu0 0
        %1179 = vmatmul.mubr.bf16.gmra.mrb[0].mxu0 %v1093
        %v1180 = vpop.f32.mrb[0].mxu0
        %v1181 = vadd.f32 0.0, %v1180
        %v1182 = vpop.f32.mrb[0].mxu0
        %v1183 = vpop.f32.mrb[0].mxu0
        %v1184 = vadd.f32 0.0, %v1183
        %v1185 = vpop.f32.mrb[0].mxu0
        %1186 = vmatprep.mubr.bf16.mxu0 0
        %1187 = vmatmul.mubr.bf16.gmra.mrb[0].mxu0 %v1096
        %v1188 = vpop.f32.mrb[0].mxu0
        %v1189 = vadd.f32 0.0, %v1188
        %v1190 = vpop.f32.mrb[0].mxu0
        %v1191 = vpop.f32.mrb[0].mxu0
        %v1192 = vadd.f32 0.0, %v1191
        %v1193 = vpop.f32.mrb[0].mxu0
        %1194 = vdwg.mxu0
        %v1195 = vpack.c.bf16 %v1136, %v1133
        %v1196 = vpack.c.bf16 %v1144, %v1141
        %v1197 = vpack.c.bf16 %v1152, %v1149
        %v1198 = vpack.c.bf16 %v1160, %v1157
        %v1199 = vpack.c.bf16 %v1168, %v1165
        %v1200 = vpack.c.bf16 %v1176, %v1173
        %v1201 = vpack.c.bf16 %v1184, %v1181
        %v1202 = vpack.c.bf16 %v1192, %v1189
        %v1219 = vunpack.c.l.b16 %v682
        %v1220 = vunpack.c.l.b16 %v683
        %v1221 = vunpack.c.l.b16 %v684
        %v1222 = vunpack.c.l.b16 %v685
        %v1223 = vunpack.c.l.b16 %v686
        %v1224 = vunpack.c.l.b16 %v687
        %v1225 = vunpack.c.l.b16 %v688
        %v1226 = vunpack.c.l.b16 %v689
        %v1227 = vunpack.c.l.b16 %v690
        %v1228 = vunpack.c.l.b16 %v691
        %v1229 = vunpack.c.l.b16 %v692
        %v1230 = vunpack.c.l.b16 %v693
        %v1231 = vunpack.c.l.b16 %v694
        %v1232 = vunpack.c.l.b16 %v695
        %v1233 = vunpack.c.l.b16 %v696
        %v1234 = vunpack.c.l.b16 %v697
        %v1235 = vpack.c.b16 %v1220, %v1219
        %v1236 = vpack.c.b16 %v1222, %v1221
        %v1237 = vpack.c.b16 %v1224, %v1223
        %v1238 = vpack.c.b16 %v1226, %v1225
        %v1239 = vpack.c.b16 %v1228, %v1227
        %v1240 = vpack.c.b16 %v1230, %v1229
        %v1241 = vpack.c.b16 %v1232, %v1231
        %v1242 = vpack.c.b16 %v1234, %v1233
        %v1251 = vmul.bf16 %v1195, %v1235
        %v1252 = vmul.bf16 %v1196, %v1236
        %v1253 = vmul.bf16 %v1197, %v1237
        %v1254 = vmul.bf16 %v1198, %v1238
        %v1255 = vmul.bf16 %v1199, %v1239
        %v1256 = vmul.bf16 %v1200, %v1240
        %v1257 = vmul.bf16 %v1201, %v1241
        %v1258 = vmul.bf16 %v1202, %v1242
        %v1259 = vmul.f32 %v783, 0.5
        %v1260 = vmul.f32 %v786, 0.5
        %v1261 = vpack.c.bf16 %v1260, %v1259
        %v1263 = vsel %vm744, %v1261, 0
        %1265 = vmatprep.subr.bf16.mxu0 0
        %1266 = vmatpush1.bf16.msra.mxu0 %v1031
        %1267 = vmatprep.subr.bf16.mxu0 0
        %1268 = vmatpush1.bf16.msra.mxu0 %v1032
        %1269 = vmatprep.subr.bf16.mxu0 0
        %1270 = vmatpush1.bf16.msra.mxu0 0
        %1271 = vmatprep.subr.bf16.mxu0 0
        %1272 = vmatpush1.bf16.msra.mxu0 0
        %1273 = vmatprep.subr.bf16.mxu0 0
        %1274 = vmatpush1.bf16.msra.mxu0 0
        %1275 = vmatprep.subr.bf16.mxu0 0
        %1276 = vmatpush1.bf16.msra.mxu0 0
        %1277 = vmatprep.subr.bf16.mxu0 0
        %1278 = vmatpush1.bf16.msra.mxu0 0
        %1279 = vmatprep.subr.bf16.mxu0 0
        %1280 = vmatpush1.bf16.msra.mxu0 0
        %1281 = vmatprep.subr.bf16.mxu0 0
        %1282 = vmatpush1.bf16.msra.mxu0 0
        %1283 = vmatprep.subr.bf16.mxu0 0
        %1284 = vmatpush1.bf16.msra.mxu0 0
        %1285 = vmatprep.subr.bf16.mxu0 0
        %1286 = vmatpush1.bf16.msra.mxu0 0
        %1287 = vmatprep.subr.bf16.mxu0 0
        %1288 = vmatpush1.bf16.msra.mxu0 0
        %1289 = vmatprep.subr.bf16.mxu0 0
        %1290 = vmatpush1.bf16.msra.mxu0 0
        %1291 = vmatprep.subr.bf16.mxu0 0
        %1292 = vmatpush1.bf16.msra.mxu0 0
        %1293 = vmatprep.subr.bf16.mxu0 0
        %1294 = vmatpush1.bf16.msra.mxu0 0
        %1295 = vmatprep.subr.bf16.mxu0 0
        %1296 = vmatpush1.bf16.msra.mxu0 0
        %1297 = vmatprep.mubr.bf16.mxu0 0
        %1298 = vmatmul.mubr.bf16.gmra.mrb[0].mxu0 %v1263
        %v1299 = vpop.f32.mrb[0].mxu0
        %v1300 = vadd.f32 %v716, %v1299
        %v1301 = vpop.f32.mrb[0].mxu0
        %v1302 = vpop.f32.mrb[0].mxu0
        %v1303 = vadd.f32 %v717, %v1302
        %v1304 = vpop.f32.mrb[0].mxu0
        %1305 = vdwg.mxu0
        %1306 = vmax.xlane.f32.xlu0 %v1300
        %v1307 = vpop.xlane.xlu0 %1306
        %1308 = vmax.xlane.f32.xlu0 %v1303
        %v1309 = vpop.xlane.xlu0 %1308
        %v1310 = vsub.f32 %v1300, %v1307
        %v1311 = vsub.f32 %v1303, %v1309
        %v1312 = vmul.f32 %v1310, 1.442695
        %v1313 = vpow.pop %v1312
        %v1314 = vmul.f32 %v1311, 1.442695
        %v1315 = vpow.pop %v1314
        %v1316 = vpack.c.bf16 %v1315, %v1313
        %1317 = vmatprep.subr.bf16.mxu0 0
        %1318 = vmatpush1.bf16.msra.mxu0 %v1251
        %1319 = vmatprep.subr.bf16.mxu0 0
        %1320 = vmatpush1.bf16.msra.mxu0 %v1252
        %1321 = vmatprep.subr.bf16.mxu0 0
        %1322 = vmatpush1.bf16.msra.mxu0 %v1253
        %1323 = vmatprep.subr.bf16.mxu0 0
        %1324 = vmatpush1.bf16.msra.mxu0 %v1254
        %1325 = vmatprep.subr.bf16.mxu0 0
        %1326 = vmatpush1.bf16.msra.mxu0 %v1255
        %1327 = vmatprep.subr.bf16.mxu0 0
        %1328 = vmatpush1.bf16.msra.mxu0 %v1256
        %1329 = vmatprep.subr.bf16.mxu0 0
        %1330 = vmatpush1.bf16.msra.mxu0 %v1257
        %1331 = vmatprep.subr.bf16.mxu0 0
        %1332 = vmatpush1.bf16.msra.mxu0 %v1258
        %1333 = vmatprep.subr.bf16.mxu0 0
        %1334 = vmatpush1.bf16.msra.mxu0 0
        %1335 = vmatprep.subr.bf16.mxu0 0
        %1336 = vmatpush1.bf16.msra.mxu0 0
        %1337 = vmatprep.subr.bf16.mxu0 0
        %1338 = vmatpush1.bf16.msra.mxu0 0
        %1339 = vmatprep.subr.bf16.mxu0 0
        %1340 = vmatpush1.bf16.msra.mxu0 0
        %1341 = vmatprep.subr.bf16.mxu0 0
        %1342 = vmatpush1.bf16.msra.mxu0 0
        %1343 = vmatprep.subr.bf16.mxu0 0
        %1344 = vmatpush1.bf16.msra.mxu0 0
        %1345 = vmatprep.subr.bf16.mxu0 0
        %1346 = vmatpush1.bf16.msra.mxu0 0
        %1347 = vmatprep.subr.bf16.mxu0 0
        %1348 = vmatpush1.bf16.msra.mxu0 0
        %1349 = vmatprep.mubr.bf16.mxu0 0
        %1350 = vmatmul.mubr.bf16.gmra.mrb[0].mxu0 %v1316
        %v1351 = vpop.f32.mrb[0].mxu0
        %v1352 = vadd.f32 0.0, %v1351
        %v1353 = vpop.f32.mrb[0].mxu0
        %v1354 = vpop.f32.mrb[0].mxu0
        %v1355 = vadd.f32 0.0, %v1354
        %v1356 = vpop.f32.mrb[0].mxu0
        %1357 = vdwg.mxu0
        %1358 = vmatprep.subr.bf16.mxu0 0
        %1359 = vmatpush1.bf16.msra.mxu0 %v1235
        %1360 = vmatprep.subr.bf16.mxu0 0
        %1361 = vmatpush1.bf16.msra.mxu0 %v1236
        %1362 = vmatprep.subr.bf16.mxu0 0
        %1363 = vmatpush1.bf16.msra.mxu0 %v1237
        %1364 = vmatprep.subr.bf16.mxu0 0
        %1365 = vmatpush1.bf16.msra.mxu0 %v1238
        %1366 = vmatprep.subr.bf16.mxu0 0
        %1367 = vmatpush1.bf16.msra.mxu0 %v1239
        %1368 = vmatprep.subr.bf16.mxu0 0
        %1369 = vmatpush1.bf16.msra.mxu0 %v1240
        %1370 = vmatprep.subr.bf16.mxu0 0
        %1371 = vmatpush1.bf16.msra.mxu0 %v1241
        %1372 = vmatprep.subr.bf16.mxu0 0
        %1373 = vmatpush1.bf16.msra.mxu0 %v1242
        %1374 = vmatprep.subr.bf16.mxu0 0
        %1375 = vmatpush1.bf16.msra.mxu0 0
        %1376 = vmatprep.subr.bf16.mxu0 0
        %1377 = vmatpush1.bf16.msra.mxu0 0
        %1378 = vmatprep.subr.bf16.mxu0 0
        %1379 = vmatpush1.bf16.msra.mxu0 0
        %1380 = vmatprep.subr.bf16.mxu0 0
        %1381 = vmatpush1.bf16.msra.mxu0 0
        %1382 = vmatprep.subr.bf16.mxu0 0
        %1383 = vmatpush1.bf16.msra.mxu0 0
        %1384 = vmatprep.subr.bf16.mxu0 0
        %1385 = vmatpush1.bf16.msra.mxu0 0
        %1386 = vmatprep.subr.bf16.mxu0 0
        %1387 = vmatpush1.bf16.msra.mxu0 0
        %1388 = vmatprep.subr.bf16.mxu0 0
        %1389 = vmatpush1.bf16.msra.mxu0 0
        %1390 = vmatprep.mubr.bf16.mxu0 0
        %1391 = vmatmul.mubr.bf16.gmra.mrb[0].mxu0 %v1316
        %v1392 = vpop.f32.mrb[0].mxu0
        %v1393 = vadd.f32 0.0, %v1392
        %v1394 = vpop.f32.mrb[0].mxu0
        %v1395 = vpop.f32.mrb[0].mxu0
        %v1396 = vadd.f32 0.0, %v1395
        %v1397 = vpop.f32.mrb[0].mxu0
        %1398 = vdwg.mxu0
        %v1399 = vmax.f32 %v1393, 1e-30
        %v1400 = vmax.f32 %v1396, 1e-30
        %v1401 = vrcp.pop %v1399
        %v1402 = vmul.f32 %v1352, %v1401
        %v1403 = vrcp.pop %v1400
        %v1404 = vmul.f32 %v1355, %v1403
        %v1405 = vpack.c.bf16 %v1404, %v1402
        %s1406 = scalar_lea.vmem %s634, 48
        %v1407 = vld [vmem:[%s1406] sm:$0xf]
        %v1408 = vld [vmem:[%s1406 + $0x4] sm:$0xf]
        %v1409 = vld [vmem:[%s1406 + $0x8] sm:$0xf]
        %v1410 = vld [vmem:[%s1406 + $0xc] sm:$0xf]
        %s1411 = scalar_lea.vmem %s639, 3
        %v1412 = vld [vmem:[%s1411] sm:$0x1]
        %v1414 = vlaneseq
        %v1415 = vshrl.u32 %v1414, 7
        %v1416 = vsub.s32 0, %v1415
        %v1417 = vrot.slane %v1412, %v1416
        %v1423 = vunpack.c.l.b16 %v1407
        %v1424 = vunpack.c.l.b16 %v1408
        %v1425 = vunpack.c.l.b16 %v1409
        %v1426 = vunpack.c.l.b16 %v1410
        %v1427 = vpack.c.b16 %v1424, %v1423
        %v1428 = vpack.c.b16 %v1426, %v1425
        %v1432 = vsel %vm744, %v1405, 0
        %1434 = vmatprep.subr.bf16.mxu0 0
        %1435 = vmatpush1.bf16.msra.mxu0 %v1427
        %1436 = vmatprep.subr.bf16.mxu0 0
        %1437 = vmatpush1.bf16.msra.mxu0 %v1428
        %1438 = vmatprep.subr.bf16.mxu0 0
        %1439 = vmatpush1.bf16.msra.mxu0 0
        %1440 = vmatprep.subr.bf16.mxu0 0
        %1441 = vmatpush1.bf16.msra.mxu0 0
        %1442 = vmatprep.subr.bf16.mxu0 0
        %1443 = vmatpush1.bf16.msra.mxu0 0
        %1444 = vmatprep.subr.bf16.mxu0 0
        %1445 = vmatpush1.bf16.msra.mxu0 0
        %1446 = vmatprep.subr.bf16.mxu0 0
        %1447 = vmatpush1.bf16.msra.mxu0 0
        %1448 = vmatprep.subr.bf16.mxu0 0
        %1449 = vmatpush1.bf16.msra.mxu0 0
        %1450 = vmatprep.subr.bf16.mxu0 0
        %1451 = vmatpush1.bf16.msra.mxu0 0
        %1452 = vmatprep.subr.bf16.mxu0 0
        %1453 = vmatpush1.bf16.msra.mxu0 0
        %1454 = vmatprep.subr.bf16.mxu0 0
        %1455 = vmatpush1.bf16.msra.mxu0 0
        %1456 = vmatprep.subr.bf16.mxu0 0
        %1457 = vmatpush1.bf16.msra.mxu0 0
        %1458 = vmatprep.subr.bf16.mxu0 0
        %1459 = vmatpush1.bf16.msra.mxu0 0
        %1460 = vmatprep.subr.bf16.mxu0 0
        %1461 = vmatpush1.bf16.msra.mxu0 0
        %1462 = vmatprep.subr.bf16.mxu0 0
        %1463 = vmatpush1.bf16.msra.mxu0 0
        %1464 = vmatprep.subr.bf16.mxu0 0
        %1465 = vmatpush1.bf16.msra.mxu0 0
        %1466 = vmatprep.mubr.bf16.mxu0 0
        %1467 = vmatmul.mubr.bf16.gmra.mrb[0].mxu0 %v1432
        %v1468 = vpop.f32.mrb[0].mxu0
        %v1469 = vadd.f32 %v1417, %v1468
        %v1470 = vpop.f32.mrb[0].mxu0
        %v1471 = vpop.f32.mrb[0].mxu0
        %v1472 = vadd.f32 %v1417, %v1471
        %v1473 = vpop.f32.mrb[0].mxu0
        %1474 = vdwg.mxu0
        %v1475 = vadd.f32 %v718, %v1469
        %v1476 = vadd.f32 %v719, %v1472
        %v1477 = vsel %vm744, %v1475, 0.0
        %1478 = vadd.xlane.f32.xlu0 %v1477
        %v1479 = vpop.xlane.xlu0 %1478
        %v1480 = vsel %vm744, %v1476, 0.0
        %1481 = vadd.xlane.f32.xlu0 %v1480
        %v1482 = vpop.xlane.xlu0 %1481
        %v1483 = vrcp.pop 32.0
        %v1484 = vmul.f32 %v1479, %v1483
        %v1485 = vmul.f32 %v1482, %v1483
        %v1486 = vsub.f32 %v1475, %v1484
        %v1487 = vsub.f32 %v1476, %v1485
        %v1488 = vmul.f32 %v1486, %v1486
        %v1489 = vmul.f32 %v1487, %v1487
        %v1490 = vsel %vm744, %v1488, 0.0
        %1491 = vadd.xlane.f32.xlu0 %v1490
        %v1492 = vpop.xlane.xlu0 %1491
        %v1493 = vsel %vm744, %v1489, 0.0
        %1494 = vadd.xlane.f32.xlu0 %v1493
        %v1495 = vpop.xlane.xlu0 %1494
        %v1496 = vmul.f32 %v1492, %v1483
        %v1497 = vmul.f32 %v1495, %v1483
        %v1498 = vadd.f32 %v1496, 1e-05
        %v1499 = vadd.f32 %v1497, 1e-05
        %v1500 = vrsqrt.pop %v1498
        %v1501 = vrsqrt.pop %v1499
        %v1502 = vmul.f32 %v1486, %v1500
        %v1503 = vmul.f32 %v1487, %v1501
        %v1504 = vld [vmem:[%s661] sm:$0x1]
        %v1506 = vlaneseq
        %v1507 = vshrl.u32 %v1506, 7
        %v1508 = vsub.s32 0, %v1507
        %v1509 = vrot.slane %v1504, %v1508
        %v1511 = vmul.f32 %v1502, %v1509
        %v1512 = vmul.f32 %v1503, %v1509
        %v1513 = vld [vmem:[%s666] sm:$0x1]
        %v1515 = vlaneseq
        %v1516 = vshrl.u32 %v1515, 7
        %v1517 = vsub.s32 0, %v1516
        %v1518 = vrot.slane %v1513, %v1517
        %v1520 = vadd.f32 %v1511, %v1518
        %v1521 = vadd.f32 %v1512, %v1518
        %v1522 = vpack.c.bf16 %v1521, %v1520
        %s1523 = scalar_lea.vmem %s634, 64
        %v1524 = vld [vmem:[%s1523] sm:$0xf]
        %v1525 = vld [vmem:[%s1523 + $0x4] sm:$0xf]
        %v1526 = vld [vmem:[%s1523 + $0x8] sm:$0xf]
        %v1527 = vld [vmem:[%s1523 + $0xc] sm:$0xf]
        %s1528 = scalar_lea.vmem %s639, 4
        %v1529 = vld [vmem:[%s1528] sm:$0x1]
        %v1531 = vlaneseq
        %v1532 = vshrl.u32 %v1531, 7
        %v1533 = vsub.s32 0, %v1532
        %v1534 = vrot.slane %v1529, %v1533
        %v1540 = vunpack.c.l.b16 %v1524
        %v1541 = vunpack.c.l.b16 %v1525
        %v1542 = vunpack.c.l.b16 %v1526
        %v1543 = vunpack.c.l.b16 %v1527
        %v1544 = vpack.c.b16 %v1541, %v1540
        %v1545 = vpack.c.b16 %v1543, %v1542
        %v1549 = vsel %vm744, %v1522, 0
        %1551 = vmatprep.subr.bf16.mxu0 0
        %1552 = vmatpush1.bf16.msra.mxu0 %v1544
        %1553 = vmatprep.subr.bf16.mxu0 0
        %1554 = vmatpush1.bf16.msra.mxu0 %v1545
        %1555 = vmatprep.subr.bf16.mxu0 0
        %1556 = vmatpush1.bf16.msra.mxu0 0
        %1557 = vmatprep.subr.bf16.mxu0 0
        %1558 = vmatpush1.bf16.msra.mxu0 0
        %1559 = vmatprep.subr.bf16.mxu0 0
        %1560 = vmatpush1.bf16.msra.mxu0 0
        %1561 = vmatprep.subr.bf16.mxu0 0
        %1562 = vmatpush1.bf16.msra.mxu0 0
        %1563 = vmatprep.subr.bf16.mxu0 0
        %1564 = vmatpush1.bf16.msra.mxu0 0
        %1565 = vmatprep.subr.bf16.mxu0 0
        %1566 = vmatpush1.bf16.msra.mxu0 0
        %1567 = vmatprep.subr.bf16.mxu0 0
        %1568 = vmatpush1.bf16.msra.mxu0 0
        %1569 = vmatprep.subr.bf16.mxu0 0
        %1570 = vmatpush1.bf16.msra.mxu0 0
        %1571 = vmatprep.subr.bf16.mxu0 0
        %1572 = vmatpush1.bf16.msra.mxu0 0
        %1573 = vmatprep.subr.bf16.mxu0 0
        %1574 = vmatpush1.bf16.msra.mxu0 0
        %1575 = vmatprep.subr.bf16.mxu0 0
        %1576 = vmatpush1.bf16.msra.mxu0 0
        %1577 = vmatprep.subr.bf16.mxu0 0
        %1578 = vmatpush1.bf16.msra.mxu0 0
        %1579 = vmatprep.subr.bf16.mxu0 0
        %1580 = vmatpush1.bf16.msra.mxu0 0
        %1581 = vmatprep.subr.bf16.mxu0 0
        %1582 = vmatpush1.bf16.msra.mxu0 0
        %1583 = vmatprep.mubr.bf16.mxu0 0
        %1584 = vmatmul.mubr.bf16.gmra.mrb[0].mxu0 %v1549
        %v1585 = vpop.f32.mrb[0].mxu0
        %v1586 = vadd.f32 %v1534, %v1585
        %v1587 = vpop.f32.mrb[0].mxu0
        %v1588 = vpop.f32.mrb[0].mxu0
        %v1589 = vadd.f32 %v1534, %v1588
        %v1590 = vpop.f32.mrb[0].mxu0
        %1591 = vdwg.mxu0
        %s1592 = scalar_lea.vmem %s634, 80
        %v1593 = vld [vmem:[%s1592] sm:$0xf]
        %v1594 = vld [vmem:[%s1592 + $0x4] sm:$0xf]
        %v1595 = vld [vmem:[%s1592 + $0x8] sm:$0xf]
        %v1596 = vld [vmem:[%s1592 + $0xc] sm:$0xf]
        %s1597 = scalar_lea.vmem %s639, 5
        %v1598 = vld [vmem:[%s1597] sm:$0x1]
        %v1600 = vlaneseq
        %v1601 = vshrl.u32 %v1600, 7
        %v1602 = vsub.s32 0, %v1601
        %v1603 = vrot.slane %v1598, %v1602
        %v1609 = vunpack.c.l.b16 %v1593
        %v1610 = vunpack.c.l.b16 %v1594
        %v1611 = vunpack.c.l.b16 %v1595
        %v1612 = vunpack.c.l.b16 %v1596
        %v1613 = vpack.c.b16 %v1610, %v1609
        %v1614 = vpack.c.b16 %v1612, %v1611
        %1617 = vmatprep.subr.bf16.mxu0 0
        %1618 = vmatpush1.bf16.msra.mxu0 %v1613
        %1619 = vmatprep.subr.bf16.mxu0 0
        %1620 = vmatpush1.bf16.msra.mxu0 %v1614
        %1621 = vmatprep.subr.bf16.mxu0 0
        %1622 = vmatpush1.bf16.msra.mxu0 0
        %1623 = vmatprep.subr.bf16.mxu0 0
        %1624 = vmatpush1.bf16.msra.mxu0 0
        %1625 = vmatprep.subr.bf16.mxu0 0
        %1626 = vmatpush1.bf16.msra.mxu0 0
        %1627 = vmatprep.subr.bf16.mxu0 0
        %1628 = vmatpush1.bf16.msra.mxu0 0
        %1629 = vmatprep.subr.bf16.mxu0 0
        %1630 = vmatpush1.bf16.msra.mxu0 0
        %1631 = vmatprep.subr.bf16.mxu0 0
        %1632 = vmatpush1.bf16.msra.mxu0 0
        %1633 = vmatprep.subr.bf16.mxu0 0
        %1634 = vmatpush1.bf16.msra.mxu0 0
        %1635 = vmatprep.subr.bf16.mxu0 0
        %1636 = vmatpush1.bf16.msra.mxu0 0
        %1637 = vmatprep.subr.bf16.mxu0 0
        %1638 = vmatpush1.bf16.msra.mxu0 0
        %1639 = vmatprep.subr.bf16.mxu0 0
        %1640 = vmatpush1.bf16.msra.mxu0 0
        %1641 = vmatprep.subr.bf16.mxu0 0
        %1642 = vmatpush1.bf16.msra.mxu0 0
        %1643 = vmatprep.subr.bf16.mxu0 0
        %1644 = vmatpush1.bf16.msra.mxu0 0
        %1645 = vmatprep.subr.bf16.mxu0 0
        %1646 = vmatpush1.bf16.msra.mxu0 0
        %1647 = vmatprep.subr.bf16.mxu0 0
        %1648 = vmatpush1.bf16.msra.mxu0 0
        %1649 = vmatprep.mubr.bf16.mxu0 0
        %1650 = vmatmul.mubr.bf16.gmra.mrb[0].mxu0 %v746
        %v1651 = vpop.f32.mrb[0].mxu0
        %v1652 = vadd.f32 %v1603, %v1651
        %v1653 = vpop.f32.mrb[0].mxu0
        %v1654 = vpop.f32.mrb[0].mxu0
        %v1655 = vadd.f32 %v1603, %v1654
        %v1656 = vpop.f32.mrb[0].mxu0
        %1657 = vdwg.mxu0
        %s1658 = scalar_lea.vmem %s634, 96
        %v1659 = vld [vmem:[%s1658] sm:$0xf]
        %v1660 = vld [vmem:[%s1658 + $0x4] sm:$0xf]
        %v1661 = vld [vmem:[%s1658 + $0x8] sm:$0xf]
        %v1662 = vld [vmem:[%s1658 + $0xc] sm:$0xf]
        %s1663 = scalar_lea.vmem %s639, 6
        %v1664 = vld [vmem:[%s1663] sm:$0x1]
        %v1666 = vlaneseq
        %v1667 = vshrl.u32 %v1666, 7
        %v1668 = vsub.s32 0, %v1667
        %v1669 = vrot.slane %v1664, %v1668
        %v1675 = vunpack.c.l.b16 %v1659
        %v1676 = vunpack.c.l.b16 %v1660
        %v1677 = vunpack.c.l.b16 %v1661
        %v1678 = vunpack.c.l.b16 %v1662
        %v1679 = vpack.c.b16 %v1676, %v1675
        %v1680 = vpack.c.b16 %v1678, %v1677
        %1683 = vmatprep.subr.bf16.mxu0 0
        %1684 = vmatpush1.bf16.msra.mxu0 %v1679
        %1685 = vmatprep.subr.bf16.mxu0 0
        %1686 = vmatpush1.bf16.msra.mxu0 %v1680
        %1687 = vmatprep.subr.bf16.mxu0 0
        %1688 = vmatpush1.bf16.msra.mxu0 0
        %1689 = vmatprep.subr.bf16.mxu0 0
        %1690 = vmatpush1.bf16.msra.mxu0 0
        %1691 = vmatprep.subr.bf16.mxu0 0
        %1692 = vmatpush1.bf16.msra.mxu0 0
        %1693 = vmatprep.subr.bf16.mxu0 0
        %1694 = vmatpush1.bf16.msra.mxu0 0
        %1695 = vmatprep.subr.bf16.mxu0 0
        %1696 = vmatpush1.bf16.msra.mxu0 0
        %1697 = vmatprep.subr.bf16.mxu0 0
        %1698 = vmatpush1.bf16.msra.mxu0 0
        %1699 = vmatprep.subr.bf16.mxu0 0
        %1700 = vmatpush1.bf16.msra.mxu0 0
        %1701 = vmatprep.subr.bf16.mxu0 0
        %1702 = vmatpush1.bf16.msra.mxu0 0
        %1703 = vmatprep.subr.bf16.mxu0 0
        %1704 = vmatpush1.bf16.msra.mxu0 0
        %1705 = vmatprep.subr.bf16.mxu0 0
        %1706 = vmatpush1.bf16.msra.mxu0 0
        %1707 = vmatprep.subr.bf16.mxu0 0
        %1708 = vmatpush1.bf16.msra.mxu0 0
        %1709 = vmatprep.subr.bf16.mxu0 0
        %1710 = vmatpush1.bf16.msra.mxu0 0
        %1711 = vmatprep.subr.bf16.mxu0 0
        %1712 = vmatpush1.bf16.msra.mxu0 0
        %1713 = vmatprep.subr.bf16.mxu0 0
        %1714 = vmatpush1.bf16.msra.mxu0 0
        %1715 = vmatprep.mubr.bf16.mxu0 0
        %1716 = vmatmul.mubr.bf16.gmra.mrb[0].mxu0 %v746
        %v1717 = vpop.f32.mrb[0].mxu0
        %v1718 = vadd.f32 %v1669, %v1717
        %v1719 = vpop.f32.mrb[0].mxu0
        %v1720 = vpop.f32.mrb[0].mxu0
        %v1721 = vadd.f32 %v1669, %v1720
        %v1722 = vpop.f32.mrb[0].mxu0
        %1723 = vdwg.mxu0
        %1724 = vxpose.xlu0.b32.start [1/16] %v1652, 128
        %1725 = vxpose.xlu0.b32.cont [2/16] %v1655, 128
        %1726 = vxpose.xlu0.b32.cont [3/16] 0.0, 128
        %1727 = vxpose.xlu0.b32.cont [4/16] 0.0, 128
        %1728 = vxpose.xlu0.b32.cont [5/16] 0.0, 128
        %1729 = vxpose.xlu0.b32.cont [6/16] 0.0, 128
        %1730 = vxpose.xlu0.b32.cont [7/16] 0.0, 128
        %1731 = vxpose.xlu0.b32.cont [8/16] 0.0, 128
        %1732 = vxpose.xlu0.b32.cont [9/16] 0.0, 128
        %1733 = vxpose.xlu0.b32.cont [10/16] 0.0, 128
        %1734 = vxpose.xlu0.b32.cont [11/16] 0.0, 128
        %1735 = vxpose.xlu0.b32.cont [12/16] 0.0, 128
        %1736 = vxpose.xlu0.b32.cont [13/16] 0.0, 128
        %1737 = vxpose.xlu0.b32.cont [14/16] 0.0, 128
        %1738 = vxpose.xlu0.b32.cont [15/16] 0.0, 128
        %1739 = vxpose.xlu0.b32.end [16/16] 0.0, 128
        %v1740 = vpop.trf.xlu0
        %v1741 = vpop.trf.xlu0
        %v1742 = vpop.trf.xlu0
        %v1743 = vpop.trf.xlu0
        %v1744 = vpop.trf.xlu0
        %v1745 = vpop.trf.xlu0
        %v1746 = vpop.trf.xlu0
        %v1747 = vpop.trf.xlu0
        %v1748 = vpop.trf.xlu0
        %v1749 = vpop.trf.xlu0
        %v1750 = vpop.trf.xlu0
        %v1751 = vpop.trf.xlu0
        %v1752 = vpop.trf.xlu0
        %v1753 = vpop.trf.xlu0
        %v1754 = vpop.trf.xlu0
        %v1755 = vpop.trf.xlu0
        %v1756 = vpack.c.bf16 %v1741, %v1740
        %v1757 = vpack.c.bf16 %v1743, %v1742
        %v1759 = vsel %vm961, %v1756, 0
        %v1762 = vsel %vm961, %v1757, 0
        %1764 = vmatprep.subr.bf16.mxu0 0
        %1765 = vmatpush1.bf16.msra.mxu0 %v959
        %1766 = vmatprep.subr.bf16.mxu0 0
        %1767 = vmatpush1.bf16.msra.mxu0 0
        %1768 = vmatprep.subr.bf16.mxu0 0
        %1769 = vmatpush1.bf16.msra.mxu0 0
        %1770 = vmatprep.subr.bf16.mxu0 0
        %1771 = vmatpush1.bf16.msra.mxu0 0
        %1772 = vmatprep.subr.bf16.mxu0 0
        %1773 = vmatpush1.bf16.msra.mxu0 0
        %1774 = vmatprep.subr.bf16.mxu0 0
        %1775 = vmatpush1.bf16.msra.mxu0 0
        %1776 = vmatprep.subr.bf16.mxu0 0
        %1777 = vmatpush1.bf16.msra.mxu0 0
        %1778 = vmatprep.subr.bf16.mxu0 0
        %1779 = vmatpush1.bf16.msra.mxu0 0
        %1780 = vmatprep.subr.bf16.mxu0 0
        %1781 = vmatpush1.bf16.msra.mxu0 0
        %1782 = vmatprep.subr.bf16.mxu0 0
        %1783 = vmatpush1.bf16.msra.mxu0 0
        %1784 = vmatprep.subr.bf16.mxu0 0
        %1785 = vmatpush1.bf16.msra.mxu0 0
        %1786 = vmatprep.subr.bf16.mxu0 0
        %1787 = vmatpush1.bf16.msra.mxu0 0
        %1788 = vmatprep.subr.bf16.mxu0 0
        %1789 = vmatpush1.bf16.msra.mxu0 0
        %1790 = vmatprep.subr.bf16.mxu0 0
        %1791 = vmatpush1.bf16.msra.mxu0 0
        %1792 = vmatprep.subr.bf16.mxu0 0
        %1793 = vmatpush1.bf16.msra.mxu0 0
        %1794 = vmatprep.subr.bf16.mxu0 0
        %1795 = vmatpush1.bf16.msra.mxu0 0
        %1796 = vmatprep.mubr.bf16.mxu0 0
        %1797 = vmatmul.mubr.bf16.gmra.mrb[0].mxu0 %v1759
        %v1798 = vpop.f32.mrb[0].mxu0
        %v1799 = vadd.f32 0.0, %v1798
        %v1800 = vpop.f32.mrb[0].mxu0
        %v1801 = vpop.f32.mrb[0].mxu0
        %v1802 = vadd.f32 0.0, %v1801
        %v1803 = vpop.f32.mrb[0].mxu0
        %1804 = vmatprep.mubr.bf16.mxu0 0
        %1805 = vmatmul.mubr.bf16.gmra.mrb[0].mxu0 %v1762
        %v1806 = vpop.f32.mrb[0].mxu0
        %v1807 = vadd.f32 0.0, %v1806
        %v1808 = vpop.f32.mrb[0].mxu0
        %v1809 = vpop.f32.mrb[0].mxu0
        %v1810 = vadd.f32 0.0, %v1809
        %v1811 = vpop.f32.mrb[0].mxu0
        %1812 = vdwg.mxu0
        %v1813 = vpack.c.bf16 %v1802, %v1799
        %v1814 = vpack.c.bf16 %v1810, %v1807
        %v1815 = vmul.bf16 %v1813, %v1027
        %v1816 = vmul.bf16 %v1814, %v1028
        %v1817 = vpack.c.bf16 %v1721, %v1718
        %1818 = vmatprep.subr.bf16.mxu0 0
        %1819 = vmatpush1.bf16.msra.mxu0 %v1817
        %1820 = vmatprep.subr.bf16.mxu0 0
        %1821 = vmatpush1.bf16.msra.mxu0 0
        %1822 = vmatprep.subr.bf16.mxu0 0
        %1823 = vmatpush1.bf16.msra.mxu0 0
        %1824 = vmatprep.subr.bf16.mxu0 0
        %1825 = vmatpush1.bf16.msra.mxu0 0
        %1826 = vmatprep.subr.bf16.mxu0 0
        %1827 = vmatpush1.bf16.msra.mxu0 0
        %1828 = vmatprep.subr.bf16.mxu0 0
        %1829 = vmatpush1.bf16.msra.mxu0 0
        %1830 = vmatprep.subr.bf16.mxu0 0
        %1831 = vmatpush1.bf16.msra.mxu0 0
        %1832 = vmatprep.subr.bf16.mxu0 0
        %1833 = vmatpush1.bf16.msra.mxu0 0
        %1834 = vmatprep.subr.bf16.mxu0 0
        %1835 = vmatpush1.bf16.msra.mxu0 0
        %1836 = vmatprep.subr.bf16.mxu0 0
        %1837 = vmatpush1.bf16.msra.mxu0 0
        %1838 = vmatprep.subr.bf16.mxu0 0
        %1839 = vmatpush1.bf16.msra.mxu0 0
        %1840 = vmatprep.subr.bf16.mxu0 0
        %1841 = vmatpush1.bf16.msra.mxu0 0
        %1842 = vmatprep.subr.bf16.mxu0 0
        %1843 = vmatpush1.bf16.msra.mxu0 0
        %1844 = vmatprep.subr.bf16.mxu0 0
        %1845 = vmatpush1.bf16.msra.mxu0 0
        %1846 = vmatprep.subr.bf16.mxu0 0
        %1847 = vmatpush1.bf16.msra.mxu0 0
        %1848 = vmatprep.subr.bf16.mxu0 0
        %1849 = vmatpush1.bf16.msra.mxu0 0
        %1850 = vmatprep.mubr.bf16.mxu0 0
        %1851 = vmatmul.mubr.bf16.gmra.mrb[0].mxu0 %v1075
        %v1852 = vpop.f32.mrb[0].mxu0
        %v1853 = vadd.f32 0.0, %v1852
        %v1854 = vpop.f32.mrb[0].mxu0
        %v1855 = vpop.f32.mrb[0].mxu0
        %v1856 = vadd.f32 0.0, %v1855
        %v1857 = vpop.f32.mrb[0].mxu0
        %1858 = vmatprep.mubr.bf16.mxu0 0
        %1859 = vmatmul.mubr.bf16.gmra.mrb[0].mxu0 %v1078
        %v1860 = vpop.f32.mrb[0].mxu0
        %v1861 = vadd.f32 0.0, %v1860
        %v1862 = vpop.f32.mrb[0].mxu0
        %v1863 = vpop.f32.mrb[0].mxu0
        %v1864 = vadd.f32 0.0, %v1863
        %v1865 = vpop.f32.mrb[0].mxu0
        %1866 = vmatprep.mubr.bf16.mxu0 0
        %1867 = vmatmul.mubr.bf16.gmra.mrb[0].mxu0 %v1081
        %v1868 = vpop.f32.mrb[0].mxu0
        %v1869 = vadd.f32 0.0, %v1868
        %v1870 = vpop.f32.mrb[0].mxu0
        %v1871 = vpop.f32.mrb[0].mxu0
        %v1872 = vadd.f32 0.0, %v1871
        %v1873 = vpop.f32.mrb[0].mxu0
        %1874 = vmatprep.mubr.bf16.mxu0 0
        %1875 = vmatmul.mubr.bf16.gmra.mrb[0].mxu0 %v1084
        %v1876 = vpop.f32.mrb[0].mxu0
        %v1877 = vadd.f32 0.0, %v1876
        %v1878 = vpop.f32.mrb[0].mxu0
        %v1879 = vpop.f32.mrb[0].mxu0
        %v1880 = vadd.f32 0.0, %v1879
        %v1881 = vpop.f32.mrb[0].mxu0
        %1882 = vmatprep.mubr.bf16.mxu0 0
        %1883 = vmatmul.mubr.bf16.gmra.mrb[0].mxu0 %v1087
        %v1884 = vpop.f32.mrb[0].mxu0
        %v1885 = vadd.f32 0.0, %v1884
        %v1886 = vpop.f32.mrb[0].mxu0
        %v1887 = vpop.f32.mrb[0].mxu0
        %v1888 = vadd.f32 0.0, %v1887
        %v1889 = vpop.f32.mrb[0].mxu0
        %1890 = vmatprep.mubr.bf16.mxu0 0
        %1891 = vmatmul.mubr.bf16.gmra.mrb[0].mxu0 %v1090
        %v1892 = vpop.f32.mrb[0].mxu0
        %v1893 = vadd.f32 0.0, %v1892
        %v1894 = vpop.f32.mrb[0].mxu0
        %v1895 = vpop.f32.mrb[0].mxu0
        %v1896 = vadd.f32 0.0, %v1895
        %v1897 = vpop.f32.mrb[0].mxu0
        %1898 = vmatprep.mubr.bf16.mxu0 0
        %1899 = vmatmul.mubr.bf16.gmra.mrb[0].mxu0 %v1093
        %v1900 = vpop.f32.mrb[0].mxu0
        %v1901 = vadd.f32 0.0, %v1900
        %v1902 = vpop.f32.mrb[0].mxu0
        %v1903 = vpop.f32.mrb[0].mxu0
        %v1904 = vadd.f32 0.0, %v1903
        %v1905 = vpop.f32.mrb[0].mxu0
        %1906 = vmatprep.mubr.bf16.mxu0 0
        %1907 = vmatmul.mubr.bf16.gmra.mrb[0].mxu0 %v1096
        %v1908 = vpop.f32.mrb[0].mxu0
        %v1909 = vadd.f32 0.0, %v1908
        %v1910 = vpop.f32.mrb[0].mxu0
        %v1911 = vpop.f32.mrb[0].mxu0
        %v1912 = vadd.f32 0.0, %v1911
        %v1913 = vpop.f32.mrb[0].mxu0
        %1914 = vdwg.mxu0
        %v1915 = vpack.c.bf16 %v1856, %v1853
        %v1916 = vpack.c.bf16 %v1864, %v1861
        %v1917 = vpack.c.bf16 %v1872, %v1869
        %v1918 = vpack.c.bf16 %v1880, %v1877
        %v1919 = vpack.c.bf16 %v1888, %v1885
        %v1920 = vpack.c.bf16 %v1896, %v1893
        %v1921 = vpack.c.bf16 %v1904, %v1901
        %v1922 = vpack.c.bf16 %v1912, %v1909
        %v1923 = vmul.bf16 %v1915, %v1235
        %v1924 = vmul.bf16 %v1916, %v1236
        %v1925 = vmul.bf16 %v1917, %v1237
        %v1926 = vmul.bf16 %v1918, %v1238
        %v1927 = vmul.bf16 %v1919, %v1239
        %v1928 = vmul.bf16 %v1920, %v1240
        %v1929 = vmul.bf16 %v1921, %v1241
        %v1930 = vmul.bf16 %v1922, %v1242
        %v1931 = vmul.f32 %v1586, 0.5
        %v1932 = vmul.f32 %v1589, 0.5
        %v1933 = vpack.c.bf16 %v1932, %v1931
        %v1935 = vsel %vm744, %v1933, 0
        %1937 = vmatprep.subr.bf16.mxu0 0
        %1938 = vmatpush1.bf16.msra.mxu0 %v1815
        %1939 = vmatprep.subr.bf16.mxu0 0
        %1940 = vmatpush1.bf16.msra.mxu0 %v1816
        %1941 = vmatprep.subr.bf16.mxu0 0
        %1942 = vmatpush1.bf16.msra.mxu0 0
        %1943 = vmatprep.subr.bf16.mxu0 0
        %1944 = vmatpush1.bf16.msra.mxu0 0
        %1945 = vmatprep.subr.bf16.mxu0 0
        %1946 = vmatpush1.bf16.msra.mxu0 0
        %1947 = vmatprep.subr.bf16.mxu0 0
        %1948 = vmatpush1.bf16.msra.mxu0 0
        %1949 = vmatprep.subr.bf16.mxu0 0
        %1950 = vmatpush1.bf16.msra.mxu0 0
        %1951 = vmatprep.subr.bf16.mxu0 0
        %1952 = vmatpush1.bf16.msra.mxu0 0
        %1953 = vmatprep.subr.bf16.mxu0 0
        %1954 = vmatpush1.bf16.msra.mxu0 0
        %1955 = vmatprep.subr.bf16.mxu0 0
        %1956 = vmatpush1.bf16.msra.mxu0 0
        %1957 = vmatprep.subr.bf16.mxu0 0
        %1958 = vmatpush1.bf16.msra.mxu0 0
        %1959 = vmatprep.subr.bf16.mxu0 0
        %1960 = vmatpush1.bf16.msra.mxu0 0
        %1961 = vmatprep.subr.bf16.mxu0 0
        %1962 = vmatpush1.bf16.msra.mxu0 0
        %1963 = vmatprep.subr.bf16.mxu0 0
        %1964 = vmatpush1.bf16.msra.mxu0 0
        %1965 = vmatprep.subr.bf16.mxu0 0
        %1966 = vmatpush1.bf16.msra.mxu0 0
        %1967 = vmatprep.subr.bf16.mxu0 0
        %1968 = vmatpush1.bf16.msra.mxu0 0
        %1969 = vmatprep.mubr.bf16.mxu0 0
        %1970 = vmatmul.mubr.bf16.gmra.mrb[0].mxu0 %v1935
        %v1971 = vpop.f32.mrb[0].mxu0
        %v1972 = vadd.f32 %v716, %v1971
        %v1973 = vpop.f32.mrb[0].mxu0
        %v1974 = vpop.f32.mrb[0].mxu0
        %v1975 = vadd.f32 %v717, %v1974
        %v1976 = vpop.f32.mrb[0].mxu0
        %1977 = vdwg.mxu0
        %1978 = vmax.xlane.f32.xlu0 %v1972
        %v1979 = vpop.xlane.xlu0 %1978
        %1980 = vmax.xlane.f32.xlu0 %v1975
        %v1981 = vpop.xlane.xlu0 %1980
        %v1982 = vsub.f32 %v1972, %v1979
        %v1983 = vsub.f32 %v1975, %v1981
        %v1984 = vmul.f32 %v1982, 1.442695
        %v1985 = vpow.pop %v1984
        %v1986 = vmul.f32 %v1983, 1.442695
        %v1987 = vpow.pop %v1986
        %v1988 = vpack.c.bf16 %v1987, %v1985
        %1989 = vmatprep.subr.bf16.mxu0 0
        %1990 = vmatpush1.bf16.msra.mxu0 %v1923
        %1991 = vmatprep.subr.bf16.mxu0 0
        %1992 = vmatpush1.bf16.msra.mxu0 %v1924
        %1993 = vmatprep.subr.bf16.mxu0 0
        %1994 = vmatpush1.bf16.msra.mxu0 %v1925
        %1995 = vmatprep.subr.bf16.mxu0 0
        %1996 = vmatpush1.bf16.msra.mxu0 %v1926
        %1997 = vmatprep.subr.bf16.mxu0 0
        %1998 = vmatpush1.bf16.msra.mxu0 %v1927
        %1999 = vmatprep.subr.bf16.mxu0 0
        %2000 = vmatpush1.bf16.msra.mxu0 %v1928
        %2001 = vmatprep.subr.bf16.mxu0 0
        %2002 = vmatpush1.bf16.msra.mxu0 %v1929
        %2003 = vmatprep.subr.bf16.mxu0 0
        %2004 = vmatpush1.bf16.msra.mxu0 %v1930
        %2005 = vmatprep.subr.bf16.mxu0 0
        %2006 = vmatpush1.bf16.msra.mxu0 0
        %2007 = vmatprep.subr.bf16.mxu0 0
        %2008 = vmatpush1.bf16.msra.mxu0 0
        %2009 = vmatprep.subr.bf16.mxu0 0
        %2010 = vmatpush1.bf16.msra.mxu0 0
        %2011 = vmatprep.subr.bf16.mxu0 0
        %2012 = vmatpush1.bf16.msra.mxu0 0
        %2013 = vmatprep.subr.bf16.mxu0 0
        %2014 = vmatpush1.bf16.msra.mxu0 0
        %2015 = vmatprep.subr.bf16.mxu0 0
        %2016 = vmatpush1.bf16.msra.mxu0 0
        %2017 = vmatprep.subr.bf16.mxu0 0
        %2018 = vmatpush1.bf16.msra.mxu0 0
        %2019 = vmatprep.subr.bf16.mxu0 0
        %2020 = vmatpush1.bf16.msra.mxu0 0
        %2021 = vmatprep.mubr.bf16.mxu0 0
        %2022 = vmatmul.mubr.bf16.gmra.mrb[0].mxu0 %v1988
        %v2023 = vpop.f32.mrb[0].mxu0
        %v2024 = vadd.f32 0.0, %v2023
        %v2025 = vpop.f32.mrb[0].mxu0
        %v2026 = vpop.f32.mrb[0].mxu0
        %v2027 = vadd.f32 0.0, %v2026
        %v2028 = vpop.f32.mrb[0].mxu0
        %2029 = vdwg.mxu0
        %2030 = vmatprep.subr.bf16.mxu0 0
        %2031 = vmatpush1.bf16.msra.mxu0 %v1235
        %2032 = vmatprep.subr.bf16.mxu0 0
        %2033 = vmatpush1.bf16.msra.mxu0 %v1236
        %2034 = vmatprep.subr.bf16.mxu0 0
        %2035 = vmatpush1.bf16.msra.mxu0 %v1237
        %2036 = vmatprep.subr.bf16.mxu0 0
        %2037 = vmatpush1.bf16.msra.mxu0 %v1238
        %2038 = vmatprep.subr.bf16.mxu0 0
        %2039 = vmatpush1.bf16.msra.mxu0 %v1239
        %2040 = vmatprep.subr.bf16.mxu0 0
        %2041 = vmatpush1.bf16.msra.mxu0 %v1240
        %2042 = vmatprep.subr.bf16.mxu0 0
        %2043 = vmatpush1.bf16.msra.mxu0 %v1241
        %2044 = vmatprep.subr.bf16.mxu0 0
        %2045 = vmatpush1.bf16.msra.mxu0 %v1242
        %2046 = vmatprep.subr.bf16.mxu0 0
        %2047 = vmatpush1.bf16.msra.mxu0 0
        %2048 = vmatprep.subr.bf16.mxu0 0
        %2049 = vmatpush1.bf16.msra.mxu0 0
        %2050 = vmatprep.subr.bf16.mxu0 0
        %2051 = vmatpush1.bf16.msra.mxu0 0
        %2052 = vmatprep.subr.bf16.mxu0 0
        %2053 = vmatpush1.bf16.msra.mxu0 0
        %2054 = vmatprep.subr.bf16.mxu0 0
        %2055 = vmatpush1.bf16.msra.mxu0 0
        %2056 = vmatprep.subr.bf16.mxu0 0
        %2057 = vmatpush1.bf16.msra.mxu0 0
        %2058 = vmatprep.subr.bf16.mxu0 0
        %2059 = vmatpush1.bf16.msra.mxu0 0
        %2060 = vmatprep.subr.bf16.mxu0 0
        %2061 = vmatpush1.bf16.msra.mxu0 0
        %2062 = vmatprep.mubr.bf16.mxu0 0
        %2063 = vmatmul.mubr.bf16.gmra.mrb[0].mxu0 %v1988
        %v2064 = vpop.f32.mrb[0].mxu0
        %v2065 = vadd.f32 0.0, %v2064
        %v2066 = vpop.f32.mrb[0].mxu0
        %v2067 = vpop.f32.mrb[0].mxu0
        %v2068 = vadd.f32 0.0, %v2067
        %v2069 = vpop.f32.mrb[0].mxu0
        %2070 = vdwg.mxu0
        %v2071 = vmax.f32 %v2065, 1e-30
        %v2072 = vmax.f32 %v2068, 1e-30
        %v2073 = vrcp.pop %v2071
        %v2074 = vmul.f32 %v2024, %v2073
        %v2075 = vrcp.pop %v2072
        %v2076 = vmul.f32 %v2027, %v2075
        %v2077 = vpack.c.bf16 %v2076, %v2074
        %s2078 = scalar_lea.vmem %s634, 112
        %v2079 = vld [vmem:[%s2078] sm:$0xf]
        %v2080 = vld [vmem:[%s2078 + $0x4] sm:$0xf]
        %v2081 = vld [vmem:[%s2078 + $0x8] sm:$0xf]
        %v2082 = vld [vmem:[%s2078 + $0xc] sm:$0xf]
        %s2083 = scalar_lea.vmem %s639, 7
        %v2084 = vld [vmem:[%s2083] sm:$0x1]
        %v2086 = vlaneseq
        %v2087 = vshrl.u32 %v2086, 7
        %v2088 = vsub.s32 0, %v2087
        %v2089 = vrot.slane %v2084, %v2088
        %v2095 = vunpack.c.l.b16 %v2079
        %v2096 = vunpack.c.l.b16 %v2080
        %v2097 = vunpack.c.l.b16 %v2081
        %v2098 = vunpack.c.l.b16 %v2082
        %v2099 = vpack.c.b16 %v2096, %v2095
        %v2100 = vpack.c.b16 %v2098, %v2097
        %v2104 = vsel %vm744, %v2077, 0
        %2106 = vmatprep.subr.bf16.mxu0 0
        %2107 = vmatpush1.bf16.msra.mxu0 %v2099
        %2108 = vmatprep.subr.bf16.mxu0 0
        %2109 = vmatpush1.bf16.msra.mxu0 %v2100
        %2110 = vmatprep.subr.bf16.mxu0 0
        %2111 = vmatpush1.bf16.msra.mxu0 0
        %2112 = vmatprep.subr.bf16.mxu0 0
        %2113 = vmatpush1.bf16.msra.mxu0 0
        %2114 = vmatprep.subr.bf16.mxu0 0
        %2115 = vmatpush1.bf16.msra.mxu0 0
        %2116 = vmatprep.subr.bf16.mxu0 0
        %2117 = vmatpush1.bf16.msra.mxu0 0
        %2118 = vmatprep.subr.bf16.mxu0 0
        %2119 = vmatpush1.bf16.msra.mxu0 0
        %2120 = vmatprep.subr.bf16.mxu0 0
        %2121 = vmatpush1.bf16.msra.mxu0 0
        %2122 = vmatprep.subr.bf16.mxu0 0
        %2123 = vmatpush1.bf16.msra.mxu0 0
        %2124 = vmatprep.subr.bf16.mxu0 0
        %2125 = vmatpush1.bf16.msra.mxu0 0
        %2126 = vmatprep.subr.bf16.mxu0 0
        %2127 = vmatpush1.bf16.msra.mxu0 0
        %2128 = vmatprep.subr.bf16.mxu0 0
        %2129 = vmatpush1.bf16.msra.mxu0 0
        %2130 = vmatprep.subr.bf16.mxu0 0
        %2131 = vmatpush1.bf16.msra.mxu0 0
        %2132 = vmatprep.subr.bf16.mxu0 0
        %2133 = vmatpush1.bf16.msra.mxu0 0
        %2134 = vmatprep.subr.bf16.mxu0 0
        %2135 = vmatpush1.bf16.msra.mxu0 0
        %2136 = vmatprep.subr.bf16.mxu0 0
        %2137 = vmatpush1.bf16.msra.mxu0 0
        %2138 = vmatprep.mubr.bf16.mxu0 0
        %2139 = vmatmul.mubr.bf16.gmra.mrb[0].mxu0 %v2104
        %v2140 = vpop.f32.mrb[0].mxu0
        %v2141 = vadd.f32 %v2089, %v2140
        %v2142 = vpop.f32.mrb[0].mxu0
        %v2143 = vpop.f32.mrb[0].mxu0
        %v2144 = vadd.f32 %v2089, %v2143
        %v2145 = vpop.f32.mrb[0].mxu0
        %2146 = vdwg.mxu0
        %v2147 = vadd.f32 %v1520, %v2141
        %v2148 = vadd.f32 %v1521, %v2144
        %v2149 = vsel %vm744, %v2147, 0.0
        %2150 = vadd.xlane.f32.xlu0 %v2149
        %v2151 = vpop.xlane.xlu0 %2150
        %v2152 = vsel %vm744, %v2148, 0.0
        %2153 = vadd.xlane.f32.xlu0 %v2152
        %v2154 = vpop.xlane.xlu0 %2153
        %v2155 = vmul.f32 %v2151, %v1483
        %v2156 = vmul.f32 %v2154, %v1483
        %v2157 = vsub.f32 %v2147, %v2155
        %v2158 = vsub.f32 %v2148, %v2156
        %v2159 = vmul.f32 %v2157, %v2157
        %v2160 = vmul.f32 %v2158, %v2158
        %v2161 = vsel %vm744, %v2159, 0.0
        %2162 = vadd.xlane.f32.xlu0 %v2161
        %v2163 = vpop.xlane.xlu0 %2162
        %v2164 = vsel %vm744, %v2160, 0.0
        %2165 = vadd.xlane.f32.xlu0 %v2164
        %v2166 = vpop.xlane.xlu0 %2165
        %v2167 = vmul.f32 %v2163, %v1483
        %v2168 = vmul.f32 %v2166, %v1483
        %v2169 = vadd.f32 %v2167, 1e-05
        %v2170 = vadd.f32 %v2168, 1e-05
        %v2171 = vrsqrt.pop %v2169
        %v2172 = vrsqrt.pop %v2170
        %v2173 = vmul.f32 %v2157, %v2171
        %v2174 = vmul.f32 %v2158, %v2172
        %s2175 = scalar_lea.vmem %s661, 1
        %v2176 = vld [vmem:[%s2175] sm:$0x1]
        %v2178 = vlaneseq
        %v2179 = vshrl.u32 %v2178, 7
        %v2180 = vsub.s32 0, %v2179
        %v2181 = vrot.slane %v2176, %v2180
        %v2183 = vmul.f32 %v2173, %v2181
        %v2184 = vmul.f32 %v2174, %v2181
        %s2185 = scalar_lea.vmem %s666, 1
        %v2186 = vld [vmem:[%s2185] sm:$0x1]
        %v2188 = vlaneseq
        %v2189 = vshrl.u32 %v2188, 7
        %v2190 = vsub.s32 0, %v2189
        %v2191 = vrot.slane %v2186, %v2190
        %v2193 = vadd.f32 %v2183, %v2191
        %v2194 = vadd.f32 %v2184, %v2191
        %v2195 = vpack.c.bf16 %v2194, %v2193
        %v2196 = vld [vmem:[%s645] sm:$0xff]
        %v2197 = vld [vmem:[%s645 + $0x8] sm:$0xff]
        %v2198 = vld [vmem:[%s645 + $0x10] sm:$0xff]
        %v2199 = vld [vmem:[%s645 + $0x18] sm:$0xff]
        %v2200 = vld [vmem:[%s645 + $0x20] sm:$0xff]
        %v2201 = vld [vmem:[%s645 + $0x28] sm:$0xff]
        %v2202 = vld [vmem:[%s645 + $0x30] sm:$0xff]
        %v2203 = vld [vmem:[%s645 + $0x38] sm:$0xff]
        %v2204 = vld [vmem:[%s645 + $0x40] sm:$0xff]
        %v2205 = vld [vmem:[%s645 + $0x48] sm:$0xff]
        %v2206 = vld [vmem:[%s645 + $0x50] sm:$0xff]
        %v2207 = vld [vmem:[%s645 + $0x58] sm:$0xff]
        %v2208 = vld [vmem:[%s645 + $0x60] sm:$0xff]
        %v2209 = vld [vmem:[%s645 + $0x68] sm:$0xff]
        %v2210 = vld [vmem:[%s645 + $0x70] sm:$0xff]
        %v2211 = vld [vmem:[%s645 + $0x78] sm:$0xff]
        %v2212 = vld [vmem:[%s645 + $0x80] sm:$0xff]
        %v2213 = vld [vmem:[%s645 + $0x88] sm:$0xff]
        %v2214 = vld [vmem:[%s645 + $0x90] sm:$0xff]
        %v2215 = vld [vmem:[%s645 + $0x98] sm:$0xff]
        %v2216 = vld [vmem:[%s645 + $0xa0] sm:$0xff]
        %v2217 = vld [vmem:[%s645 + $0xa8] sm:$0xff]
        %v2218 = vld [vmem:[%s645 + $0xb0] sm:$0xff]
        %v2219 = vld [vmem:[%s645 + $0xb8] sm:$0xff]
        %v2220 = vld [vmem:[%s645 + $0xc0] sm:$0xff]
        %v2221 = vld [vmem:[%s645 + $0xc8] sm:$0xff]
        %v2222 = vld [vmem:[%s645 + $0xd0] sm:$0xff]
        %v2223 = vld [vmem:[%s645 + $0xd8] sm:$0xff]
        %v2224 = vld [vmem:[%s645 + $0xe0] sm:$0xff]
        %v2225 = vld [vmem:[%s645 + $0xe8] sm:$0xff]
        %v2226 = vld [vmem:[%s645 + $0xf0] sm:$0xff]
        %v2227 = vld [vmem:[%s645 + $0xf8] sm:$0xff]
        %v2260 = vunpack.c.l.b16 %v2196
        %v2261 = vunpack.c.h.b16 %v2196
        %v2262 = vunpack.c.l.b16 %v2197
        %v2263 = vunpack.c.h.b16 %v2197
        %v2264 = vunpack.c.l.b16 %v2198
        %v2265 = vunpack.c.h.b16 %v2198
        %v2266 = vunpack.c.l.b16 %v2199
        %v2267 = vunpack.c.h.b16 %v2199
        %v2268 = vunpack.c.l.b16 %v2200
        %v2269 = vunpack.c.h.b16 %v2200
        %v2270 = vunpack.c.l.b16 %v2201
        %v2271 = vunpack.c.h.b16 %v2201
        %v2272 = vunpack.c.l.b16 %v2202
        %v2273 = vunpack.c.h.b16 %v2202
        %v2274 = vunpack.c.l.b16 %v2203
        %v2275 = vunpack.c.h.b16 %v2203
        %v2276 = vunpack.c.l.b16 %v2204
        %v2277 = vunpack.c.h.b16 %v2204
        %v2278 = vunpack.c.l.b16 %v2205
        %v2279 = vunpack.c.h.b16 %v2205
        %v2280 = vunpack.c.l.b16 %v2206
        %v2281 = vunpack.c.h.b16 %v2206
        %v2282 = vunpack.c.l.b16 %v2207
        %v2283 = vunpack.c.h.b16 %v2207
        %v2284 = vunpack.c.l.b16 %v2208
        %v2285 = vunpack.c.h.b16 %v2208
        %v2286 = vunpack.c.l.b16 %v2209
        %v2287 = vunpack.c.h.b16 %v2209
        %v2288 = vunpack.c.l.b16 %v2210
        %v2289 = vunpack.c.h.b16 %v2210
        %v2290 = vunpack.c.l.b16 %v2211
        %v2291 = vunpack.c.h.b16 %v2211
        %v2292 = vunpack.c.l.b16 %v2212
        %v2293 = vunpack.c.h.b16 %v2212
        %v2294 = vunpack.c.l.b16 %v2213
        %v2295 = vunpack.c.h.b16 %v2213
        %v2296 = vunpack.c.l.b16 %v2214
        %v2297 = vunpack.c.h.b16 %v2214
        %v2298 = vunpack.c.l.b16 %v2215
        %v2299 = vunpack.c.h.b16 %v2215
        %v2300 = vunpack.c.l.b16 %v2216
        %v2301 = vunpack.c.h.b16 %v2216
        %v2302 = vunpack.c.l.b16 %v2217
        %v2303 = vunpack.c.h.b16 %v2217
        %v2304 = vunpack.c.l.b16 %v2218
        %v2305 = vunpack.c.h.b16 %v2218
        %v2306 = vunpack.c.l.b16 %v2219
        %v2307 = vunpack.c.h.b16 %v2219
        %v2308 = vunpack.c.l.b16 %v2220
        %v2309 = vunpack.c.h.b16 %v2220
        %v2310 = vunpack.c.l.b16 %v2221
        %v2311 = vunpack.c.h.b16 %v2221
        %v2312 = vunpack.c.l.b16 %v2222
        %v2313 = vunpack.c.h.b16 %v2222
        %v2314 = vunpack.c.l.b16 %v2223
        %v2315 = vunpack.c.h.b16 %v2223
        %v2316 = vunpack.c.l.b16 %v2224
        %v2317 = vunpack.c.h.b16 %v2224
        %v2318 = vunpack.c.l.b16 %v2225
        %v2319 = vunpack.c.h.b16 %v2225
        %v2320 = vunpack.c.l.b16 %v2226
        %v2321 = vunpack.c.h.b16 %v2226
        %v2322 = vunpack.c.l.b16 %v2227
        %v2323 = vunpack.c.h.b16 %v2227
        %v2324 = vpack.c.b16 %v2276, %v2260
        %v2325 = vpack.c.b16 %v2277, %v2261
        %v2326 = vpack.c.b16 %v2278, %v2262
        %v2327 = vpack.c.b16 %v2279, %v2263
        %v2328 = vpack.c.b16 %v2280, %v2264
        %v2329 = vpack.c.b16 %v2281, %v2265
        %v2330 = vpack.c.b16 %v2282, %v2266
        %v2331 = vpack.c.b16 %v2283, %v2267
        %v2332 = vpack.c.b16 %v2284, %v2268
        %v2333 = vpack.c.b16 %v2285, %v2269
        %v2334 = vpack.c.b16 %v2286, %v2270
        %v2335 = vpack.c.b16 %v2287, %v2271
        %v2336 = vpack.c.b16 %v2288, %v2272
        %v2337 = vpack.c.b16 %v2289, %v2273
        %v2338 = vpack.c.b16 %v2290, %v2274
        %v2339 = vpack.c.b16 %v2291, %v2275
        %v2340 = vpack.c.b16 %v2308, %v2292
        %v2341 = vpack.c.b16 %v2309, %v2293
        %v2342 = vpack.c.b16 %v2310, %v2294
        %v2343 = vpack.c.b16 %v2311, %v2295
        %v2344 = vpack.c.b16 %v2312, %v2296
        %v2345 = vpack.c.b16 %v2313, %v2297
        %v2346 = vpack.c.b16 %v2314, %v2298
        %v2347 = vpack.c.b16 %v2315, %v2299
        %v2348 = vpack.c.b16 %v2316, %v2300
        %v2349 = vpack.c.b16 %v2317, %v2301
        %v2350 = vpack.c.b16 %v2318, %v2302
        %v2351 = vpack.c.b16 %v2319, %v2303
        %v2352 = vpack.c.b16 %v2320, %v2304
        %v2353 = vpack.c.b16 %v2321, %v2305
        %v2354 = vpack.c.b16 %v2322, %v2306
        %v2355 = vpack.c.b16 %v2323, %v2307
        %v2389 = vsel %vm744, %v2195, 0
        %2391 = vmatprep.subr.bf16.mxu0 %v2325
        %2392 = vmatpush1.bf16.msra.mxu0 %v2324
        %2393 = vmatprep.subr.bf16.mxu0 %v2341
        %2394 = vmatpush1.bf16.msra.mxu0 %v2340
        %2395 = vmatprep.subr.bf16.mxu0 0
        %2396 = vmatpush1.bf16.msra.mxu0 0
        %2397 = vmatprep.subr.bf16.mxu0 0
        %2398 = vmatpush1.bf16.msra.mxu0 0
        %2399 = vmatprep.subr.bf16.mxu0 0
        %2400 = vmatpush1.bf16.msra.mxu0 0
        %2401 = vmatprep.subr.bf16.mxu0 0
        %2402 = vmatpush1.bf16.msra.mxu0 0
        %2403 = vmatprep.subr.bf16.mxu0 0
        %2404 = vmatpush1.bf16.msra.mxu0 0
        %2405 = vmatprep.subr.bf16.mxu0 0
        %2406 = vmatpush1.bf16.msra.mxu0 0
        %2407 = vmatprep.subr.bf16.mxu0 0
        %2408 = vmatpush1.bf16.msra.mxu0 0
        %2409 = vmatprep.subr.bf16.mxu0 0
        %2410 = vmatpush1.bf16.msra.mxu0 0
        %2411 = vmatprep.subr.bf16.mxu0 0
        %2412 = vmatpush1.bf16.msra.mxu0 0
        %2413 = vmatprep.subr.bf16.mxu0 0
        %2414 = vmatpush1.bf16.msra.mxu0 0
        %2415 = vmatprep.subr.bf16.mxu0 0
        %2416 = vmatpush1.bf16.msra.mxu0 0
        %2417 = vmatprep.subr.bf16.mxu0 0
        %2418 = vmatpush1.bf16.msra.mxu0 0
        %2419 = vmatprep.subr.bf16.mxu0 0
        %2420 = vmatpush1.bf16.msra.mxu0 0
        %2421 = vmatprep.subr.bf16.mxu0 0
        %2422 = vmatpush1.bf16.msra.mxu0 0
        %2423 = vmatprep.mubr.bf16.mxu0 0
        %2424 = vmatmul.mubr.bf16.gmra.mrb[0].mxu0 %v2389
        %v2425 = vpop.f32.mrb[0].mxu0
        %v2426 = vadd.f32 0.0, %v2425
        %v2427 = vpop.f32.mrb[0].mxu0
        %v2428 = vadd.f32 0.0, %v2427
        %v2429 = vpop.f32.mrb[0].mxu0
        %v2430 = vadd.f32 0.0, %v2429
        %v2431 = vpop.f32.mrb[0].mxu0
        %v2432 = vadd.f32 0.0, %v2431
        %2433 = vdwg.mxu0
        %2434 = vmatprep.subr.bf16.mxu0 %v2327
        %2435 = vmatpush1.bf16.msra.mxu0 %v2326
        %2436 = vmatprep.subr.bf16.mxu0 %v2343
        %2437 = vmatpush1.bf16.msra.mxu0 %v2342
        %2438 = vmatprep.subr.bf16.mxu0 0
        %2439 = vmatpush1.bf16.msra.mxu0 0
        %2440 = vmatprep.subr.bf16.mxu0 0
        %2441 = vmatpush1.bf16.msra.mxu0 0
        %2442 = vmatprep.subr.bf16.mxu0 0
        %2443 = vmatpush1.bf16.msra.mxu0 0
        %2444 = vmatprep.subr.bf16.mxu0 0
        %2445 = vmatpush1.bf16.msra.mxu0 0
        %2446 = vmatprep.subr.bf16.mxu0 0
        %2447 = vmatpush1.bf16.msra.mxu0 0
        %2448 = vmatprep.subr.bf16.mxu0 0
        %2449 = vmatpush1.bf16.msra.mxu0 0
        %2450 = vmatprep.subr.bf16.mxu0 0
        %2451 = vmatpush1.bf16.msra.mxu0 0
        %2452 = vmatprep.subr.bf16.mxu0 0
        %2453 = vmatpush1.bf16.msra.mxu0 0
        %2454 = vmatprep.subr.bf16.mxu0 0
        %2455 = vmatpush1.bf16.msra.mxu0 0
        %2456 = vmatprep.subr.bf16.mxu0 0
        %2457 = vmatpush1.bf16.msra.mxu0 0
        %2458 = vmatprep.subr.bf16.mxu0 0
        %2459 = vmatpush1.bf16.msra.mxu0 0
        %2460 = vmatprep.subr.bf16.mxu0 0
        %2461 = vmatpush1.bf16.msra.mxu0 0
        %2462 = vmatprep.subr.bf16.mxu0 0
        %2463 = vmatpush1.bf16.msra.mxu0 0
        %2464 = vmatprep.subr.bf16.mxu0 0
        %2465 = vmatpush1.bf16.msra.mxu0 0
        %2466 = vmatprep.mubr.bf16.mxu0 0
        %2467 = vmatmul.mubr.bf16.gmra.mrb[0].mxu0 %v2389
        %v2468 = vpop.f32.mrb[0].mxu0
        %v2469 = vadd.f32 0.0, %v2468
        %v2470 = vpop.f32.mrb[0].mxu0
        %v2471 = vadd.f32 0.0, %v2470
        %v2472 = vpop.f32.mrb[0].mxu0
        %v2473 = vadd.f32 0.0, %v2472
        %v2474 = vpop.f32.mrb[0].mxu0
        %v2475 = vadd.f32 0.0, %v2474
        %2476 = vdwg.mxu0
        %2477 = vmatprep.subr.bf16.mxu0 %v2329
        %2478 = vmatpush1.bf16.msra.mxu0 %v2328
        %2479 = vmatprep.subr.bf16.mxu0 %v2345
        %2480 = vmatpush1.bf16.msra.mxu0 %v2344
        %2481 = vmatprep.subr.bf16.mxu0 0
        %2482 = vmatpush1.bf16.msra.mxu0 0
        %2483 = vmatprep.subr.bf16.mxu0 0
        %2484 = vmatpush1.bf16.msra.mxu0 0
        %2485 = vmatprep.subr.bf16.mxu0 0
        %2486 = vmatpush1.bf16.msra.mxu0 0
        %2487 = vmatprep.subr.bf16.mxu0 0
        %2488 = vmatpush1.bf16.msra.mxu0 0
        %2489 = vmatprep.subr.bf16.mxu0 0
        %2490 = vmatpush1.bf16.msra.mxu0 0
        %2491 = vmatprep.subr.bf16.mxu0 0
        %2492 = vmatpush1.bf16.msra.mxu0 0
        %2493 = vmatprep.subr.bf16.mxu0 0
        %2494 = vmatpush1.bf16.msra.mxu0 0
        %2495 = vmatprep.subr.bf16.mxu0 0
        %2496 = vmatpush1.bf16.msra.mxu0 0
        %2497 = vmatprep.subr.bf16.mxu0 0
        %2498 = vmatpush1.bf16.msra.mxu0 0
        %2499 = vmatprep.subr.bf16.mxu0 0
        %2500 = vmatpush1.bf16.msra.mxu0 0
        %2501 = vmatprep.subr.bf16.mxu0 0
        %2502 = vmatpush1.bf16.msra.mxu0 0
        %2503 = vmatprep.subr.bf16.mxu0 0
        %2504 = vmatpush1.bf16.msra.mxu0 0
        %2505 = vmatprep.subr.bf16.mxu0 0
        %2506 = vmatpush1.bf16.msra.mxu0 0
        %2507 = vmatprep.subr.bf16.mxu0 0
        %2508 = vmatpush1.bf16.msra.mxu0 0
        %2509 = vmatprep.mubr.bf16.mxu0 0
        %2510 = vmatmul.mubr.bf16.gmra.mrb[0].mxu0 %v2389
        %v2511 = vpop.f32.mrb[0].mxu0
        %v2512 = vadd.f32 0.0, %v2511
        %v2513 = vpop.f32.mrb[0].mxu0
        %v2514 = vadd.f32 0.0, %v2513
        %v2515 = vpop.f32.mrb[0].mxu0
        %v2516 = vadd.f32 0.0, %v2515
        %v2517 = vpop.f32.mrb[0].mxu0
        %v2518 = vadd.f32 0.0, %v2517
        %2519 = vdwg.mxu0
        %2520 = vmatprep.subr.bf16.mxu0 %v2331
        %2521 = vmatpush1.bf16.msra.mxu0 %v2330
        %2522 = vmatprep.subr.bf16.mxu0 %v2347
        %2523 = vmatpush1.bf16.msra.mxu0 %v2346
        %2524 = vmatprep.subr.bf16.mxu0 0
        %2525 = vmatpush1.bf16.msra.mxu0 0
        %2526 = vmatprep.subr.bf16.mxu0 0
        %2527 = vmatpush1.bf16.msra.mxu0 0
        %2528 = vmatprep.subr.bf16.mxu0 0
        %2529 = vmatpush1.bf16.msra.mxu0 0
        %2530 = vmatprep.subr.bf16.mxu0 0
        %2531 = vmatpush1.bf16.msra.mxu0 0
        %2532 = vmatprep.subr.bf16.mxu0 0
        %2533 = vmatpush1.bf16.msra.mxu0 0
        %2534 = vmatprep.subr.bf16.mxu0 0
        %2535 = vmatpush1.bf16.msra.mxu0 0
        %2536 = vmatprep.subr.bf16.mxu0 0
        %2537 = vmatpush1.bf16.msra.mxu0 0
        %2538 = vmatprep.subr.bf16.mxu0 0
        %2539 = vmatpush1.bf16.msra.mxu0 0
        %2540 = vmatprep.subr.bf16.mxu0 0
        %2541 = vmatpush1.bf16.msra.mxu0 0
        %2542 = vmatprep.subr.bf16.mxu0 0
        %2543 = vmatpush1.bf16.msra.mxu0 0
        %2544 = vmatprep.subr.bf16.mxu0 0
        %2545 = vmatpush1.bf16.msra.mxu0 0
        %2546 = vmatprep.subr.bf16.mxu0 0
        %2547 = vmatpush1.bf16.msra.mxu0 0
        %2548 = vmatprep.subr.bf16.mxu0 0
        %2549 = vmatpush1.bf16.msra.mxu0 0
        %2550 = vmatprep.subr.bf16.mxu0 0
        %2551 = vmatpush1.bf16.msra.mxu0 0
        %2552 = vmatprep.mubr.bf16.mxu0 0
        %2553 = vmatmul.mubr.bf16.gmra.mrb[0].mxu0 %v2389
        %v2554 = vpop.f32.mrb[0].mxu0
        %v2555 = vadd.f32 0.0, %v2554
        %v2556 = vpop.f32.mrb[0].mxu0
        %v2557 = vadd.f32 0.0, %v2556
        %v2558 = vpop.f32.mrb[0].mxu0
        %v2559 = vadd.f32 0.0, %v2558
        %v2560 = vpop.f32.mrb[0].mxu0
        %v2561 = vadd.f32 0.0, %v2560
        %2562 = vdwg.mxu0
        %2563 = vmatprep.subr.bf16.mxu0 %v2333
        %2564 = vmatpush1.bf16.msra.mxu0 %v2332
        %2565 = vmatprep.subr.bf16.mxu0 %v2349
        %2566 = vmatpush1.bf16.msra.mxu0 %v2348
        %2567 = vmatprep.subr.bf16.mxu0 0
        %2568 = vmatpush1.bf16.msra.mxu0 0
        %2569 = vmatprep.subr.bf16.mxu0 0
        %2570 = vmatpush1.bf16.msra.mxu0 0
        %2571 = vmatprep.subr.bf16.mxu0 0
        %2572 = vmatpush1.bf16.msra.mxu0 0
        %2573 = vmatprep.subr.bf16.mxu0 0
        %2574 = vmatpush1.bf16.msra.mxu0 0
        %2575 = vmatprep.subr.bf16.mxu0 0
        %2576 = vmatpush1.bf16.msra.mxu0 0
        %2577 = vmatprep.subr.bf16.mxu0 0
        %2578 = vmatpush1.bf16.msra.mxu0 0
        %2579 = vmatprep.subr.bf16.mxu0 0
        %2580 = vmatpush1.bf16.msra.mxu0 0
        %2581 = vmatprep.subr.bf16.mxu0 0
        %2582 = vmatpush1.bf16.msra.mxu0 0
        %2583 = vmatprep.subr.bf16.mxu0 0
        %2584 = vmatpush1.bf16.msra.mxu0 0
        %2585 = vmatprep.subr.bf16.mxu0 0
        %2586 = vmatpush1.bf16.msra.mxu0 0
        %2587 = vmatprep.subr.bf16.mxu0 0
        %2588 = vmatpush1.bf16.msra.mxu0 0
        %2589 = vmatprep.subr.bf16.mxu0 0
        %2590 = vmatpush1.bf16.msra.mxu0 0
        %2591 = vmatprep.subr.bf16.mxu0 0
        %2592 = vmatpush1.bf16.msra.mxu0 0
        %2593 = vmatprep.subr.bf16.mxu0 0
        %2594 = vmatpush1.bf16.msra.mxu0 0
        %2595 = vmatprep.mubr.bf16.mxu0 0
        %2596 = vmatmul.mubr.bf16.gmra.mrb[0].mxu0 %v2389
        %v2597 = vpop.f32.mrb[0].mxu0
        %v2598 = vadd.f32 0.0, %v2597
        %v2599 = vpop.f32.mrb[0].mxu0
        %v2600 = vadd.f32 0.0, %v2599
        %v2601 = vpop.f32.mrb[0].mxu0
        %v2602 = vadd.f32 0.0, %v2601
        %v2603 = vpop.f32.mrb[0].mxu0
        %v2604 = vadd.f32 0.0, %v2603
        %2605 = vdwg.mxu0
        %2606 = vmatprep.subr.bf16.mxu0 %v2335
        %2607 = vmatpush1.bf16.msra.mxu0 %v2334
        %2608 = vmatprep.subr.bf16.mxu0 %v2351
        %2609 = vmatpush1.bf16.msra.mxu0 %v2350
        %2610 = vmatprep.subr.bf16.mxu0 0
        %2611 = vmatpush1.bf16.msra.mxu0 0
        %2612 = vmatprep.subr.bf16.mxu0 0
        %2613 = vmatpush1.bf16.msra.mxu0 0
        %2614 = vmatprep.subr.bf16.mxu0 0
        %2615 = vmatpush1.bf16.msra.mxu0 0
        %2616 = vmatprep.subr.bf16.mxu0 0
        %2617 = vmatpush1.bf16.msra.mxu0 0
        %2618 = vmatprep.subr.bf16.mxu0 0
        %2619 = vmatpush1.bf16.msra.mxu0 0
        %2620 = vmatprep.subr.bf16.mxu0 0
        %2621 = vmatpush1.bf16.msra.mxu0 0
        %2622 = vmatprep.subr.bf16.mxu0 0
        %2623 = vmatpush1.bf16.msra.mxu0 0
        %2624 = vmatprep.subr.bf16.mxu0 0
        %2625 = vmatpush1.bf16.msra.mxu0 0
        %2626 = vmatprep.subr.bf16.mxu0 0
        %2627 = vmatpush1.bf16.msra.mxu0 0
        %2628 = vmatprep.subr.bf16.mxu0 0
        %2629 = vmatpush1.bf16.msra.mxu0 0
        %2630 = vmatprep.subr.bf16.mxu0 0
        %2631 = vmatpush1.bf16.msra.mxu0 0
        %2632 = vmatprep.subr.bf16.mxu0 0
        %2633 = vmatpush1.bf16.msra.mxu0 0
        %2634 = vmatprep.subr.bf16.mxu0 0
        %2635 = vmatpush1.bf16.msra.mxu0 0
        %2636 = vmatprep.subr.bf16.mxu0 0
        %2637 = vmatpush1.bf16.msra.mxu0 0
        %2638 = vmatprep.mubr.bf16.mxu0 0
        %2639 = vmatmul.mubr.bf16.gmra.mrb[0].mxu0 %v2389
        %v2640 = vpop.f32.mrb[0].mxu0
        %v2641 = vadd.f32 0.0, %v2640
        %v2642 = vpop.f32.mrb[0].mxu0
        %v2643 = vadd.f32 0.0, %v2642
        %v2644 = vpop.f32.mrb[0].mxu0
        %v2645 = vadd.f32 0.0, %v2644
        %v2646 = vpop.f32.mrb[0].mxu0
        %v2647 = vadd.f32 0.0, %v2646
        %2648 = vdwg.mxu0
        %2649 = vmatprep.subr.bf16.mxu0 %v2337
        %2650 = vmatpush1.bf16.msra.mxu0 %v2336
        %2651 = vmatprep.subr.bf16.mxu0 %v2353
        %2652 = vmatpush1.bf16.msra.mxu0 %v2352
        %2653 = vmatprep.subr.bf16.mxu0 0
        %2654 = vmatpush1.bf16.msra.mxu0 0
        %2655 = vmatprep.subr.bf16.mxu0 0
        %2656 = vmatpush1.bf16.msra.mxu0 0
        %2657 = vmatprep.subr.bf16.mxu0 0
        %2658 = vmatpush1.bf16.msra.mxu0 0
        %2659 = vmatprep.subr.bf16.mxu0 0
        %2660 = vmatpush1.bf16.msra.mxu0 0
        %2661 = vmatprep.subr.bf16.mxu0 0
        %2662 = vmatpush1.bf16.msra.mxu0 0
        %2663 = vmatprep.subr.bf16.mxu0 0
        %2664 = vmatpush1.bf16.msra.mxu0 0
        %2665 = vmatprep.subr.bf16.mxu0 0
        %2666 = vmatpush1.bf16.msra.mxu0 0
        %2667 = vmatprep.subr.bf16.mxu0 0
        %2668 = vmatpush1.bf16.msra.mxu0 0
        %2669 = vmatprep.subr.bf16.mxu0 0
        %2670 = vmatpush1.bf16.msra.mxu0 0
        %2671 = vmatprep.subr.bf16.mxu0 0
        %2672 = vmatpush1.bf16.msra.mxu0 0
        %2673 = vmatprep.subr.bf16.mxu0 0
        %2674 = vmatpush1.bf16.msra.mxu0 0
        %2675 = vmatprep.subr.bf16.mxu0 0
        %2676 = vmatpush1.bf16.msra.mxu0 0
        %2677 = vmatprep.subr.bf16.mxu0 0
        %2678 = vmatpush1.bf16.msra.mxu0 0
        %2679 = vmatprep.subr.bf16.mxu0 0
        %2680 = vmatpush1.bf16.msra.mxu0 0
        %2681 = vmatprep.mubr.bf16.mxu0 0
        %2682 = vmatmul.mubr.bf16.gmra.mrb[0].mxu0 %v2389
        %v2683 = vpop.f32.mrb[0].mxu0
        %v2684 = vadd.f32 0.0, %v2683
        %v2685 = vpop.f32.mrb[0].mxu0
        %v2686 = vadd.f32 0.0, %v2685
        %v2687 = vpop.f32.mrb[0].mxu0
        %v2688 = vadd.f32 0.0, %v2687
        %v2689 = vpop.f32.mrb[0].mxu0
        %v2690 = vadd.f32 0.0, %v2689
        %2691 = vdwg.mxu0
        %2692 = vmatprep.subr.bf16.mxu0 %v2339
        %2693 = vmatpush1.bf16.msra.mxu0 %v2338
        %2694 = vmatprep.subr.bf16.mxu0 %v2355
        %2695 = vmatpush1.bf16.msra.mxu0 %v2354
        %2696 = vmatprep.subr.bf16.mxu0 0
        %2697 = vmatpush1.bf16.msra.mxu0 0
        %2698 = vmatprep.subr.bf16.mxu0 0
        %2699 = vmatpush1.bf16.msra.mxu0 0
        %2700 = vmatprep.subr.bf16.mxu0 0
        %2701 = vmatpush1.bf16.msra.mxu0 0
        %2702 = vmatprep.subr.bf16.mxu0 0
        %2703 = vmatpush1.bf16.msra.mxu0 0
        %2704 = vmatprep.subr.bf16.mxu0 0
        %2705 = vmatpush1.bf16.msra.mxu0 0
        %2706 = vmatprep.subr.bf16.mxu0 0
        %2707 = vmatpush1.bf16.msra.mxu0 0
        %2708 = vmatprep.subr.bf16.mxu0 0
        %2709 = vmatpush1.bf16.msra.mxu0 0
        %2710 = vmatprep.subr.bf16.mxu0 0
        %2711 = vmatpush1.bf16.msra.mxu0 0
        %2712 = vmatprep.subr.bf16.mxu0 0
        %2713 = vmatpush1.bf16.msra.mxu0 0
        %2714 = vmatprep.subr.bf16.mxu0 0
        %2715 = vmatpush1.bf16.msra.mxu0 0
        %2716 = vmatprep.subr.bf16.mxu0 0
        %2717 = vmatpush1.bf16.msra.mxu0 0
        %2718 = vmatprep.subr.bf16.mxu0 0
        %2719 = vmatpush1.bf16.msra.mxu0 0
        %2720 = vmatprep.subr.bf16.mxu0 0
        %2721 = vmatpush1.bf16.msra.mxu0 0
        %2722 = vmatprep.subr.bf16.mxu0 0
        %2723 = vmatpush1.bf16.msra.mxu0 0
        %2724 = vmatprep.mubr.bf16.mxu0 0
        %2725 = vmatmul.mubr.bf16.gmra.mrb[0].mxu0 %v2389
        %v2726 = vpop.f32.mrb[0].mxu0
        %v2727 = vadd.f32 0.0, %v2726
        %v2728 = vpop.f32.mrb[0].mxu0
        %v2729 = vadd.f32 0.0, %v2728
        %v2730 = vpop.f32.mrb[0].mxu0
        %v2731 = vadd.f32 0.0, %v2730
        %v2732 = vpop.f32.mrb[0].mxu0
        %v2733 = vadd.f32 0.0, %v2732
        %2734 = vdwg.mxu0
        %v2735 = vpack.c.bf16 %v2430, %v2426
        %v2736 = vpack.c.bf16 %v2432, %v2428
        %v2737 = vpack.c.bf16 %v2473, %v2469
        %v2738 = vpack.c.bf16 %v2475, %v2471
        %v2739 = vpack.c.bf16 %v2516, %v2512
        %v2740 = vpack.c.bf16 %v2518, %v2514
        %v2741 = vpack.c.bf16 %v2559, %v2555
        %v2742 = vpack.c.bf16 %v2561, %v2557
        %v2743 = vpack.c.bf16 %v2602, %v2598
        %v2744 = vpack.c.bf16 %v2604, %v2600
        %v2745 = vpack.c.bf16 %v2645, %v2641
        %v2746 = vpack.c.bf16 %v2647, %v2643
        %v2747 = vpack.c.bf16 %v2688, %v2684
        %v2748 = vpack.c.bf16 %v2690, %v2686
        %v2749 = vpack.c.bf16 %v2731, %v2727
        %v2750 = vpack.c.bf16 %v2733, %v2729
        %v2751 = vld [vmem:[%s649] sm:$0xff]
        %v2752 = vld [vmem:[%s649 + $0x8] sm:$0xff]
        %v2755 = vcombine.high %v2751, %v2751
        %v2757 = vunpack.c.l.s4 1966171168
        %v2758 = vunpack.c.0.s8 %v2757
        %v2759 = vlaneseq
        %v2760 = vshrl.u32 %v2759, 7
        %v2761 = vsub.s32 %v2758, %v2760
        %v2762 = vrot.slane %v2751, %v2761
        %v2764 = vunpack.c.l.s4 1966171168
        %v2765 = vunpack.c.0.s8 %v2764
        %v2766 = vlaneseq
        %v2767 = vshrl.u32 %v2766, 7
        %v2768 = vsub.s32 %v2765, %v2767
        %v2769 = vrot.slane %v2755, %v2768
        %v2770 = vcombine.high %v2762, %v2762
        %v2771 = vcombine.high %v2769, %v2769
        %v2773 = vunpack.c.l.s4 1966171168
        %v2774 = vunpack.c.0.s8 %v2773
        %v2775 = vlaneseq
        %v2776 = vshrl.u32 %v2775, 7
        %v2777 = vsub.s32 %v2774, %v2776
        %v2778 = vrot.slane %v2762, %v2777
        %v2780 = vunpack.c.l.s4 1966171168
        %v2781 = vunpack.c.0.s8 %v2780
        %v2782 = vlaneseq
        %v2783 = vshrl.u32 %v2782, 7
        %v2784 = vsub.s32 %v2781, %v2783
        %v2785 = vrot.slane %v2769, %v2784
        %v2787 = vunpack.c.l.s4 1966171168
        %v2788 = vunpack.c.0.s8 %v2787
        %v2789 = vlaneseq
        %v2790 = vshrl.u32 %v2789, 7
        %v2791 = vsub.s32 %v2788, %v2790
        %v2792 = vrot.slane %v2770, %v2791
        %v2794 = vunpack.c.l.s4 1966171168
        %v2795 = vunpack.c.0.s8 %v2794
        %v2796 = vlaneseq
        %v2797 = vshrl.u32 %v2796, 7
        %v2798 = vsub.s32 %v2795, %v2797
        %v2799 = vrot.slane %v2771, %v2798
        %v2800 = vcombine.high %v2778, %v2778
        %v2801 = vcombine.high %v2785, %v2785
        %v2802 = vcombine.high %v2792, %v2792
        %v2803 = vcombine.high %v2799, %v2799
        %v2804 = vcombine.high %v2752, %v2752
        %v2806 = vunpack.c.l.s4 1966171168
        %v2807 = vunpack.c.0.s8 %v2806
        %v2808 = vlaneseq
        %v2809 = vshrl.u32 %v2808, 7
        %v2810 = vsub.s32 %v2807, %v2809
        %v2811 = vrot.slane %v2752, %v2810
        %v2813 = vunpack.c.l.s4 1966171168
        %v2814 = vunpack.c.0.s8 %v2813
        %v2815 = vlaneseq
        %v2816 = vshrl.u32 %v2815, 7
        %v2817 = vsub.s32 %v2814, %v2816
        %v2818 = vrot.slane %v2804, %v2817
        %v2819 = vcombine.high %v2811, %v2811
        %v2820 = vcombine.high %v2818, %v2818
        %v2822 = vunpack.c.l.s4 1966171168
        %v2823 = vunpack.c.0.s8 %v2822
        %v2824 = vlaneseq
        %v2825 = vshrl.u32 %v2824, 7
        %v2826 = vsub.s32 %v2823, %v2825
        %v2827 = vrot.slane %v2811, %v2826
        %v2829 = vunpack.c.l.s4 1966171168
        %v2830 = vunpack.c.0.s8 %v2829
        %v2831 = vlaneseq
        %v2832 = vshrl.u32 %v2831, 7
        %v2833 = vsub.s32 %v2830, %v2832
        %v2834 = vrot.slane %v2818, %v2833
        %v2836 = vunpack.c.l.s4 1966171168
        %v2837 = vunpack.c.0.s8 %v2836
        %v2838 = vlaneseq
        %v2839 = vshrl.u32 %v2838, 7
        %v2840 = vsub.s32 %v2837, %v2839
        %v2841 = vrot.slane %v2819, %v2840
        %v2843 = vunpack.c.l.s4 1966171168
        %v2844 = vunpack.c.0.s8 %v2843
        %v2845 = vlaneseq
        %v2846 = vshrl.u32 %v2845, 7
        %v2847 = vsub.s32 %v2844, %v2846
        %v2848 = vrot.slane %v2820, %v2847
        %v2849 = vcombine.high %v2827, %v2827
        %v2850 = vcombine.high %v2834, %v2834
        %v2851 = vcombine.high %v2841, %v2841
        %v2852 = vcombine.high %v2848, %v2848
        %v2854 = vpack.i.b16 %v2778, %v2778
        %v2856 = vlaneseq
        %v2857 = vshrl.u32 %v2856, 7
        %v2858 = vsub.s32 0, %v2857
        %v2859 = vrot.slane %v2854, %v2858
        %v2861 = vpack.i.b16 %v2792, %v2792
        %v2863 = vlaneseq
        %v2864 = vshrl.u32 %v2863, 7
        %v2865 = vsub.s32 0, %v2864
        %v2866 = vrot.slane %v2861, %v2865
        %v2868 = vpack.i.b16 %v2800, %v2800
        %v2870 = vlaneseq
        %v2871 = vshrl.u32 %v2870, 7
        %v2872 = vsub.s32 0, %v2871
        %v2873 = vrot.slane %v2868, %v2872
        %v2875 = vpack.i.b16 %v2802, %v2802
        %v2877 = vlaneseq
        %v2878 = vshrl.u32 %v2877, 7
        %v2879 = vsub.s32 0, %v2878
        %v2880 = vrot.slane %v2875, %v2879
        %v2882 = vpack.i.b16 %v2785, %v2785
        %v2884 = vlaneseq
        %v2885 = vshrl.u32 %v2884, 7
        %v2886 = vsub.s32 0, %v2885
        %v2887 = vrot.slane %v2882, %v2886
        %v2889 = vpack.i.b16 %v2799, %v2799
        %v2891 = vlaneseq
        %v2892 = vshrl.u32 %v2891, 7
        %v2893 = vsub.s32 0, %v2892
        %v2894 = vrot.slane %v2889, %v2893
        %v2896 = vpack.i.b16 %v2801, %v2801
        %v2898 = vlaneseq
        %v2899 = vshrl.u32 %v2898, 7
        %v2900 = vsub.s32 0, %v2899
        %v2901 = vrot.slane %v2896, %v2900
        %v2903 = vpack.i.b16 %v2803, %v2803
        %v2905 = vlaneseq
        %v2906 = vshrl.u32 %v2905, 7
        %v2907 = vsub.s32 0, %v2906
        %v2908 = vrot.slane %v2903, %v2907
        %v2910 = vpack.i.b16 %v2827, %v2827
        %v2912 = vlaneseq
        %v2913 = vshrl.u32 %v2912, 7
        %v2914 = vsub.s32 0, %v2913
        %v2915 = vrot.slane %v2910, %v2914
        %v2917 = vpack.i.b16 %v2841, %v2841
        %v2919 = vlaneseq
        %v2920 = vshrl.u32 %v2919, 7
        %v2921 = vsub.s32 0, %v2920
        %v2922 = vrot.slane %v2917, %v2921
        %v2924 = vpack.i.b16 %v2849, %v2849
        %v2926 = vlaneseq
        %v2927 = vshrl.u32 %v2926, 7
        %v2928 = vsub.s32 0, %v2927
        %v2929 = vrot.slane %v2924, %v2928
        %v2931 = vpack.i.b16 %v2851, %v2851
        %v2933 = vlaneseq
        %v2934 = vshrl.u32 %v2933, 7
        %v2935 = vsub.s32 0, %v2934
        %v2936 = vrot.slane %v2931, %v2935
        %v2938 = vpack.i.b16 %v2834, %v2834
        %v2940 = vlaneseq
        %v2941 = vshrl.u32 %v2940, 7
        %v2942 = vsub.s32 0, %v2941
        %v2943 = vrot.slane %v2938, %v2942
        %v2945 = vpack.i.b16 %v2848, %v2848
        %v2947 = vlaneseq
        %v2948 = vshrl.u32 %v2947, 7
        %v2949 = vsub.s32 0, %v2948
        %v2950 = vrot.slane %v2945, %v2949
        %v2952 = vpack.i.b16 %v2850, %v2850
        %v2954 = vlaneseq
        %v2955 = vshrl.u32 %v2954, 7
        %v2956 = vsub.s32 0, %v2955
        %v2957 = vrot.slane %v2952, %v2956
        %v2959 = vpack.i.b16 %v2852, %v2852
        %v2961 = vlaneseq
        %v2962 = vshrl.u32 %v2961, 7
        %v2963 = vsub.s32 0, %v2962
        %v2964 = vrot.slane %v2959, %v2963
        %v2965 = vadd.bf16 %v2735, %v2859
        %v2966 = vadd.bf16 %v2736, %v2866
        %v2967 = vadd.bf16 %v2737, %v2873
        %v2968 = vadd.bf16 %v2738, %v2880
        %v2969 = vadd.bf16 %v2739, %v2887
        %v2970 = vadd.bf16 %v2740, %v2894
        %v2971 = vadd.bf16 %v2741, %v2901
        %v2972 = vadd.bf16 %v2742, %v2908
        %v2973 = vadd.bf16 %v2743, %v2915
        %v2974 = vadd.bf16 %v2744, %v2922
        %v2975 = vadd.bf16 %v2745, %v2929
        %v2976 = vadd.bf16 %v2746, %v2936
        %v2977 = vadd.bf16 %v2747, %v2943
        %v2978 = vadd.bf16 %v2748, %v2950
        %v2979 = vadd.bf16 %v2749, %v2957
        %v2980 = vadd.bf16 %v2750, %v2964
        %v2981 = vmax.bf16 %v2965, 0
        %v2982 = vmax.bf16 %v2966, 0
        %v2983 = vmax.bf16 %v2967, 0
        %v2984 = vmax.bf16 %v2968, 0
        %v2985 = vmax.bf16 %v2969, 0
        %v2986 = vmax.bf16 %v2970, 0
        %v2987 = vmax.bf16 %v2971, 0
        %v2988 = vmax.bf16 %v2972, 0
        %v2989 = vmax.bf16 %v2973, 0
        %v2990 = vmax.bf16 %v2974, 0
        %v2991 = vmax.bf16 %v2975, 0
        %v2992 = vmax.bf16 %v2976, 0
        %v2993 = vmax.bf16 %v2977, 0
        %v2994 = vmax.bf16 %v2978, 0
        %v2995 = vmax.bf16 %v2979, 0
        %v2996 = vmax.bf16 %v2980, 0
        %v2997 = vld [vmem:[%s654] sm:$0xf]
        %v2998 = vld [vmem:[%s654 + $0x4] sm:$0xf]
        %v2999 = vld [vmem:[%s654 + $0x8] sm:$0xf]
        %v3000 = vld [vmem:[%s654 + $0xc] sm:$0xf]
        %v3001 = vld [vmem:[%s654 + $0x10] sm:$0xf]
        %v3002 = vld [vmem:[%s654 + $0x14] sm:$0xf]
        %v3003 = vld [vmem:[%s654 + $0x18] sm:$0xf]
        %v3004 = vld [vmem:[%s654 + $0x1c] sm:$0xf]
        %v3005 = vld [vmem:[%s654 + $0x20] sm:$0xf]
        %v3006 = vld [vmem:[%s654 + $0x24] sm:$0xf]
        %v3007 = vld [vmem:[%s654 + $0x28] sm:$0xf]
        %v3008 = vld [vmem:[%s654 + $0x2c] sm:$0xf]
        %v3009 = vld [vmem:[%s654 + $0x30] sm:$0xf]
        %v3010 = vld [vmem:[%s654 + $0x34] sm:$0xf]
        %v3011 = vld [vmem:[%s654 + $0x38] sm:$0xf]
        %v3012 = vld [vmem:[%s654 + $0x3c] sm:$0xf]
        %v3013 = vld [vmem:[%s654 + $0x40] sm:$0xf]
        %v3014 = vld [vmem:[%s654 + $0x44] sm:$0xf]
        %v3015 = vld [vmem:[%s654 + $0x48] sm:$0xf]
        %v3016 = vld [vmem:[%s654 + $0x4c] sm:$0xf]
        %v3017 = vld [vmem:[%s654 + $0x50] sm:$0xf]
        %v3018 = vld [vmem:[%s654 + $0x54] sm:$0xf]
        %v3019 = vld [vmem:[%s654 + $0x58] sm:$0xf]
        %v3020 = vld [vmem:[%s654 + $0x5c] sm:$0xf]
        %v3021 = vld [vmem:[%s654 + $0x60] sm:$0xf]
        %v3022 = vld [vmem:[%s654 + $0x64] sm:$0xf]
        %v3023 = vld [vmem:[%s654 + $0x68] sm:$0xf]
        %v3024 = vld [vmem:[%s654 + $0x6c] sm:$0xf]
        %v3025 = vld [vmem:[%s654 + $0x70] sm:$0xf]
        %v3026 = vld [vmem:[%s654 + $0x74] sm:$0xf]
        %v3027 = vld [vmem:[%s654 + $0x78] sm:$0xf]
        %v3028 = vld [vmem:[%s654 + $0x7c] sm:$0xf]
        %v3029 = vld [vmem:[%s654 + $0x80] sm:$0xf]
        %v3030 = vld [vmem:[%s654 + $0x84] sm:$0xf]
        %v3031 = vld [vmem:[%s654 + $0x88] sm:$0xf]
        %v3032 = vld [vmem:[%s654 + $0x8c] sm:$0xf]
        %v3033 = vld [vmem:[%s654 + $0x90] sm:$0xf]
        %v3034 = vld [vmem:[%s654 + $0x94] sm:$0xf]
        %v3035 = vld [vmem:[%s654 + $0x98] sm:$0xf]
        %v3036 = vld [vmem:[%s654 + $0x9c] sm:$0xf]
        %v3037 = vld [vmem:[%s654 + $0xa0] sm:$0xf]
        %v3038 = vld [vmem:[%s654 + $0xa4] sm:$0xf]
        %v3039 = vld [vmem:[%s654 + $0xa8] sm:$0xf]
        %v3040 = vld [vmem:[%s654 + $0xac] sm:$0xf]
        %v3041 = vld [vmem:[%s654 + $0xb0] sm:$0xf]
        %v3042 = vld [vmem:[%s654 + $0xb4] sm:$0xf]
        %v3043 = vld [vmem:[%s654 + $0xb8] sm:$0xf]
        %v3044 = vld [vmem:[%s654 + $0xbc] sm:$0xf]
        %v3045 = vld [vmem:[%s654 + $0xc0] sm:$0xf]
        %v3046 = vld [vmem:[%s654 + $0xc4] sm:$0xf]
        %v3047 = vld [vmem:[%s654 + $0xc8] sm:$0xf]
        %v3048 = vld [vmem:[%s654 + $0xcc] sm:$0xf]
        %v3049 = vld [vmem:[%s654 + $0xd0] sm:$0xf]
        %v3050 = vld [vmem:[%s654 + $0xd4] sm:$0xf]
        %v3051 = vld [vmem:[%s654 + $0xd8] sm:$0xf]
        %v3052 = vld [vmem:[%s654 + $0xdc] sm:$0xf]
        %v3053 = vld [vmem:[%s654 + $0xe0] sm:$0xf]
        %v3054 = vld [vmem:[%s654 + $0xe4] sm:$0xf]
        %v3055 = vld [vmem:[%s654 + $0xe8] sm:$0xf]
        %v3056 = vld [vmem:[%s654 + $0xec] sm:$0xf]
        %v3057 = vld [vmem:[%s654 + $0xf0] sm:$0xf]
        %v3058 = vld [vmem:[%s654 + $0xf4] sm:$0xf]
        %v3059 = vld [vmem:[%s654 + $0xf8] sm:$0xf]
        %v3060 = vld [vmem:[%s654 + $0xfc] sm:$0xf]
        %v3061 = vld [vmem:[%s654 + $0x100] sm:$0xf]
        %v3062 = vld [vmem:[%s654 + $0x104] sm:$0xf]
        %v3063 = vld [vmem:[%s654 + $0x108] sm:$0xf]
        %v3064 = vld [vmem:[%s654 + $0x10c] sm:$0xf]
        %v3065 = vld [vmem:[%s654 + $0x110] sm:$0xf]
        %v3066 = vld [vmem:[%s654 + $0x114] sm:$0xf]
        %v3067 = vld [vmem:[%s654 + $0x118] sm:$0xf]
        %v3068 = vld [vmem:[%s654 + $0x11c] sm:$0xf]
        %v3069 = vld [vmem:[%s654 + $0x120] sm:$0xf]
        %v3070 = vld [vmem:[%s654 + $0x124] sm:$0xf]
        %v3071 = vld [vmem:[%s654 + $0x128] sm:$0xf]
        %v3072 = vld [vmem:[%s654 + $0x12c] sm:$0xf]
        %v3073 = vld [vmem:[%s654 + $0x130] sm:$0xf]
        %v3074 = vld [vmem:[%s654 + $0x134] sm:$0xf]
        %v3075 = vld [vmem:[%s654 + $0x138] sm:$0xf]
        %v3076 = vld [vmem:[%s654 + $0x13c] sm:$0xf]
        %v3077 = vld [vmem:[%s654 + $0x140] sm:$0xf]
        %v3078 = vld [vmem:[%s654 + $0x144] sm:$0xf]
        %v3079 = vld [vmem:[%s654 + $0x148] sm:$0xf]
        %v3080 = vld [vmem:[%s654 + $0x14c] sm:$0xf]
        %v3081 = vld [vmem:[%s654 + $0x150] sm:$0xf]
        %v3082 = vld [vmem:[%s654 + $0x154] sm:$0xf]
        %v3083 = vld [vmem:[%s654 + $0x158] sm:$0xf]
        %v3084 = vld [vmem:[%s654 + $0x15c] sm:$0xf]
        %v3085 = vld [vmem:[%s654 + $0x160] sm:$0xf]
        %v3086 = vld [vmem:[%s654 + $0x164] sm:$0xf]
        %v3087 = vld [vmem:[%s654 + $0x168] sm:$0xf]
        %v3088 = vld [vmem:[%s654 + $0x16c] sm:$0xf]
        %v3089 = vld [vmem:[%s654 + $0x170] sm:$0xf]
        %v3090 = vld [vmem:[%s654 + $0x174] sm:$0xf]
        %v3091 = vld [vmem:[%s654 + $0x178] sm:$0xf]
        %v3092 = vld [vmem:[%s654 + $0x17c] sm:$0xf]
        %v3093 = vld [vmem:[%s654 + $0x180] sm:$0xf]
        %v3094 = vld [vmem:[%s654 + $0x184] sm:$0xf]
        %v3095 = vld [vmem:[%s654 + $0x188] sm:$0xf]
        %v3096 = vld [vmem:[%s654 + $0x18c] sm:$0xf]
        %v3097 = vld [vmem:[%s654 + $0x190] sm:$0xf]
        %v3098 = vld [vmem:[%s654 + $0x194] sm:$0xf]
        %v3099 = vld [vmem:[%s654 + $0x198] sm:$0xf]
        %v3100 = vld [vmem:[%s654 + $0x19c] sm:$0xf]
        %v3101 = vld [vmem:[%s654 + $0x1a0] sm:$0xf]
        %v3102 = vld [vmem:[%s654 + $0x1a4] sm:$0xf]
        %v3103 = vld [vmem:[%s654 + $0x1a8] sm:$0xf]
        %v3104 = vld [vmem:[%s654 + $0x1ac] sm:$0xf]
        %v3105 = vld [vmem:[%s654 + $0x1b0] sm:$0xf]
        %v3106 = vld [vmem:[%s654 + $0x1b4] sm:$0xf]
        %v3107 = vld [vmem:[%s654 + $0x1b8] sm:$0xf]
        %v3108 = vld [vmem:[%s654 + $0x1bc] sm:$0xf]
        %v3109 = vld [vmem:[%s654 + $0x1c0] sm:$0xf]
        %v3110 = vld [vmem:[%s654 + $0x1c4] sm:$0xf]
        %v3111 = vld [vmem:[%s654 + $0x1c8] sm:$0xf]
        %v3112 = vld [vmem:[%s654 + $0x1cc] sm:$0xf]
        %v3113 = vld [vmem:[%s654 + $0x1d0] sm:$0xf]
        %v3114 = vld [vmem:[%s654 + $0x1d4] sm:$0xf]
        %v3115 = vld [vmem:[%s654 + $0x1d8] sm:$0xf]
        %v3116 = vld [vmem:[%s654 + $0x1dc] sm:$0xf]
        %v3117 = vld [vmem:[%s654 + $0x1e0] sm:$0xf]
        %v3118 = vld [vmem:[%s654 + $0x1e4] sm:$0xf]
        %v3119 = vld [vmem:[%s654 + $0x1e8] sm:$0xf]
        %v3120 = vld [vmem:[%s654 + $0x1ec] sm:$0xf]
        %v3121 = vld [vmem:[%s654 + $0x1f0] sm:$0xf]
        %v3122 = vld [vmem:[%s654 + $0x1f4] sm:$0xf]
        %v3123 = vld [vmem:[%s654 + $0x1f8] sm:$0xf]
        %v3124 = vld [vmem:[%s654 + $0x1fc] sm:$0xf]
        %v3125 = vld [vmem:[%s654 + $0x200] sm:$0xf]
        %v3126 = vld [vmem:[%s654 + $0x204] sm:$0xf]
        %v3127 = vld [vmem:[%s654 + $0x208] sm:$0xf]
        %v3128 = vld [vmem:[%s654 + $0x20c] sm:$0xf]
        %v3129 = vld [vmem:[%s654 + $0x210] sm:$0xf]
        %v3130 = vld [vmem:[%s654 + $0x214] sm:$0xf]
        %v3131 = vld [vmem:[%s654 + $0x218] sm:$0xf]
        %v3132 = vld [vmem:[%s654 + $0x21c] sm:$0xf]
        %v3133 = vld [vmem:[%s654 + $0x220] sm:$0xf]
        %v3134 = vld [vmem:[%s654 + $0x224] sm:$0xf]
        %v3135 = vld [vmem:[%s654 + $0x228] sm:$0xf]
        %v3136 = vld [vmem:[%s654 + $0x22c] sm:$0xf]
        %v3137 = vld [vmem:[%s654 + $0x230] sm:$0xf]
        %v3138 = vld [vmem:[%s654 + $0x234] sm:$0xf]
        %v3139 = vld [vmem:[%s654 + $0x238] sm:$0xf]
        %v3140 = vld [vmem:[%s654 + $0x23c] sm:$0xf]
        %v3141 = vld [vmem:[%s654 + $0x240] sm:$0xf]
        %v3142 = vld [vmem:[%s654 + $0x244] sm:$0xf]
        %v3143 = vld [vmem:[%s654 + $0x248] sm:$0xf]
        %v3144 = vld [vmem:[%s654 + $0x24c] sm:$0xf]
        %v3145 = vld [vmem:[%s654 + $0x250] sm:$0xf]
        %v3146 = vld [vmem:[%s654 + $0x254] sm:$0xf]
        %v3147 = vld [vmem:[%s654 + $0x258] sm:$0xf]
        %v3148 = vld [vmem:[%s654 + $0x25c] sm:$0xf]
        %v3149 = vld [vmem:[%s654 + $0x260] sm:$0xf]
        %v3150 = vld [vmem:[%s654 + $0x264] sm:$0xf]
        %v3151 = vld [vmem:[%s654 + $0x268] sm:$0xf]
        %v3152 = vld [vmem:[%s654 + $0x26c] sm:$0xf]
        %v3153 = vld [vmem:[%s654 + $0x270] sm:$0xf]
        %v3154 = vld [vmem:[%s654 + $0x274] sm:$0xf]
        %v3155 = vld [vmem:[%s654 + $0x278] sm:$0xf]
        %v3156 = vld [vmem:[%s654 + $0x27c] sm:$0xf]
        %v3157 = vld [vmem:[%s654 + $0x280] sm:$0xf]
        %v3158 = vld [vmem:[%s654 + $0x284] sm:$0xf]
        %v3159 = vld [vmem:[%s654 + $0x288] sm:$0xf]
        %v3160 = vld [vmem:[%s654 + $0x28c] sm:$0xf]
        %v3161 = vld [vmem:[%s654 + $0x290] sm:$0xf]
        %v3162 = vld [vmem:[%s654 + $0x294] sm:$0xf]
        %v3163 = vld [vmem:[%s654 + $0x298] sm:$0xf]
        %v3164 = vld [vmem:[%s654 + $0x29c] sm:$0xf]
        %v3165 = vld [vmem:[%s654 + $0x2a0] sm:$0xf]
        %v3166 = vld [vmem:[%s654 + $0x2a4] sm:$0xf]
        %v3167 = vld [vmem:[%s654 + $0x2a8] sm:$0xf]
        %v3168 = vld [vmem:[%s654 + $0x2ac] sm:$0xf]
        %v3169 = vld [vmem:[%s654 + $0x2b0] sm:$0xf]
        %v3170 = vld [vmem:[%s654 + $0x2b4] sm:$0xf]
        %v3171 = vld [vmem:[%s654 + $0x2b8] sm:$0xf]
        %v3172 = vld [vmem:[%s654 + $0x2bc] sm:$0xf]
        %v3173 = vld [vmem:[%s654 + $0x2c0] sm:$0xf]
        %v3174 = vld [vmem:[%s654 + $0x2c4] sm:$0xf]
        %v3175 = vld [vmem:[%s654 + $0x2c8] sm:$0xf]
        %v3176 = vld [vmem:[%s654 + $0x2cc] sm:$0xf]
        %v3177 = vld [vmem:[%s654 + $0x2d0] sm:$0xf]
        %v3178 = vld [vmem:[%s654 + $0x2d4] sm:$0xf]
        %v3179 = vld [vmem:[%s654 + $0x2d8] sm:$0xf]
        %v3180 = vld [vmem:[%s654 + $0x2dc] sm:$0xf]
        %v3181 = vld [vmem:[%s654 + $0x2e0] sm:$0xf]
        %v3182 = vld [vmem:[%s654 + $0x2e4] sm:$0xf]
        %v3183 = vld [vmem:[%s654 + $0x2e8] sm:$0xf]
        %v3184 = vld [vmem:[%s654 + $0x2ec] sm:$0xf]
        %v3185 = vld [vmem:[%s654 + $0x2f0] sm:$0xf]
        %v3186 = vld [vmem:[%s654 + $0x2f4] sm:$0xf]
        %v3187 = vld [vmem:[%s654 + $0x2f8] sm:$0xf]
        %v3188 = vld [vmem:[%s654 + $0x2fc] sm:$0xf]
        %v3189 = vld [vmem:[%s654 + $0x300] sm:$0xf]
        %v3190 = vld [vmem:[%s654 + $0x304] sm:$0xf]
        %v3191 = vld [vmem:[%s654 + $0x308] sm:$0xf]
        %v3192 = vld [vmem:[%s654 + $0x30c] sm:$0xf]
        %v3193 = vld [vmem:[%s654 + $0x310] sm:$0xf]
        %v3194 = vld [vmem:[%s654 + $0x314] sm:$0xf]
        %v3195 = vld [vmem:[%s654 + $0x318] sm:$0xf]
        %v3196 = vld [vmem:[%s654 + $0x31c] sm:$0xf]
        %v3197 = vld [vmem:[%s654 + $0x320] sm:$0xf]
        %v3198 = vld [vmem:[%s654 + $0x324] sm:$0xf]
        %v3199 = vld [vmem:[%s654 + $0x328] sm:$0xf]
        %v3200 = vld [vmem:[%s654 + $0x32c] sm:$0xf]
        %v3201 = vld [vmem:[%s654 + $0x330] sm:$0xf]
        %v3202 = vld [vmem:[%s654 + $0x334] sm:$0xf]
        %v3203 = vld [vmem:[%s654 + $0x338] sm:$0xf]
        %v3204 = vld [vmem:[%s654 + $0x33c] sm:$0xf]
        %v3205 = vld [vmem:[%s654 + $0x340] sm:$0xf]
        %v3206 = vld [vmem:[%s654 + $0x344] sm:$0xf]
        %v3207 = vld [vmem:[%s654 + $0x348] sm:$0xf]
        %v3208 = vld [vmem:[%s654 + $0x34c] sm:$0xf]
        %v3209 = vld [vmem:[%s654 + $0x350] sm:$0xf]
        %v3210 = vld [vmem:[%s654 + $0x354] sm:$0xf]
        %v3211 = vld [vmem:[%s654 + $0x358] sm:$0xf]
        %v3212 = vld [vmem:[%s654 + $0x35c] sm:$0xf]
        %v3213 = vld [vmem:[%s654 + $0x360] sm:$0xf]
        %v3214 = vld [vmem:[%s654 + $0x364] sm:$0xf]
        %v3215 = vld [vmem:[%s654 + $0x368] sm:$0xf]
        %v3216 = vld [vmem:[%s654 + $0x36c] sm:$0xf]
        %v3217 = vld [vmem:[%s654 + $0x370] sm:$0xf]
        %v3218 = vld [vmem:[%s654 + $0x374] sm:$0xf]
        %v3219 = vld [vmem:[%s654 + $0x378] sm:$0xf]
        %v3220 = vld [vmem:[%s654 + $0x37c] sm:$0xf]
        %v3221 = vld [vmem:[%s654 + $0x380] sm:$0xf]
        %v3222 = vld [vmem:[%s654 + $0x384] sm:$0xf]
        %v3223 = vld [vmem:[%s654 + $0x388] sm:$0xf]
        %v3224 = vld [vmem:[%s654 + $0x38c] sm:$0xf]
        %v3225 = vld [vmem:[%s654 + $0x390] sm:$0xf]
        %v3226 = vld [vmem:[%s654 + $0x394] sm:$0xf]
        %v3227 = vld [vmem:[%s654 + $0x398] sm:$0xf]
        %v3228 = vld [vmem:[%s654 + $0x39c] sm:$0xf]
        %v3229 = vld [vmem:[%s654 + $0x3a0] sm:$0xf]
        %v3230 = vld [vmem:[%s654 + $0x3a4] sm:$0xf]
        %v3231 = vld [vmem:[%s654 + $0x3a8] sm:$0xf]
        %v3232 = vld [vmem:[%s654 + $0x3ac] sm:$0xf]
        %v3233 = vld [vmem:[%s654 + $0x3b0] sm:$0xf]
        %v3234 = vld [vmem:[%s654 + $0x3b4] sm:$0xf]
        %v3235 = vld [vmem:[%s654 + $0x3b8] sm:$0xf]
        %v3236 = vld [vmem:[%s654 + $0x3bc] sm:$0xf]
        %v3237 = vld [vmem:[%s654 + $0x3c0] sm:$0xf]
        %v3238 = vld [vmem:[%s654 + $0x3c4] sm:$0xf]
        %v3239 = vld [vmem:[%s654 + $0x3c8] sm:$0xf]
        %v3240 = vld [vmem:[%s654 + $0x3cc] sm:$0xf]
        %v3241 = vld [vmem:[%s654 + $0x3d0] sm:$0xf]
        %v3242 = vld [vmem:[%s654 + $0x3d4] sm:$0xf]
        %v3243 = vld [vmem:[%s654 + $0x3d8] sm:$0xf]
        %v3244 = vld [vmem:[%s654 + $0x3dc] sm:$0xf]
        %v3245 = vld [vmem:[%s654 + $0x3e0] sm:$0xf]
        %v3246 = vld [vmem:[%s654 + $0x3e4] sm:$0xf]
        %v3247 = vld [vmem:[%s654 + $0x3e8] sm:$0xf]
        %v3248 = vld [vmem:[%s654 + $0x3ec] sm:$0xf]
        %v3249 = vld [vmem:[%s654 + $0x3f0] sm:$0xf]
        %v3250 = vld [vmem:[%s654 + $0x3f4] sm:$0xf]
        %v3251 = vld [vmem:[%s654 + $0x3f8] sm:$0xf]
        %v3252 = vld [vmem:[%s654 + $0x3fc] sm:$0xf]
        %v3253 = vld [vmem:[%s657] sm:$0x1]
        %v3255 = vlaneseq
        %v3256 = vshrl.u32 %v3255, 7
        %v3257 = vsub.s32 0, %v3256
        %v3258 = vrot.slane %v3253, %v3257
        %v3516 = vunpack.c.l.b16 %v2997
        %v3517 = vunpack.c.l.b16 %v2998
        %v3518 = vunpack.c.l.b16 %v2999
        %v3519 = vunpack.c.l.b16 %v3000
        %v3520 = vunpack.c.l.b16 %v3001
        %v3521 = vunpack.c.l.b16 %v3002
        %v3522 = vunpack.c.l.b16 %v3003
        %v3523 = vunpack.c.l.b16 %v3004
        %v3524 = vunpack.c.l.b16 %v3005
        %v3525 = vunpack.c.l.b16 %v3006
        %v3526 = vunpack.c.l.b16 %v3007
        %v3527 = vunpack.c.l.b16 %v3008
        %v3528 = vunpack.c.l.b16 %v3009
        %v3529 = vunpack.c.l.b16 %v3010
        %v3530 = vunpack.c.l.b16 %v3011
        %v3531 = vunpack.c.l.b16 %v3012
        %v3532 = vunpack.c.l.b16 %v3013
        %v3533 = vunpack.c.l.b16 %v3014
        %v3534 = vunpack.c.l.b16 %v3015
        %v3535 = vunpack.c.l.b16 %v3016
        %v3536 = vunpack.c.l.b16 %v3017
        %v3537 = vunpack.c.l.b16 %v3018
        %v3538 = vunpack.c.l.b16 %v3019
        %v3539 = vunpack.c.l.b16 %v3020
        %v3540 = vunpack.c.l.b16 %v3021
        %v3541 = vunpack.c.l.b16 %v3022
        %v3542 = vunpack.c.l.b16 %v3023
        %v3543 = vunpack.c.l.b16 %v3024
        %v3544 = vunpack.c.l.b16 %v3025
        %v3545 = vunpack.c.l.b16 %v3026
        %v3546 = vunpack.c.l.b16 %v3027
        %v3547 = vunpack.c.l.b16 %v3028
        %v3548 = vunpack.c.l.b16 %v3029
        %v3549 = vunpack.c.l.b16 %v3030
        %v3550 = vunpack.c.l.b16 %v3031
        %v3551 = vunpack.c.l.b16 %v3032
        %v3552 = vunpack.c.l.b16 %v3033
        %v3553 = vunpack.c.l.b16 %v3034
        %v3554 = vunpack.c.l.b16 %v3035
        %v3555 = vunpack.c.l.b16 %v3036
        %v3556 = vunpack.c.l.b16 %v3037
        %v3557 = vunpack.c.l.b16 %v3038
        %v3558 = vunpack.c.l.b16 %v3039
        %v3559 = vunpack.c.l.b16 %v3040
        %v3560 = vunpack.c.l.b16 %v3041
        %v3561 = vunpack.c.l.b16 %v3042
        %v3562 = vunpack.c.l.b16 %v3043
        %v3563 = vunpack.c.l.b16 %v3044
        %v3564 = vunpack.c.l.b16 %v3045
        %v3565 = vunpack.c.l.b16 %v3046
        %v3566 = vunpack.c.l.b16 %v3047
        %v3567 = vunpack.c.l.b16 %v3048
        %v3568 = vunpack.c.l.b16 %v3049
        %v3569 = vunpack.c.l.b16 %v3050
        %v3570 = vunpack.c.l.b16 %v3051
        %v3571 = vunpack.c.l.b16 %v3052
        %v3572 = vunpack.c.l.b16 %v3053
        %v3573 = vunpack.c.l.b16 %v3054
        %v3574 = vunpack.c.l.b16 %v3055
        %v3575 = vunpack.c.l.b16 %v3056
        %v3576 = vunpack.c.l.b16 %v3057
        %v3577 = vunpack.c.l.b16 %v3058
        %v3578 = vunpack.c.l.b16 %v3059
        %v3579 = vunpack.c.l.b16 %v3060
        %v3580 = vunpack.c.l.b16 %v3061
        %v3581 = vunpack.c.l.b16 %v3062
        %v3582 = vunpack.c.l.b16 %v3063
        %v3583 = vunpack.c.l.b16 %v3064
        %v3584 = vunpack.c.l.b16 %v3065
        %v3585 = vunpack.c.l.b16 %v3066
        %v3586 = vunpack.c.l.b16 %v3067
        %v3587 = vunpack.c.l.b16 %v3068
        %v3588 = vunpack.c.l.b16 %v3069
        %v3589 = vunpack.c.l.b16 %v3070
        %v3590 = vunpack.c.l.b16 %v3071
        %v3591 = vunpack.c.l.b16 %v3072
        %v3592 = vunpack.c.l.b16 %v3073
        %v3593 = vunpack.c.l.b16 %v3074
        %v3594 = vunpack.c.l.b16 %v3075
        %v3595 = vunpack.c.l.b16 %v3076
        %v3596 = vunpack.c.l.b16 %v3077
        %v3597 = vunpack.c.l.b16 %v3078
        %v3598 = vunpack.c.l.b16 %v3079
        %v3599 = vunpack.c.l.b16 %v3080
        %v3600 = vunpack.c.l.b16 %v3081
        %v3601 = vunpack.c.l.b16 %v3082
        %v3602 = vunpack.c.l.b16 %v3083
        %v3603 = vunpack.c.l.b16 %v3084
        %v3604 = vunpack.c.l.b16 %v3085
        %v3605 = vunpack.c.l.b16 %v3086
        %v3606 = vunpack.c.l.b16 %v3087
        %v3607 = vunpack.c.l.b16 %v3088
        %v3608 = vunpack.c.l.b16 %v3089
        %v3609 = vunpack.c.l.b16 %v3090
        %v3610 = vunpack.c.l.b16 %v3091
        %v3611 = vunpack.c.l.b16 %v3092
        %v3612 = vunpack.c.l.b16 %v3093
        %v3613 = vunpack.c.l.b16 %v3094
        %v3614 = vunpack.c.l.b16 %v3095
        %v3615 = vunpack.c.l.b16 %v3096
        %v3616 = vunpack.c.l.b16 %v3097
        %v3617 = vunpack.c.l.b16 %v3098
        %v3618 = vunpack.c.l.b16 %v3099
        %v3619 = vunpack.c.l.b16 %v3100
        %v3620 = vunpack.c.l.b16 %v3101
        %v3621 = vunpack.c.l.b16 %v3102
        %v3622 = vunpack.c.l.b16 %v3103
        %v3623 = vunpack.c.l.b16 %v3104
        %v3624 = vunpack.c.l.b16 %v3105
        %v3625 = vunpack.c.l.b16 %v3106
        %v3626 = vunpack.c.l.b16 %v3107
        %v3627 = vunpack.c.l.b16 %v3108
        %v3628 = vunpack.c.l.b16 %v3109
        %v3629 = vunpack.c.l.b16 %v3110
        %v3630 = vunpack.c.l.b16 %v3111
        %v3631 = vunpack.c.l.b16 %v3112
        %v3632 = vunpack.c.l.b16 %v3113
        %v3633 = vunpack.c.l.b16 %v3114
        %v3634 = vunpack.c.l.b16 %v3115
        %v3635 = vunpack.c.l.b16 %v3116
        %v3636 = vunpack.c.l.b16 %v3117
        %v3637 = vunpack.c.l.b16 %v3118
        %v3638 = vunpack.c.l.b16 %v3119
        %v3639 = vunpack.c.l.b16 %v3120
        %v3640 = vunpack.c.l.b16 %v3121
        %v3641 = vunpack.c.l.b16 %v3122
        %v3642 = vunpack.c.l.b16 %v3123
        %v3643 = vunpack.c.l.b16 %v3124
        %v3644 = vunpack.c.l.b16 %v3125
        %v3645 = vunpack.c.l.b16 %v3126
        %v3646 = vunpack.c.l.b16 %v3127
        %v3647 = vunpack.c.l.b16 %v3128
        %v3648 = vunpack.c.l.b16 %v3129
        %v3649 = vunpack.c.l.b16 %v3130
        %v3650 = vunpack.c.l.b16 %v3131
        %v3651 = vunpack.c.l.b16 %v3132
        %v3652 = vunpack.c.l.b16 %v3133
        %v3653 = vunpack.c.l.b16 %v3134
        %v3654 = vunpack.c.l.b16 %v3135
        %v3655 = vunpack.c.l.b16 %v3136
        %v3656 = vunpack.c.l.b16 %v3137
        %v3657 = vunpack.c.l.b16 %v3138
        %v3658 = vunpack.c.l.b16 %v3139
        %v3659 = vunpack.c.l.b16 %v3140
        %v3660 = vunpack.c.l.b16 %v3141
        %v3661 = vunpack.c.l.b16 %v3142
        %v3662 = vunpack.c.l.b16 %v3143
        %v3663 = vunpack.c.l.b16 %v3144
        %v3664 = vunpack.c.l.b16 %v3145
        %v3665 = vunpack.c.l.b16 %v3146
        %v3666 = vunpack.c.l.b16 %v3147
        %v3667 = vunpack.c.l.b16 %v3148
        %v3668 = vunpack.c.l.b16 %v3149
        %v3669 = vunpack.c.l.b16 %v3150
        %v3670 = vunpack.c.l.b16 %v3151
        %v3671 = vunpack.c.l.b16 %v3152
        %v3672 = vunpack.c.l.b16 %v3153
        %v3673 = vunpack.c.l.b16 %v3154
        %v3674 = vunpack.c.l.b16 %v3155
        %v3675 = vunpack.c.l.b16 %v3156
        %v3676 = vunpack.c.l.b16 %v3157
        %v3677 = vunpack.c.l.b16 %v3158
        %v3678 = vunpack.c.l.b16 %v3159
        %v3679 = vunpack.c.l.b16 %v3160
        %v3680 = vunpack.c.l.b16 %v3161
        %v3681 = vunpack.c.l.b16 %v3162
        %v3682 = vunpack.c.l.b16 %v3163
        %v3683 = vunpack.c.l.b16 %v3164
        %v3684 = vunpack.c.l.b16 %v3165
        %v3685 = vunpack.c.l.b16 %v3166
        %v3686 = vunpack.c.l.b16 %v3167
        %v3687 = vunpack.c.l.b16 %v3168
        %v3688 = vunpack.c.l.b16 %v3169
        %v3689 = vunpack.c.l.b16 %v3170
        %v3690 = vunpack.c.l.b16 %v3171
        %v3691 = vunpack.c.l.b16 %v3172
        %v3692 = vunpack.c.l.b16 %v3173
        %v3693 = vunpack.c.l.b16 %v3174
        %v3694 = vunpack.c.l.b16 %v3175
        %v3695 = vunpack.c.l.b16 %v3176
        %v3696 = vunpack.c.l.b16 %v3177
        %v3697 = vunpack.c.l.b16 %v3178
        %v3698 = vunpack.c.l.b16 %v3179
        %v3699 = vunpack.c.l.b16 %v3180
        %v3700 = vunpack.c.l.b16 %v3181
        %v3701 = vunpack.c.l.b16 %v3182
        %v3702 = vunpack.c.l.b16 %v3183
        %v3703 = vunpack.c.l.b16 %v3184
        %v3704 = vunpack.c.l.b16 %v3185
        %v3705 = vunpack.c.l.b16 %v3186
        %v3706 = vunpack.c.l.b16 %v3187
        %v3707 = vunpack.c.l.b16 %v3188
        %v3708 = vunpack.c.l.b16 %v3189
        %v3709 = vunpack.c.l.b16 %v3190
        %v3710 = vunpack.c.l.b16 %v3191
        %v3711 = vunpack.c.l.b16 %v3192
        %v3712 = vunpack.c.l.b16 %v3193
        %v3713 = vunpack.c.l.b16 %v3194
        %v3714 = vunpack.c.l.b16 %v3195
        %v3715 = vunpack.c.l.b16 %v3196
        %v3716 = vunpack.c.l.b16 %v3197
        %v3717 = vunpack.c.l.b16 %v3198
        %v3718 = vunpack.c.l.b16 %v3199
        %v3719 = vunpack.c.l.b16 %v3200
        %v3720 = vunpack.c.l.b16 %v3201
        %v3721 = vunpack.c.l.b16 %v3202
        %v3722 = vunpack.c.l.b16 %v3203
        %v3723 = vunpack.c.l.b16 %v3204
        %v3724 = vunpack.c.l.b16 %v3205
        %v3725 = vunpack.c.l.b16 %v3206
        %v3726 = vunpack.c.l.b16 %v3207
        %v3727 = vunpack.c.l.b16 %v3208
        %v3728 = vunpack.c.l.b16 %v3209
        %v3729 = vunpack.c.l.b16 %v3210
        %v3730 = vunpack.c.l.b16 %v3211
        %v3731 = vunpack.c.l.b16 %v3212
        %v3732 = vunpack.c.l.b16 %v3213
        %v3733 = vunpack.c.l.b16 %v3214
        %v3734 = vunpack.c.l.b16 %v3215
        %v3735 = vunpack.c.l.b16 %v3216
        %v3736 = vunpack.c.l.b16 %v3217
        %v3737 = vunpack.c.l.b16 %v3218
        %v3738 = vunpack.c.l.b16 %v3219
        %v3739 = vunpack.c.l.b16 %v3220
        %v3740 = vunpack.c.l.b16 %v3221
        %v3741 = vunpack.c.l.b16 %v3222
        %v3742 = vunpack.c.l.b16 %v3223
        %v3743 = vunpack.c.l.b16 %v3224
        %v3744 = vunpack.c.l.b16 %v3225
        %v3745 = vunpack.c.l.b16 %v3226
        %v3746 = vunpack.c.l.b16 %v3227
        %v3747 = vunpack.c.l.b16 %v3228
        %v3748 = vunpack.c.l.b16 %v3229
        %v3749 = vunpack.c.l.b16 %v3230
        %v3750 = vunpack.c.l.b16 %v3231
        %v3751 = vunpack.c.l.b16 %v3232
        %v3752 = vunpack.c.l.b16 %v3233
        %v3753 = vunpack.c.l.b16 %v3234
        %v3754 = vunpack.c.l.b16 %v3235
        %v3755 = vunpack.c.l.b16 %v3236
        %v3756 = vunpack.c.l.b16 %v3237
        %v3757 = vunpack.c.l.b16 %v3238
        %v3758 = vunpack.c.l.b16 %v3239
        %v3759 = vunpack.c.l.b16 %v3240
        %v3760 = vunpack.c.l.b16 %v3241
        %v3761 = vunpack.c.l.b16 %v3242
        %v3762 = vunpack.c.l.b16 %v3243
        %v3763 = vunpack.c.l.b16 %v3244
        %v3764 = vunpack.c.l.b16 %v3245
        %v3765 = vunpack.c.l.b16 %v3246
        %v3766 = vunpack.c.l.b16 %v3247
        %v3767 = vunpack.c.l.b16 %v3248
        %v3768 = vunpack.c.l.b16 %v3249
        %v3769 = vunpack.c.l.b16 %v3250
        %v3770 = vunpack.c.l.b16 %v3251
        %v3771 = vunpack.c.l.b16 %v3252
        %v3772 = vpack.c.b16 %v3517, %v3516
        %v3773 = vpack.c.b16 %v3519, %v3518
        %v3774 = vpack.c.b16 %v3521, %v3520
        %v3775 = vpack.c.b16 %v3523, %v3522
        %v3776 = vpack.c.b16 %v3525, %v3524
        %v3777 = vpack.c.b16 %v3527, %v3526
        %v3778 = vpack.c.b16 %v3529, %v3528
        %v3779 = vpack.c.b16 %v3531, %v3530
        %v3780 = vpack.c.b16 %v3533, %v3532
        %v3781 = vpack.c.b16 %v3535, %v3534
        %v3782 = vpack.c.b16 %v3537, %v3536
        %v3783 = vpack.c.b16 %v3539, %v3538
        %v3784 = vpack.c.b16 %v3541, %v3540
        %v3785 = vpack.c.b16 %v3543, %v3542
        %v3786 = vpack.c.b16 %v3545, %v3544
        %v3787 = vpack.c.b16 %v3547, %v3546
        %v3788 = vpack.c.b16 %v3549, %v3548
        %v3789 = vpack.c.b16 %v3551, %v3550
        %v3790 = vpack.c.b16 %v3553, %v3552
        %v3791 = vpack.c.b16 %v3555, %v3554
        %v3792 = vpack.c.b16 %v3557, %v3556
        %v3793 = vpack.c.b16 %v3559, %v3558
        %v3794 = vpack.c.b16 %v3561, %v3560
        %v3795 = vpack.c.b16 %v3563, %v3562
        %v3796 = vpack.c.b16 %v3565, %v3564
        %v3797 = vpack.c.b16 %v3567, %v3566
        %v3798 = vpack.c.b16 %v3569, %v3568
        %v3799 = vpack.c.b16 %v3571, %v3570
        %v3800 = vpack.c.b16 %v3573, %v3572
        %v3801 = vpack.c.b16 %v3575, %v3574
        %v3802 = vpack.c.b16 %v3577, %v3576
        %v3803 = vpack.c.b16 %v3579, %v3578
        %v3804 = vpack.c.b16 %v3581, %v3580
        %v3805 = vpack.c.b16 %v3583, %v3582
        %v3806 = vpack.c.b16 %v3585, %v3584
        %v3807 = vpack.c.b16 %v3587, %v3586
        %v3808 = vpack.c.b16 %v3589, %v3588
        %v3809 = vpack.c.b16 %v3591, %v3590
        %v3810 = vpack.c.b16 %v3593, %v3592
        %v3811 = vpack.c.b16 %v3595, %v3594
        %v3812 = vpack.c.b16 %v3597, %v3596
        %v3813 = vpack.c.b16 %v3599, %v3598
        %v3814 = vpack.c.b16 %v3601, %v3600
        %v3815 = vpack.c.b16 %v3603, %v3602
        %v3816 = vpack.c.b16 %v3605, %v3604
        %v3817 = vpack.c.b16 %v3607, %v3606
        %v3818 = vpack.c.b16 %v3609, %v3608
        %v3819 = vpack.c.b16 %v3611, %v3610
        %v3820 = vpack.c.b16 %v3613, %v3612
        %v3821 = vpack.c.b16 %v3615, %v3614
        %v3822 = vpack.c.b16 %v3617, %v3616
        %v3823 = vpack.c.b16 %v3619, %v3618
        %v3824 = vpack.c.b16 %v3621, %v3620
        %v3825 = vpack.c.b16 %v3623, %v3622
        %v3826 = vpack.c.b16 %v3625, %v3624
        %v3827 = vpack.c.b16 %v3627, %v3626
        %v3828 = vpack.c.b16 %v3629, %v3628
        %v3829 = vpack.c.b16 %v3631, %v3630
        %v3830 = vpack.c.b16 %v3633, %v3632
        %v3831 = vpack.c.b16 %v3635, %v3634
        %v3832 = vpack.c.b16 %v3637, %v3636
        %v3833 = vpack.c.b16 %v3639, %v3638
        %v3834 = vpack.c.b16 %v3641, %v3640
        %v3835 = vpack.c.b16 %v3643, %v3642
        %v3836 = vpack.c.b16 %v3645, %v3644
        %v3837 = vpack.c.b16 %v3647, %v3646
        %v3838 = vpack.c.b16 %v3649, %v3648
        %v3839 = vpack.c.b16 %v3651, %v3650
        %v3840 = vpack.c.b16 %v3653, %v3652
        %v3841 = vpack.c.b16 %v3655, %v3654
        %v3842 = vpack.c.b16 %v3657, %v3656
        %v3843 = vpack.c.b16 %v3659, %v3658
        %v3844 = vpack.c.b16 %v3661, %v3660
        %v3845 = vpack.c.b16 %v3663, %v3662
        %v3846 = vpack.c.b16 %v3665, %v3664
        %v3847 = vpack.c.b16 %v3667, %v3666
        %v3848 = vpack.c.b16 %v3669, %v3668
        %v3849 = vpack.c.b16 %v3671, %v3670
        %v3850 = vpack.c.b16 %v3673, %v3672
        %v3851 = vpack.c.b16 %v3675, %v3674
        %v3852 = vpack.c.b16 %v3677, %v3676
        %v3853 = vpack.c.b16 %v3679, %v3678
        %v3854 = vpack.c.b16 %v3681, %v3680
        %v3855 = vpack.c.b16 %v3683, %v3682
        %v3856 = vpack.c.b16 %v3685, %v3684
        %v3857 = vpack.c.b16 %v3687, %v3686
        %v3858 = vpack.c.b16 %v3689, %v3688
        %v3859 = vpack.c.b16 %v3691, %v3690
        %v3860 = vpack.c.b16 %v3693, %v3692
        %v3861 = vpack.c.b16 %v3695, %v3694
        %v3862 = vpack.c.b16 %v3697, %v3696
        %v3863 = vpack.c.b16 %v3699, %v3698
        %v3864 = vpack.c.b16 %v3701, %v3700
        %v3865 = vpack.c.b16 %v3703, %v3702
        %v3866 = vpack.c.b16 %v3705, %v3704
        %v3867 = vpack.c.b16 %v3707, %v3706
        %v3868 = vpack.c.b16 %v3709, %v3708
        %v3869 = vpack.c.b16 %v3711, %v3710
        %v3870 = vpack.c.b16 %v3713, %v3712
        %v3871 = vpack.c.b16 %v3715, %v3714
        %v3872 = vpack.c.b16 %v3717, %v3716
        %v3873 = vpack.c.b16 %v3719, %v3718
        %v3874 = vpack.c.b16 %v3721, %v3720
        %v3875 = vpack.c.b16 %v3723, %v3722
        %v3876 = vpack.c.b16 %v3725, %v3724
        %v3877 = vpack.c.b16 %v3727, %v3726
        %v3878 = vpack.c.b16 %v3729, %v3728
        %v3879 = vpack.c.b16 %v3731, %v3730
        %v3880 = vpack.c.b16 %v3733, %v3732
        %v3881 = vpack.c.b16 %v3735, %v3734
        %v3882 = vpack.c.b16 %v3737, %v3736
        %v3883 = vpack.c.b16 %v3739, %v3738
        %v3884 = vpack.c.b16 %v3741, %v3740
        %v3885 = vpack.c.b16 %v3743, %v3742
        %v3886 = vpack.c.b16 %v3745, %v3744
        %v3887 = vpack.c.b16 %v3747, %v3746
        %v3888 = vpack.c.b16 %v3749, %v3748
        %v3889 = vpack.c.b16 %v3751, %v3750
        %v3890 = vpack.c.b16 %v3753, %v3752
        %v3891 = vpack.c.b16 %v3755, %v3754
        %v3892 = vpack.c.b16 %v3757, %v3756
        %v3893 = vpack.c.b16 %v3759, %v3758
        %v3894 = vpack.c.b16 %v3761, %v3760
        %v3895 = vpack.c.b16 %v3763, %v3762
        %v3896 = vpack.c.b16 %v3765, %v3764
        %v3897 = vpack.c.b16 %v3767, %v3766
        %v3898 = vpack.c.b16 %v3769, %v3768
        %v3899 = vpack.c.b16 %v3771, %v3770
        %4028 = vmatprep.subr.bf16.mxu0 0
        %4029 = vmatpush1.bf16.msra.mxu0 %v3772
        %4030 = vmatprep.subr.bf16.mxu0 0
        %4031 = vmatpush1.bf16.msra.mxu0 %v3773
        %4032 = vmatprep.subr.bf16.mxu0 0
        %4033 = vmatpush1.bf16.msra.mxu0 %v3774
        %4034 = vmatprep.subr.bf16.mxu0 0
        %4035 = vmatpush1.bf16.msra.mxu0 %v3775
        %4036 = vmatprep.subr.bf16.mxu0 0
        %4037 = vmatpush1.bf16.msra.mxu0 %v3776
        %4038 = vmatprep.subr.bf16.mxu0 0
        %4039 = vmatpush1.bf16.msra.mxu0 %v3777
        %4040 = vmatprep.subr.bf16.mxu0 0
        %4041 = vmatpush1.bf16.msra.mxu0 %v3778
        %4042 = vmatprep.subr.bf16.mxu0 0
        %4043 = vmatpush1.bf16.msra.mxu0 %v3779
        %4044 = vmatprep.subr.bf16.mxu0 0
        %4045 = vmatpush1.bf16.msra.mxu0 %v3780
        %4046 = vmatprep.subr.bf16.mxu0 0
        %4047 = vmatpush1.bf16.msra.mxu0 %v3781
        %4048 = vmatprep.subr.bf16.mxu0 0
        %4049 = vmatpush1.bf16.msra.mxu0 %v3782
        %4050 = vmatprep.subr.bf16.mxu0 0
        %4051 = vmatpush1.bf16.msra.mxu0 %v3783
        %4052 = vmatprep.subr.bf16.mxu0 0
        %4053 = vmatpush1.bf16.msra.mxu0 %v3784
        %4054 = vmatprep.subr.bf16.mxu0 0
        %4055 = vmatpush1.bf16.msra.mxu0 %v3785
        %4056 = vmatprep.subr.bf16.mxu0 0
        %4057 = vmatpush1.bf16.msra.mxu0 %v3786
        %4058 = vmatprep.subr.bf16.mxu0 0
        %4059 = vmatpush1.bf16.msra.mxu0 %v3787
        %4060 = vmatprep.mubr.bf16.mxu0 %v2982
        %4061 = vmatmul.mubr.bf16.gmra.mrb[0].mxu0 %v2981
        %v4062 = vpop.f32.mrb[0].mxu0
        %v4063 = vadd.f32 %v3258, %v4062
        %v4064 = vpop.f32.mrb[0].mxu0
        %v4065 = vpop.f32.mrb[0].mxu0
        %v4066 = vadd.f32 %v3258, %v4065
        %v4067 = vpop.f32.mrb[0].mxu0
        %4068 = vdwg.mxu0
        %4069 = vmatprep.subr.bf16.mxu0 0
        %4070 = vmatpush1.bf16.msra.mxu0 %v3788
        %4071 = vmatprep.subr.bf16.mxu0 0
        %4072 = vmatpush1.bf16.msra.mxu0 %v3789
        %4073 = vmatprep.subr.bf16.mxu0 0
        %4074 = vmatpush1.bf16.msra.mxu0 %v3790
        %4075 = vmatprep.subr.bf16.mxu0 0
        %4076 = vmatpush1.bf16.msra.mxu0 %v3791
        %4077 = vmatprep.subr.bf16.mxu0 0
        %4078 = vmatpush1.bf16.msra.mxu0 %v3792
        %4079 = vmatprep.subr.bf16.mxu0 0
        %4080 = vmatpush1.bf16.msra.mxu0 %v3793
        %4081 = vmatprep.subr.bf16.mxu0 0
        %4082 = vmatpush1.bf16.msra.mxu0 %v3794
        %4083 = vmatprep.subr.bf16.mxu0 0
        %4084 = vmatpush1.bf16.msra.mxu0 %v3795
        %4085 = vmatprep.subr.bf16.mxu0 0
        %4086 = vmatpush1.bf16.msra.mxu0 %v3796
        %4087 = vmatprep.subr.bf16.mxu0 0
        %4088 = vmatpush1.bf16.msra.mxu0 %v3797
        %4089 = vmatprep.subr.bf16.mxu0 0
        %4090 = vmatpush1.bf16.msra.mxu0 %v3798
        %4091 = vmatprep.subr.bf16.mxu0 0
        %4092 = vmatpush1.bf16.msra.mxu0 %v3799
        %4093 = vmatprep.subr.bf16.mxu0 0
        %4094 = vmatpush1.bf16.msra.mxu0 %v3800
        %4095 = vmatprep.subr.bf16.mxu0 0
        %4096 = vmatpush1.bf16.msra.mxu0 %v3801
        %4097 = vmatprep.subr.bf16.mxu0 0
        %4098 = vmatpush1.bf16.msra.mxu0 %v3802
        %4099 = vmatprep.subr.bf16.mxu0 0
        %4100 = vmatpush1.bf16.msra.mxu0 %v3803
        %4101 = vmatprep.mubr.bf16.mxu0 %v2984
        %4102 = vmatmul.mubr.bf16.gmra.mrb[0].mxu0 %v2983
        %v4103 = vpop.f32.mrb[0].mxu0
        %v4104 = vadd.f32 %v4063, %v4103
        %v4105 = vpop.f32.mrb[0].mxu0
        %v4106 = vpop.f32.mrb[0].mxu0
        %v4107 = vadd.f32 %v4066, %v4106
        %v4108 = vpop.f32.mrb[0].mxu0
        %4109 = vdwg.mxu0
        %4110 = vmatprep.subr.bf16.mxu0 0
        %4111 = vmatpush1.bf16.msra.mxu0 %v3804
        %4112 = vmatprep.subr.bf16.mxu0 0
        %4113 = vmatpush1.bf16.msra.mxu0 %v3805
        %4114 = vmatprep.subr.bf16.mxu0 0
        %4115 = vmatpush1.bf16.msra.mxu0 %v3806
        %4116 = vmatprep.subr.bf16.mxu0 0
        %4117 = vmatpush1.bf16.msra.mxu0 %v3807
        %4118 = vmatprep.subr.bf16.mxu0 0
        %4119 = vmatpush1.bf16.msra.mxu0 %v3808
        %4120 = vmatprep.subr.bf16.mxu0 0
        %4121 = vmatpush1.bf16.msra.mxu0 %v3809
        %4122 = vmatprep.subr.bf16.mxu0 0
        %4123 = vmatpush1.bf16.msra.mxu0 %v3810
        %4124 = vmatprep.subr.bf16.mxu0 0
        %4125 = vmatpush1.bf16.msra.mxu0 %v3811
        %4126 = vmatprep.subr.bf16.mxu0 0
        %4127 = vmatpush1.bf16.msra.mxu0 %v3812
        %4128 = vmatprep.subr.bf16.mxu0 0
        %4129 = vmatpush1.bf16.msra.mxu0 %v3813
        %4130 = vmatprep.subr.bf16.mxu0 0
        %4131 = vmatpush1.bf16.msra.mxu0 %v3814
        %4132 = vmatprep.subr.bf16.mxu0 0
        %4133 = vmatpush1.bf16.msra.mxu0 %v3815
        %4134 = vmatprep.subr.bf16.mxu0 0
        %4135 = vmatpush1.bf16.msra.mxu0 %v3816
        %4136 = vmatprep.subr.bf16.mxu0 0
        %4137 = vmatpush1.bf16.msra.mxu0 %v3817
        %4138 = vmatprep.subr.bf16.mxu0 0
        %4139 = vmatpush1.bf16.msra.mxu0 %v3818
        %4140 = vmatprep.subr.bf16.mxu0 0
        %4141 = vmatpush1.bf16.msra.mxu0 %v3819
        %4142 = vmatprep.mubr.bf16.mxu0 %v2986
        %4143 = vmatmul.mubr.bf16.gmra.mrb[0].mxu0 %v2985
        %v4144 = vpop.f32.mrb[0].mxu0
        %v4145 = vadd.f32 %v4104, %v4144
        %v4146 = vpop.f32.mrb[0].mxu0
        %v4147 = vpop.f32.mrb[0].mxu0
        %v4148 = vadd.f32 %v4107, %v4147
        %v4149 = vpop.f32.mrb[0].mxu0
        %4150 = vdwg.mxu0
        %4151 = vmatprep.subr.bf16.mxu0 0
        %4152 = vmatpush1.bf16.msra.mxu0 %v3820
        %4153 = vmatprep.subr.bf16.mxu0 0
        %4154 = vmatpush1.bf16.msra.mxu0 %v3821
        %4155 = vmatprep.subr.bf16.mxu0 0
        %4156 = vmatpush1.bf16.msra.mxu0 %v3822
        %4157 = vmatprep.subr.bf16.mxu0 0
        %4158 = vmatpush1.bf16.msra.mxu0 %v3823
        %4159 = vmatprep.subr.bf16.mxu0 0
        %4160 = vmatpush1.bf16.msra.mxu0 %v3824
        %4161 = vmatprep.subr.bf16.mxu0 0
        %4162 = vmatpush1.bf16.msra.mxu0 %v3825
        %4163 = vmatprep.subr.bf16.mxu0 0
        %4164 = vmatpush1.bf16.msra.mxu0 %v3826
        %4165 = vmatprep.subr.bf16.mxu0 0
        %4166 = vmatpush1.bf16.msra.mxu0 %v3827
        %4167 = vmatprep.subr.bf16.mxu0 0
        %4168 = vmatpush1.bf16.msra.mxu0 %v3828
        %4169 = vmatprep.subr.bf16.mxu0 0
        %4170 = vmatpush1.bf16.msra.mxu0 %v3829
        %4171 = vmatprep.subr.bf16.mxu0 0
        %4172 = vmatpush1.bf16.msra.mxu0 %v3830
        %4173 = vmatprep.subr.bf16.mxu0 0
        %4174 = vmatpush1.bf16.msra.mxu0 %v3831
        %4175 = vmatprep.subr.bf16.mxu0 0
        %4176 = vmatpush1.bf16.msra.mxu0 %v3832
        %4177 = vmatprep.subr.bf16.mxu0 0
        %4178 = vmatpush1.bf16.msra.mxu0 %v3833
        %4179 = vmatprep.subr.bf16.mxu0 0
        %4180 = vmatpush1.bf16.msra.mxu0 %v3834
        %4181 = vmatprep.subr.bf16.mxu0 0
        %4182 = vmatpush1.bf16.msra.mxu0 %v3835
        %4183 = vmatprep.mubr.bf16.mxu0 %v2988
        %4184 = vmatmul.mubr.bf16.gmra.mrb[0].mxu0 %v2987
        %v4185 = vpop.f32.mrb[0].mxu0
        %v4186 = vadd.f32 %v4145, %v4185
        %v4187 = vpop.f32.mrb[0].mxu0
        %v4188 = vpop.f32.mrb[0].mxu0
        %v4189 = vadd.f32 %v4148, %v4188
        %v4190 = vpop.f32.mrb[0].mxu0
        %4191 = vdwg.mxu0
        %4192 = vmatprep.subr.bf16.mxu0 0
        %4193 = vmatpush1.bf16.msra.mxu0 %v3836
        %4194 = vmatprep.subr.bf16.mxu0 0
        %4195 = vmatpush1.bf16.msra.mxu0 %v3837
        %4196 = vmatprep.subr.bf16.mxu0 0
        %4197 = vmatpush1.bf16.msra.mxu0 %v3838
        %4198 = vmatprep.subr.bf16.mxu0 0
        %4199 = vmatpush1.bf16.msra.mxu0 %v3839
        %4200 = vmatprep.subr.bf16.mxu0 0
        %4201 = vmatpush1.bf16.msra.mxu0 %v3840
        %4202 = vmatprep.subr.bf16.mxu0 0
        %4203 = vmatpush1.bf16.msra.mxu0 %v3841
        %4204 = vmatprep.subr.bf16.mxu0 0
        %4205 = vmatpush1.bf16.msra.mxu0 %v3842
        %4206 = vmatprep.subr.bf16.mxu0 0
        %4207 = vmatpush1.bf16.msra.mxu0 %v3843
        %4208 = vmatprep.subr.bf16.mxu0 0
        %4209 = vmatpush1.bf16.msra.mxu0 %v3844
        %4210 = vmatprep.subr.bf16.mxu0 0
        %4211 = vmatpush1.bf16.msra.mxu0 %v3845
        %4212 = vmatprep.subr.bf16.mxu0 0
        %4213 = vmatpush1.bf16.msra.mxu0 %v3846
        %4214 = vmatprep.subr.bf16.mxu0 0
        %4215 = vmatpush1.bf16.msra.mxu0 %v3847
        %4216 = vmatprep.subr.bf16.mxu0 0
        %4217 = vmatpush1.bf16.msra.mxu0 %v3848
        %4218 = vmatprep.subr.bf16.mxu0 0
        %4219 = vmatpush1.bf16.msra.mxu0 %v3849
        %4220 = vmatprep.subr.bf16.mxu0 0
        %4221 = vmatpush1.bf16.msra.mxu0 %v3850
        %4222 = vmatprep.subr.bf16.mxu0 0
        %4223 = vmatpush1.bf16.msra.mxu0 %v3851
        %4224 = vmatprep.mubr.bf16.mxu0 %v2990
        %4225 = vmatmul.mubr.bf16.gmra.mrb[0].mxu0 %v2989
        %v4226 = vpop.f32.mrb[0].mxu0
        %v4227 = vadd.f32 %v4186, %v4226
        %v4228 = vpop.f32.mrb[0].mxu0
        %v4229 = vpop.f32.mrb[0].mxu0
        %v4230 = vadd.f32 %v4189, %v4229
        %v4231 = vpop.f32.mrb[0].mxu0
        %4232 = vdwg.mxu0
        %4233 = vmatprep.subr.bf16.mxu0 0
        %4234 = vmatpush1.bf16.msra.mxu0 %v3852
        %4235 = vmatprep.subr.bf16.mxu0 0
        %4236 = vmatpush1.bf16.msra.mxu0 %v3853
        %4237 = vmatprep.subr.bf16.mxu0 0
        %4238 = vmatpush1.bf16.msra.mxu0 %v3854
        %4239 = vmatprep.subr.bf16.mxu0 0
        %4240 = vmatpush1.bf16.msra.mxu0 %v3855
        %4241 = vmatprep.subr.bf16.mxu0 0
        %4242 = vmatpush1.bf16.msra.mxu0 %v3856
        %4243 = vmatprep.subr.bf16.mxu0 0
        %4244 = vmatpush1.bf16.msra.mxu0 %v3857
        %4245 = vmatprep.subr.bf16.mxu0 0
        %4246 = vmatpush1.bf16.msra.mxu0 %v3858
        %4247 = vmatprep.subr.bf16.mxu0 0
        %4248 = vmatpush1.bf16.msra.mxu0 %v3859
        %4249 = vmatprep.subr.bf16.mxu0 0
        %4250 = vmatpush1.bf16.msra.mxu0 %v3860
        %4251 = vmatprep.subr.bf16.mxu0 0
        %4252 = vmatpush1.bf16.msra.mxu0 %v3861
        %4253 = vmatprep.subr.bf16.mxu0 0
        %4254 = vmatpush1.bf16.msra.mxu0 %v3862
        %4255 = vmatprep.subr.bf16.mxu0 0
        %4256 = vmatpush1.bf16.msra.mxu0 %v3863
        %4257 = vmatprep.subr.bf16.mxu0 0
        %4258 = vmatpush1.bf16.msra.mxu0 %v3864
        %4259 = vmatprep.subr.bf16.mxu0 0
        %4260 = vmatpush1.bf16.msra.mxu0 %v3865
        %4261 = vmatprep.subr.bf16.mxu0 0
        %4262 = vmatpush1.bf16.msra.mxu0 %v3866
        %4263 = vmatprep.subr.bf16.mxu0 0
        %4264 = vmatpush1.bf16.msra.mxu0 %v3867
        %4265 = vmatprep.mubr.bf16.mxu0 %v2992
        %4266 = vmatmul.mubr.bf16.gmra.mrb[0].mxu0 %v2991
        %v4267 = vpop.f32.mrb[0].mxu0
        %v4268 = vadd.f32 %v4227, %v4267
        %v4269 = vpop.f32.mrb[0].mxu0
        %v4270 = vpop.f32.mrb[0].mxu0
        %v4271 = vadd.f32 %v4230, %v4270
        %v4272 = vpop.f32.mrb[0].mxu0
        %4273 = vdwg.mxu0
        %4274 = vmatprep.subr.bf16.mxu0 0
        %4275 = vmatpush1.bf16.msra.mxu0 %v3868
        %4276 = vmatprep.subr.bf16.mxu0 0
        %4277 = vmatpush1.bf16.msra.mxu0 %v3869
        %4278 = vmatprep.subr.bf16.mxu0 0
        %4279 = vmatpush1.bf16.msra.mxu0 %v3870
        %4280 = vmatprep.subr.bf16.mxu0 0
        %4281 = vmatpush1.bf16.msra.mxu0 %v3871
        %4282 = vmatprep.subr.bf16.mxu0 0
        %4283 = vmatpush1.bf16.msra.mxu0 %v3872
        %4284 = vmatprep.subr.bf16.mxu0 0
        %4285 = vmatpush1.bf16.msra.mxu0 %v3873
        %4286 = vmatprep.subr.bf16.mxu0 0
        %4287 = vmatpush1.bf16.msra.mxu0 %v3874
        %4288 = vmatprep.subr.bf16.mxu0 0
        %4289 = vmatpush1.bf16.msra.mxu0 %v3875
        %4290 = vmatprep.subr.bf16.mxu0 0
        %4291 = vmatpush1.bf16.msra.mxu0 %v3876
        %4292 = vmatprep.subr.bf16.mxu0 0
        %4293 = vmatpush1.bf16.msra.mxu0 %v3877
        %4294 = vmatprep.subr.bf16.mxu0 0
        %4295 = vmatpush1.bf16.msra.mxu0 %v3878
        %4296 = vmatprep.subr.bf16.mxu0 0
        %4297 = vmatpush1.bf16.msra.mxu0 %v3879
        %4298 = vmatprep.subr.bf16.mxu0 0
        %4299 = vmatpush1.bf16.msra.mxu0 %v3880
        %4300 = vmatprep.subr.bf16.mxu0 0
        %4301 = vmatpush1.bf16.msra.mxu0 %v3881
        %4302 = vmatprep.subr.bf16.mxu0 0
        %4303 = vmatpush1.bf16.msra.mxu0 %v3882
        %4304 = vmatprep.subr.bf16.mxu0 0
        %4305 = vmatpush1.bf16.msra.mxu0 %v3883
        %4306 = vmatprep.mubr.bf16.mxu0 %v2994
        %4307 = vmatmul.mubr.bf16.gmra.mrb[0].mxu0 %v2993
        %v4308 = vpop.f32.mrb[0].mxu0
        %v4309 = vadd.f32 %v4268, %v4308
        %v4310 = vpop.f32.mrb[0].mxu0
        %v4311 = vpop.f32.mrb[0].mxu0
        %v4312 = vadd.f32 %v4271, %v4311
        %v4313 = vpop.f32.mrb[0].mxu0
        %4314 = vdwg.mxu0
        %4315 = vmatprep.subr.bf16.mxu0 0
        %4316 = vmatpush1.bf16.msra.mxu0 %v3884
        %4317 = vmatprep.subr.bf16.mxu0 0
        %4318 = vmatpush1.bf16.msra.mxu0 %v3885
        %4319 = vmatprep.subr.bf16.mxu0 0
        %4320 = vmatpush1.bf16.msra.mxu0 %v3886
        %4321 = vmatprep.subr.bf16.mxu0 0
        %4322 = vmatpush1.bf16.msra.mxu0 %v3887
        %4323 = vmatprep.subr.bf16.mxu0 0
        %4324 = vmatpush1.bf16.msra.mxu0 %v3888
        %4325 = vmatprep.subr.bf16.mxu0 0
        %4326 = vmatpush1.bf16.msra.mxu0 %v3889
        %4327 = vmatprep.subr.bf16.mxu0 0
        %4328 = vmatpush1.bf16.msra.mxu0 %v3890
        %4329 = vmatprep.subr.bf16.mxu0 0
        %4330 = vmatpush1.bf16.msra.mxu0 %v3891
        %4331 = vmatprep.subr.bf16.mxu0 0
        %4332 = vmatpush1.bf16.msra.mxu0 %v3892
        %4333 = vmatprep.subr.bf16.mxu0 0
        %4334 = vmatpush1.bf16.msra.mxu0 %v3893
        %4335 = vmatprep.subr.bf16.mxu0 0
        %4336 = vmatpush1.bf16.msra.mxu0 %v3894
        %4337 = vmatprep.subr.bf16.mxu0 0
        %4338 = vmatpush1.bf16.msra.mxu0 %v3895
        %4339 = vmatprep.subr.bf16.mxu0 0
        %4340 = vmatpush1.bf16.msra.mxu0 %v3896
        %4341 = vmatprep.subr.bf16.mxu0 0
        %4342 = vmatpush1.bf16.msra.mxu0 %v3897
        %4343 = vmatprep.subr.bf16.mxu0 0
        %4344 = vmatpush1.bf16.msra.mxu0 %v3898
        %4345 = vmatprep.subr.bf16.mxu0 0
        %4346 = vmatpush1.bf16.msra.mxu0 %v3899
        %4347 = vmatprep.mubr.bf16.mxu0 %v2996
        %4348 = vmatmul.mubr.bf16.gmra.mrb[0].mxu0 %v2995
        %v4349 = vpop.f32.mrb[0].mxu0
        %v4350 = vadd.f32 %v4309, %v4349
        %v4351 = vpop.f32.mrb[0].mxu0
        %v4352 = vpop.f32.mrb[0].mxu0
        %v4353 = vadd.f32 %v4312, %v4352
        %v4354 = vpop.f32.mrb[0].mxu0
        %4355 = vdwg.mxu0
        %v4356 = vadd.f32 %v2193, %v4350
        %v4357 = vadd.f32 %v2194, %v4353
        %v4358 = vsel %vm744, %v4356, 0.0
        %4359 = vadd.xlane.f32.xlu0 %v4358
        %v4360 = vpop.xlane.xlu0 %4359
        %v4361 = vsel %vm744, %v4357, 0.0
        %4362 = vadd.xlane.f32.xlu0 %v4361
        %v4363 = vpop.xlane.xlu0 %4362
        %v4364 = vmul.f32 %v4360, %v1483
        %v4365 = vmul.f32 %v4363, %v1483
        %v4366 = vsub.f32 %v4356, %v4364
        %v4367 = vsub.f32 %v4357, %v4365
        %v4368 = vmul.f32 %v4366, %v4366
        %v4369 = vmul.f32 %v4367, %v4367
        %v4370 = vsel %vm744, %v4368, 0.0
        %4371 = vadd.xlane.f32.xlu0 %v4370
        %v4372 = vpop.xlane.xlu0 %4371
        %v4373 = vsel %vm744, %v4369, 0.0
        %4374 = vadd.xlane.f32.xlu0 %v4373
        %v4375 = vpop.xlane.xlu0 %4374
        %v4376 = vmul.f32 %v4372, %v1483
        %v4377 = vmul.f32 %v4375, %v1483
        %v4378 = vadd.f32 %v4376, 1e-05
        %v4379 = vadd.f32 %v4377, 1e-05
        %v4380 = vrsqrt.pop %v4378
        %v4381 = vrsqrt.pop %v4379
        %v4382 = vmul.f32 %v4366, %v4380
        %v4383 = vmul.f32 %v4367, %v4381
        %s4384 = scalar_lea.vmem %s661, 2
        %v4385 = vld [vmem:[%s4384] sm:$0x1]
        %v4387 = vlaneseq
        %v4388 = vshrl.u32 %v4387, 7
        %v4389 = vsub.s32 0, %v4388
        %v4390 = vrot.slane %v4385, %v4389
        %v4392 = vmul.f32 %v4382, %v4390
        %v4393 = vmul.f32 %v4383, %v4390
        %s4394 = scalar_lea.vmem %s666, 2
        %v4395 = vld [vmem:[%s4394] sm:$0x1]
        %v4397 = vlaneseq
        %v4398 = vshrl.u32 %v4397, 7
        %v4399 = vsub.s32 0, %v4398
        %v4400 = vrot.slane %v4395, %v4399
        %v4402 = vadd.f32 %v4392, %v4400
        %v4403 = vadd.f32 %v4393, %v4400
        %4404 = vst.msk [vmem:[#allocation2] sm:$0xff] %vm744, %v4402
        %4405 = vst.msk [vmem:[#allocation2 + $0x8] sm:$0xff] %vm744, %v4403
        %p4406 = scmp.eq.s32.totalorder %s29, 2
        // Predicated region
        $region93: #{quantity_tf_forward.1} parent=87 // pred_check
          %p4407 = pneg %p4406
        $region94: #{quantity_tf_forward.1} parent=87 // pred_check_branch
          %4409 = sbr.rel (%p4407) target = $region96
        $region95: #{quantity_tf_forward.1} parent=87 // pred_region
          %v4410 = vld [vmem:[%s6] sm:$0x3]
          %v4412 = vsel %vm961, %v4410, 0
          %4414 = vmatprep.subr.mxu0 0.0
          %4415 = vmatpush1.msra.mxu0 %v4402
          %4416 = vmatprep.subr.mxu0 0.0
          %4417 = vmatpush1.msra.mxu0 %v4403
          %4418 = vmatprep.subr.mxu0 0.0
          %4419 = vmatpush1.msra.mxu0 0.0
          %4420 = vmatprep.subr.mxu0 0.0
          %4421 = vmatpush1.msra.mxu0 0.0
          %4422 = vmatprep.subr.mxu0 0.0
          %4423 = vmatpush1.msra.mxu0 0.0
          %4424 = vmatprep.subr.mxu0 0.0
          %4425 = vmatpush1.msra.mxu0 0.0
          %4426 = vmatprep.subr.mxu0 0.0
          %4427 = vmatpush1.msra.mxu0 0.0
          %4428 = vmatprep.subr.mxu0 0.0
          %4429 = vmatpush1.msra.mxu0 0.0
          %4430 = vmatprep.subr.mxu0 0.0
          %4431 = vmatpush1.msra.mxu0 0.0
          %4432 = vmatprep.subr.mxu0 0.0
          %4433 = vmatpush1.msra.mxu0 0.0
          %4434 = vmatprep.subr.mxu0 0.0
          %4435 = vmatpush1.msra.mxu0 0.0
          %4436 = vmatprep.subr.mxu0 0.0
          %4437 = vmatpush1.msra.mxu0 0.0
          %4438 = vmatprep.subr.mxu0 0.0
          %4439 = vmatpush1.msra.mxu0 0.0
          %4440 = vmatprep.subr.mxu0 0.0
          %4441 = vmatpush1.msra.mxu0 0.0
          %4442 = vmatprep.subr.mxu0 0.0
          %4443 = vmatpush1.msra.mxu0 0.0
          %4444 = vmatprep.subr.mxu0 0.0
          %4445 = vmatpush1.msra.mxu0 0.0
          %4446 = vmatprep.subr.mxu0 0.0
          %4447 = vmatpush1.msra.mxu0 0.0
          %4448 = vmatprep.subr.mxu0 0.0
          %4449 = vmatpush1.msra.mxu0 0.0
          %4450 = vmatprep.subr.mxu0 0.0
          %4451 = vmatpush1.msra.mxu0 0.0
          %4452 = vmatprep.subr.mxu0 0.0
          %4453 = vmatpush1.msra.mxu0 0.0
          %4454 = vmatprep.subr.mxu0 0.0
          %4455 = vmatpush1.msra.mxu0 0.0
          %4456 = vmatprep.subr.mxu0 0.0
          %4457 = vmatpush1.msra.mxu0 0.0
          %4458 = vmatprep.subr.mxu0 0.0
          %4459 = vmatpush1.msra.mxu0 0.0
          %4460 = vmatprep.subr.mxu0 0.0
          %4461 = vmatpush1.msra.mxu0 0.0
          %4462 = vmatprep.subr.mxu0 0.0
          %4463 = vmatpush1.msra.mxu0 0.0
          %4464 = vmatprep.subr.mxu0 0.0
          %4465 = vmatpush1.msra.mxu0 0.0
          %4466 = vmatprep.subr.mxu0 0.0
          %4467 = vmatpush1.msra.mxu0 0.0
          %4468 = vmatprep.subr.mxu0 0.0
          %4469 = vmatpush1.msra.mxu0 0.0
          %4470 = vmatprep.subr.mxu0 0.0
          %4471 = vmatpush1.msra.mxu0 0.0
          %4472 = vmatprep.subr.mxu0 0.0
          %4473 = vmatpush1.msra.mxu0 0.0
          %4474 = vmatprep.subr.mxu0 0.0
          %4475 = vmatpush1.msra.mxu0 0.0
          %4476 = vmatprep.subr.mxu0 0.0
          %4477 = vmatpush1.msra.mxu0 0.0
          %4478 = vmatprep.mubr.f32.mxu0 0.0
          %4479 = vmatmul.mubr.f32.gmra.mrb[0].mxu0 %v4412
          %v4480 = vpop.f32.mrb[0].mxu0
          %v4481 = vadd.f32 0.0, %v4480
          %v4482 = vpop.f32.mrb[0].mxu0
          %4483 = vdwg.mxu0
          %v4484 = vld [vmem:[%s15] sm:$0xff]
          %v4485 = vld [vmem:[%s15 + $0x8] sm:$0xff]
          %v4486 = vld [vmem:[%s15 + $0x10] sm:$0xff]
          %v4487 = vld [vmem:[%s15 + $0x18] sm:$0xff]
          %v4488 = vld [vmem:[%s16] sm:$0x1]
          %v4490 = vlaneseq
          %v4491 = vshrl.u32 %v4490, 7
          %v4492 = vsub.s32 0, %v4491
          %v4493 = vrot.slane %v4488, %v4492
          %v4496 = vsel %vm744, %v4481, 0
          %4498 = vmatprep.subr.mxu0 0.0
          %4499 = vmatpush1.msra.mxu0 %v4484
          %4500 = vmatprep.subr.mxu0 0.0
          %4501 = vmatpush1.msra.mxu0 %v4485
          %4502 = vmatprep.subr.mxu0 0.0
          %4503 = vmatpush1.msra.mxu0 %v4486
          %4504 = vmatprep.subr.mxu0 0.0
          %4505 = vmatpush1.msra.mxu0 %v4487
          %4506 = vmatprep.subr.mxu0 0.0
          %4507 = vmatpush1.msra.mxu0 0.0
          %4508 = vmatprep.subr.mxu0 0.0
          %4509 = vmatpush1.msra.mxu0 0.0
          %4510 = vmatprep.subr.mxu0 0.0
          %4511 = vmatpush1.msra.mxu0 0.0
          %4512 = vmatprep.subr.mxu0 0.0
          %4513 = vmatpush1.msra.mxu0 0.0
          %4514 = vmatprep.subr.mxu0 0.0
          %4515 = vmatpush1.msra.mxu0 0.0
          %4516 = vmatprep.subr.mxu0 0.0
          %4517 = vmatpush1.msra.mxu0 0.0
          %4518 = vmatprep.subr.mxu0 0.0
          %4519 = vmatpush1.msra.mxu0 0.0
          %4520 = vmatprep.subr.mxu0 0.0
          %4521 = vmatpush1.msra.mxu0 0.0
          %4522 = vmatprep.subr.mxu0 0.0
          %4523 = vmatpush1.msra.mxu0 0.0
          %4524 = vmatprep.subr.mxu0 0.0
          %4525 = vmatpush1.msra.mxu0 0.0
          %4526 = vmatprep.subr.mxu0 0.0
          %4527 = vmatpush1.msra.mxu0 0.0
          %4528 = vmatprep.subr.mxu0 0.0
          %4529 = vmatpush1.msra.mxu0 0.0
          %4530 = vmatprep.subr.mxu0 0.0
          %4531 = vmatpush1.msra.mxu0 0.0
          %4532 = vmatprep.subr.mxu0 0.0
          %4533 = vmatpush1.msra.mxu0 0.0
          %4534 = vmatprep.subr.mxu0 0.0
          %4535 = vmatpush1.msra.mxu0 0.0
          %4536 = vmatprep.subr.mxu0 0.0
          %4537 = vmatpush1.msra.mxu0 0.0
          %4538 = vmatprep.subr.mxu0 0.0
          %4539 = vmatpush1.msra.mxu0 0.0
          %4540 = vmatprep.subr.mxu0 0.0
          %4541 = vmatpush1.msra.mxu0 0.0
          %4542 = vmatprep.subr.mxu0 0.0
          %4543 = vmatpush1.msra.mxu0 0.0
          %4544 = vmatprep.subr.mxu0 0.0
          %4545 = vmatpush1.msra.mxu0 0.0
          %4546 = vmatprep.subr.mxu0 0.0
          %4547 = vmatpush1.msra.mxu0 0.0
          %4548 = vmatprep.subr.mxu0 0.0
          %4549 = vmatpush1.msra.mxu0 0.0
          %4550 = vmatprep.subr.mxu0 0.0
          %4551 = vmatpush1.msra.mxu0 0.0
          %4552 = vmatprep.subr.mxu0 0.0
          %4553 = vmatpush1.msra.mxu0 0.0
          %4554 = vmatprep.subr.mxu0 0.0
          %4555 = vmatpush1.msra.mxu0 0.0
          %4556 = vmatprep.subr.mxu0 0.0
          %4557 = vmatpush1.msra.mxu0 0.0
          %4558 = vmatprep.subr.mxu0 0.0
          %4559 = vmatpush1.msra.mxu0 0.0
          %4560 = vmatprep.subr.mxu0 0.0
          %4561 = vmatpush1.msra.mxu0 0.0
          %4562 = vmatprep.mubr.f32.mxu0 0.0
          %4563 = vmatmul.mubr.f32.gmra.mrb[0].mxu0 %v4496
          %v4564 = vpop.f32.mrb[0].mxu0
          %v4565 = vadd.f32 %v4493, %v4564
          %v4566 = vpop.f32.mrb[0].mxu0
          %4567 = vdwg.mxu0
          %vm4568 = vcmask 66560
          %4569 = vst.msk [vmem:[#allocation3] sm:$0x3] %vm4568, %v4565
        $region96: #{quantity_tf_forward.1} parent=87 // pred_fallthru
          _
        // Predicated region
        $region97: #{quantity_tf_forward.1} parent=87 // pred_check
          %p4570 = pneg %p439
        $region98: #{quantity_tf_forward.1} parent=87 // pred_check_branch
          %4572 = sbr.rel (%p4570) target = $region100
        $region99: #{quantity_tf_forward.1} parent=87 // pred_region
          %s4574 = ssub.s32 32, 32
          %4575 = vsyncadd [#allocation4], %s4574
          %s4577 = sshll.u32 [#allocation3], 4
          %s4578 = int_to_ptr.vmem [resolvable:$true] %s4577
          %4580 = dma.vmem_to_hbm [thread:$0]  %s4578, 32, %s17, [#allocation4]
        $region100: #{quantity_tf_forward.1} parent=87 // pred_fallthru
          _
        // Predicated region
        $region101: #{quantity_tf_forward.1} parent=87 // pred_check
          %p4581 = pneg %p439
        $region102: #{quantity_tf_forward.1} parent=87 // pred_check_branch
          %4583 = sbr.rel (%p4581) target = $region104
        $region103: #{quantity_tf_forward.1} parent=87 // pred_region
          %4584 = dma.done [#allocation4], 32
        $region104: #{quantity_tf_forward.1} parent=87 // pred_fallthru
          _
      $region88: #{quantity_tf_forward.1} parent=5 // pred_fallthru
        _
      %p4585 = scmp.le.s32.totalorder 2, %s24
      // Predicated region
      $region105: #{quantity_tf_forward.1} parent=5 // pred_check
        %p4586 = pneg %p4585
      $region106: #{quantity_tf_forward.1} parent=5 // pred_check_branch
        %4588 = sbr.rel (%p4586) target = $region108
      $region107: #{quantity_tf_forward.1} parent=5 // pred_region
        %s4589 = ssub.s32 %s24, 2
      $region108: #{quantity_tf_forward.1} parent=5 // pred_fallthru
        _
    $region6: #{quantity_tf_forward.1} parent=1 // loop_footer
      %s28 = sadd.s32 1, %s24
    $region7: #{quantity_tf_forward.1} parent=1 // loop_footer_branch
      %23 = sbr.rel target = $region3
    $region8: #{quantity_tf_forward.1} parent=1 // loop_exit
      _
    %4590 = vsyncpa [#allocation4], 1
    %s4591 = scalar_lea.sflag [#allocation4], 1
    %4592 = vsyncpa %s4591, 1

</llo_original>
